<compile_context>
chip_gen: v6e
topology: v6e:2x2x1
jax: 0.10.0
libtpu: 0.0.40
codegen_flags: <defaults>
</compile_context>

<pallas_src>
import numpy as np
import jax
import jax.numpy as jnp
from jax import lax
from jax.experimental import pallas as pl
from jax.experimental.pallas import tpu as pltpu


_VMEM = pl.BlockSpec(memory_space=pltpu.MemorySpace.VMEM)


# ------------------------------ fused kernel --------------------------------

def _fused_kernel(lhs1_ref, rhs1_ref, b1_ref, s2_ref, rhs2_ref, b2_ref,
                  el_ref, wl2_ref, bl_ref, o_ref):
    # ---- conv1 + ReLU + 2x2 maxpool --------------------------------------
    # lhs1_ref[s] : [B*8, W*C]   rows = (b, pooled-row I), s = (hpar, kh)
    # rhs1_ref[kh, wpar] : [W*C, 64]  banded conv1 weights, lanes = (pooled-col J, n)
    ys = []
    for hpar in range(2):
        for wpar in range(2):
            acc = None
            for kh in range(3):
                d = jnp.dot(lhs1_ref[hpar * 3 + kh], rhs1_ref[kh, wpar],
                            preferred_element_type=jnp.float32)
                acc = d if acc is None else acc + d
            ys.append(jnp.maximum(acc + b1_ref[...], 0.0))
    # pool1 = elementwise max over the four (row-parity, col-parity) conv outputs
    p1 = jnp.maximum(jnp.maximum(ys[0], ys[1]),
                     jnp.maximum(ys[2], ys[3]))            # [B*8, 64]  rows=(b,I), lanes=(J,n)

    # ---- conv2 + ReLU + 2x2 maxpool --------------------------------------
    # s2_ref[hpar, kh] : [B*2, B*8]  constant 0/1 row-selection (handles H zero-padding)
    # rhs2_ref[kh, wpar] : [64, 32]  banded conv2 weights, lanes = (pooled-col J2, m)
    y2s = []
    for hpar in range(2):
        a_kh = [jnp.dot(s2_ref[hpar, kh], p1, preferred_element_type=jnp.float32)
                for kh in range(3)]                        # [B*2, 64]
        for wpar in range(2):
            acc = None
            for kh in range(3):
                d = jnp.dot(a_kh[kh], rhs2_ref[kh, wpar],
                            preferred_element_type=jnp.float32)
                acc = d if acc is None else acc + d
            y2s.append(jnp.maximum(acc + b2_ref[...], 0.0))
    p2 = jnp.maximum(jnp.maximum(y2s[0], y2s[1]),
                     jnp.maximum(y2s[2], y2s[3]))          # [B*2, 32]  rows=(b,I2), lanes=(J2,m)

    # ---- flatten (PyTorch NCHW order, folded into wl2) + Linear -----------
    acc = None
    for i2 in range(2):
        r = jnp.dot(el_ref[i2], p2, preferred_element_type=jnp.float32)   # [B, 32]
        d = jnp.dot(r, wl2_ref[i2], preferred_element_type=jnp.float32)   # [B, nc]
        acc = d if acc is None else acc + d
    o_ref[...] = acc + bl_ref[...]


# ------------------------------- wrapper -------------------------------------

def _forward_impl(x_nchw, params):
    B, C, H, W = x_nchw.shape
    assert H == 32 and W == 32, "Linear(64, num_classes) implies a 32x32 input"
    nc = params["bl"].shape[0]
    f32 = jnp.float32

    # NHWC, rows flattened over (w, c); pad only in H (W padding contributes zero and
    # is simply omitted from the banded weight's K axis).
    x = jnp.transpose(x_nchw, (0, 2, 3, 1)).astype(f32)            # [B,32,32,C]
    xrow = x.reshape(B, H, W * C)                                  # [B,32,W*C]
    xrow = jnp.pad(xrow, ((0, 0), (1, 1), (0, 0)))                 # [B,34,W*C]

    # conv1 LHS slices: slice s=(hpar,kh), pooled-row I -> padded row 4I + 2*hpar + kh
    row_idx = np.array([[4 * i + 2 * hp + kh for i in range(8)]
                        for hp in range(2) for kh in range(3)], dtype=np.int32)   # [6,8]
    lhs1 = xrow[:, row_idx, :]                                     # [B,6,8,W*C]
    lhs1 = jnp.transpose(lhs1, (1, 0, 2, 3)).reshape(6, B * 8, W * C)

    # conv1 banded RHS: rhs1[kh,wpar][w*C+c, J*8+n] = w1[kh, kw, c, n]
    #   with kw = w - 4J - 2*wpar + 1 when in {0,1,2}
    sel1 = np.zeros((2, 3, W, 8), np.float32)
    for wpar in range(2):
        for kw in range(3):
            for J in range(8):
                w_ = 4 * J + 2 * wpar + kw - 1
                if 0 <= w_ < W:
                    sel1[wpar, kw, w_, J] = 1.0
    rhs1 = jnp.einsum("pkwa,hkcn->hpwcan",
                      jnp.asarray(sel1), params["w1"].astype(f32))  # [3,2,W,C,8,8]
    rhs1 = rhs1.reshape(3, 2, W * C, 64)
    b1t = jnp.tile(params["b1"].astype(f32), 8).reshape(1, 64)

    # conv2 padded-row selection (0/1 constants; all-zero rows realize the H padding)
    s2 = np.zeros((2, 3, B * 2, B * 8), np.float32)
    for hpar in range(2):
        for kh in range(3):
            for b in range(B):
                for t in range(2):
                    s_ = 4 * t + 2 * hpar + kh - 1
                    if 0 <= s_ < 8:
                        s2[hpar, kh, b * 2 + t, b * 8 + s_] = 1.0
    s2 = jnp.asarray(s2)

    # conv2 banded RHS: rhs2[kh,wpar][J*8+c, J2*16+m] = w2[kh, kw, c, m]
    #   with kw = J - 4*J2 - 2*wpar + 1 when in {0,1,2}
    sel2 = np.zeros((2, 3, 8, 2), np.float32)
    for wpar in range(2):
        for kw in range(3):
            for J2 in range(2):
                J = 4 * J2 + 2 * wpar + kw - 1
                if 0 <= J < 8:
                    sel2[wpar, kw, J, J2] = 1.0
    rhs2 = jnp.einsum("pkab,hkcm->hpacbm",
                      jnp.asarray(sel2), params["w2"].astype(f32))  # [3,2,8,8,2,16]
    rhs2 = rhs2.reshape(3, 2, 64, 32)
    b2t = jnp.tile(params["b2"].astype(f32), 2).reshape(1, 32)

    # flatten + linear helpers: per pooled-row I2, select each batch's row of p2 and
    # contract against the correspondingly re-ordered linear weight (NCHW flatten order).
    el = np.zeros((2, B, B * 2), np.float32)
    for i2 in range(2):
        for b in range(B):
            el[i2, b, b * 2 + i2] = 1.0
    el = jnp.asarray(el)
    wl2 = params["wl"].astype(f32).reshape(16, 2, 2, nc)            # [m, I2, J2, k]
    wl2 = jnp.transpose(wl2, (1, 2, 0, 3)).reshape(2, 32, nc)       # [I2, (J2,m), k]
    blv = params["bl"].astype(f32).reshape(1, nc)

    return pl.pallas_call(
        _fused_kernel,
        out_shape=jax.ShapeDtypeStruct((B, nc), f32),
        in_specs=[_VMEM] * 9,
        out_specs=_VMEM,
    )(lhs1, rhs1, b1t, s2, rhs2, b2t, el, wl2, blv)


small_classifier_forward = jax.jit(_forward_impl)


# ------------------------- pure-JAX reference (check) -----------------------

def reference_forward(x_nchw, params):
    x = jnp.transpose(x_nchw, (0, 2, 3, 1)).astype(jnp.float32)
    dn = ("NHWC", "HWIO", "NHWC")
    y = lax.conv_general_dilated(x, params["w1"], (2, 2), ((1, 1), (1, 1)),
                                 dimension_numbers=dn)
    y = jnp.maximum(y + params["b1"], 0.0)
    y = lax.reduce_window(y, -jnp.inf, lax.max, (1, 2, 2, 1), (1, 2, 2, 1), "VALID")
    y = lax.conv_general_dilated(y, params["w2"], (2, 2), ((1, 1), (1, 1)),
                                 dimension_numbers=dn)
    y = jnp.maximum(y + params["b2"], 0.0)
    y = lax.reduce_window(y, -jnp.inf, lax.max, (1, 2, 2, 1), (1, 2, 2, 1), "VALID")
    flat = jnp.transpose(y, (0, 3, 1, 2)).reshape(x.shape[0], -1)
    return flat @ params["wl"] + params["bl"]


# --------------------------------- main --------------------------------------

if __name__ == "__main__":
    B, C, H, W = 2, 4, 32, 32          # 32x32 -> flattened 16*2*2 = 64 (Linear(64, nc))
    num_classes = 10

    key = jax.random.PRNGKey(0)
    kx, k1, k2, k3, k4, k5, k6 = jax.random.split(key, 7)

    x = jax.random.normal(kx, (B, C, H, W), dtype=jnp.float32)

    params = {
        # conv weights stored HWIO (kh, kw, cin, cout); linear weight stored [64, nc].
        "w1": 0.1 * jax.random.normal(k1, (3, 3, C, 8), dtype=jnp.float32),
        "b1": 0.1 * jax.random.normal(k2, (8,), dtype=jnp.float32),
        "w2": 0.1 * jax.random.normal(k3, (3, 3, 8, 16), dtype=jnp.float32),
        "b2": 0.1 * jax.random.normal(k4, (16,), dtype=jnp.float32),
        "wl": 0.1 * jax.random.normal(k5, (64, num_classes), dtype=jnp.float32),
        "bl": 0.1 * jax.random.normal(k6, (num_classes,), dtype=jnp.float32),
    }

    out = small_classifier_forward(x, params)
    out = jax.block_until_ready(out)
    assert out.shape == (B, num_classes), out.shape

    ref = jax.block_until_ready(reference_forward(x, params))
    assert jnp.allclose(out, ref, rtol=1e-3, atol=1e-3), \
        f"max abs err {jnp.max(jnp.abs(out - ref))}"

    print("KERNEL_OK")
</pallas_src>

<mosaic_0001>
module attributes {stable_mosaic.version = 11 : i64} {
  func.func @_fused_kernel(%arg0: memref<6x16x128xf32, #tpu.memory_space<vmem>>, %arg1: memref<3x2x128x64xf32, #tpu.memory_space<vmem>>, %arg2: memref<1x64xf32, #tpu.memory_space<vmem>>, %arg3: memref<2x3x4x16xf32, #tpu.memory_space<vmem>>, %arg4: memref<3x2x64x32xf32, #tpu.memory_space<vmem>>, %arg5: memref<1x32xf32, #tpu.memory_space<vmem>>, %arg6: memref<2x2x4xf32, #tpu.memory_space<vmem>>, %arg7: memref<2x32x10xf32, #tpu.memory_space<vmem>>, %arg8: memref<1x10xf32, #tpu.memory_space<vmem>>, %arg9: memref<2x10xf32, #tpu.memory_space<vmem>>) attributes {dimension_semantics = [], scalar_prefetch = 0 : i64, scratch_operands = 0 : i64, tpu.core_type = #tpu.core_type<tc>} {
    %c0 = arith.constant 0 : index
    %c0_0 = arith.constant 0 : index
    %c0_1 = arith.constant 0 : index
    %0 = vector.load %arg0[%c0, %c0_0, %c0_1] : memref<6x16x128xf32, #tpu.memory_space<vmem>>, vector<1x16x128xf32>
    %1 = vector.shape_cast %0 : vector<1x16x128xf32> to vector<16x128xf32>
    %c0_2 = arith.constant 0 : index
    %c0_3 = arith.constant 0 : index
    %c0_4 = arith.constant 0 : index
    %c0_5 = arith.constant 0 : index
    %2 = vector.load %arg1[%c0_2, %c0_3, %c0_4, %c0_5] : memref<3x2x128x64xf32, #tpu.memory_space<vmem>>, vector<1x1x128x64xf32>
    %3 = vector.shape_cast %2 : vector<1x1x128x64xf32> to vector<128x64xf32>
    %cst = arith.constant dense<0.000000e+00> : vector<16x64xf32>
    %4 = tpu.matmul %1, %3, %cst {dimension_numbers = #tpu.dot_dimension_numbers<[1], [0], [0], [1], [0, 0, 1, 1], [], []>} : vector<16x128xf32>, vector<128x64xf32>, vector<16x64xf32> -> vector<16x64xf32>
    %c1 = arith.constant 1 : index
    %c0_6 = arith.constant 0 : index
    %c0_7 = arith.constant 0 : index
    %5 = vector.load %arg0[%c1, %c0_6, %c0_7] : memref<6x16x128xf32, #tpu.memory_space<vmem>>, vector<1x16x128xf32>
    %6 = vector.shape_cast %5 : vector<1x16x128xf32> to vector<16x128xf32>
    %c1_8 = arith.constant 1 : index
    %c0_9 = arith.constant 0 : index
    %c0_10 = arith.constant 0 : index
    %c0_11 = arith.constant 0 : index
    %7 = vector.load %arg1[%c1_8, %c0_9, %c0_10, %c0_11] : memref<3x2x128x64xf32, #tpu.memory_space<vmem>>, vector<1x1x128x64xf32>
    %8 = vector.shape_cast %7 : vector<1x1x128x64xf32> to vector<128x64xf32>
    %cst_12 = arith.constant dense<0.000000e+00> : vector<16x64xf32>
    %9 = tpu.matmul %6, %8, %cst_12 {dimension_numbers = #tpu.dot_dimension_numbers<[1], [0], [0], [1], [0, 0, 1, 1], [], []>} : vector<16x128xf32>, vector<128x64xf32>, vector<16x64xf32> -> vector<16x64xf32>
    %10 = arith.addf %4, %9 : vector<16x64xf32>
    %c2 = arith.constant 2 : index
    %c0_13 = arith.constant 0 : index
    %c0_14 = arith.constant 0 : index
    %11 = vector.load %arg0[%c2, %c0_13, %c0_14] : memref<6x16x128xf32, #tpu.memory_space<vmem>>, vector<1x16x128xf32>
    %12 = vector.shape_cast %11 : vector<1x16x128xf32> to vector<16x128xf32>
    %c2_15 = arith.constant 2 : index
    %c0_16 = arith.constant 0 : index
    %c0_17 = arith.constant 0 : index
    %c0_18 = arith.constant 0 : index
    %13 = vector.load %arg1[%c2_15, %c0_16, %c0_17, %c0_18] : memref<3x2x128x64xf32, #tpu.memory_space<vmem>>, vector<1x1x128x64xf32>
    %14 = vector.shape_cast %13 : vector<1x1x128x64xf32> to vector<128x64xf32>
    %cst_19 = arith.constant dense<0.000000e+00> : vector<16x64xf32>
    %15 = tpu.matmul %12, %14, %cst_19 {dimension_numbers = #tpu.dot_dimension_numbers<[1], [0], [0], [1], [0, 0, 1, 1], [], []>} : vector<16x128xf32>, vector<128x64xf32>, vector<16x64xf32> -> vector<16x64xf32>
    %16 = arith.addf %10, %15 : vector<16x64xf32>
    %c0_20 = arith.constant 0 : index
    %c0_21 = arith.constant 0 : index
    %17 = vector.load %arg2[%c0_20, %c0_21] : memref<1x64xf32, #tpu.memory_space<vmem>>, vector<1x64xf32>
    %18 = vector.broadcast %17 : vector<1x64xf32> to vector<16x64xf32>
    %19 = arith.addf %16, %18 : vector<16x64xf32>
    %cst_22 = arith.constant 0.000000e+00 : f32
    %20 = vector.broadcast %cst_22 : f32 to vector<16x64xf32>
    %21 = arith.maximumf %19, %20 : vector<16x64xf32>
    %c0_23 = arith.constant 0 : index
    %c0_24 = arith.constant 0 : index
    %c0_25 = arith.constant 0 : index
    %22 = vector.load %arg0[%c0_23, %c0_24, %c0_25] : memref<6x16x128xf32, #tpu.memory_space<vmem>>, vector<1x16x128xf32>
    %23 = vector.shape_cast %22 : vector<1x16x128xf32> to vector<16x128xf32>
    %c0_26 = arith.constant 0 : index
    %c1_27 = arith.constant 1 : index
    %c0_28 = arith.constant 0 : index
    %c0_29 = arith.constant 0 : index
    %24 = vector.load %arg1[%c0_26, %c1_27, %c0_28, %c0_29] : memref<3x2x128x64xf32, #tpu.memory_space<vmem>>, vector<1x1x128x64xf32>
    %25 = vector.shape_cast %24 : vector<1x1x128x64xf32> to vector<128x64xf32>
    %cst_30 = arith.constant dense<0.000000e+00> : vector<16x64xf32>
    %26 = tpu.matmul %23, %25, %cst_30 {dimension_numbers = #tpu.dot_dimension_numbers<[1], [0], [0], [1], [0, 0, 1, 1], [], []>} : vector<16x128xf32>, vector<128x64xf32>, vector<16x64xf32> -> vector<16x64xf32>
    %c1_31 = arith.constant 1 : index
    %c0_32 = arith.constant 0 : index
    %c0_33 = arith.constant 0 : index
    %27 = vector.load %arg0[%c1_31, %c0_32, %c0_33] : memref<6x16x128xf32, #tpu.memory_space<vmem>>, vector<1x16x128xf32>
    %28 = vector.shape_cast %27 : vector<1x16x128xf32> to vector<16x128xf32>
    %c1_34 = arith.constant 1 : index
    %c1_35 = arith.constant 1 : index
    %c0_36 = arith.constant 0 : index
    %c0_37 = arith.constant 0 : index
    %29 = vector.load %arg1[%c1_34, %c1_35, %c0_36, %c0_37] : memref<3x2x128x64xf32, #tpu.memory_space<vmem>>, vector<1x1x128x64xf32>
    %30 = vector.shape_cast %29 : vector<1x1x128x64xf32> to vector<128x64xf32>
    %cst_38 = arith.constant dense<0.000000e+00> : vector<16x64xf32>
    %31 = tpu.matmul %28, %30, %cst_38 {dimension_numbers = #tpu.dot_dimension_numbers<[1], [0], [0], [1], [0, 0, 1, 1], [], []>} : vector<16x128xf32>, vector<128x64xf32>, vector<16x64xf32> -> vector<16x64xf32>
    %32 = arith.addf %26, %31 : vector<16x64xf32>
    %c2_39 = arith.constant 2 : index
    %c0_40 = arith.constant 0 : index
    %c0_41 = arith.constant 0 : index
    %33 = vector.load %arg0[%c2_39, %c0_40, %c0_41] : memref<6x16x128xf32, #tpu.memory_space<vmem>>, vector<1x16x128xf32>
    %34 = vector.shape_cast %33 : vector<1x16x128xf32> to vector<16x128xf32>
    %c2_42 = arith.constant 2 : index
    %c1_43 = arith.constant 1 : index
    %c0_44 = arith.constant 0 : index
    %c0_45 = arith.constant 0 : index
    %35 = vector.load %arg1[%c2_42, %c1_43, %c0_44, %c0_45] : memref<3x2x128x64xf32, #tpu.memory_space<vmem>>, vector<1x1x128x64xf32>
    %36 = vector.shape_cast %35 : vector<1x1x128x64xf32> to vector<128x64xf32>
    %cst_46 = arith.constant dense<0.000000e+00> : vector<16x64xf32>
    %37 = tpu.matmul %34, %36, %cst_46 {dimension_numbers = #tpu.dot_dimension_numbers<[1], [0], [0], [1], [0, 0, 1, 1], [], []>} : vector<16x128xf32>, vector<128x64xf32>, vector<16x64xf32> -> vector<16x64xf32>
    %38 = arith.addf %32, %37 : vector<16x64xf32>
    %c0_47 = arith.constant 0 : index
    %c0_48 = arith.constant 0 : index
    %39 = vector.load %arg2[%c0_47, %c0_48] : memref<1x64xf32, #tpu.memory_space<vmem>>, vector<1x64xf32>
    %40 = vector.broadcast %39 : vector<1x64xf32> to vector<16x64xf32>
    %41 = arith.addf %38, %40 : vector<16x64xf32>
    %cst_49 = arith.constant 0.000000e+00 : f32
    %42 = vector.broadcast %cst_49 : f32 to vector<16x64xf32>
    %43 = arith.maximumf %41, %42 : vector<16x64xf32>
    %c3 = arith.constant 3 : index
    %c0_50 = arith.constant 0 : index
    %c0_51 = arith.constant 0 : index
    %44 = vector.load %arg0[%c3, %c0_50, %c0_51] : memref<6x16x128xf32, #tpu.memory_space<vmem>>, vector<1x16x128xf32>
    %45 = vector.shape_cast %44 : vector<1x16x128xf32> to vector<16x128xf32>
    %c0_52 = arith.constant 0 : index
    %c0_53 = arith.constant 0 : index
    %c0_54 = arith.constant 0 : index
    %c0_55 = arith.constant 0 : index
    %46 = vector.load %arg1[%c0_52, %c0_53, %c0_54, %c0_55] : memref<3x2x128x64xf32, #tpu.memory_space<vmem>>, vector<1x1x128x64xf32>
    %47 = vector.shape_cast %46 : vector<1x1x128x64xf32> to vector<128x64xf32>
    %cst_56 = arith.constant dense<0.000000e+00> : vector<16x64xf32>
    %48 = tpu.matmul %45, %47, %cst_56 {dimension_numbers = #tpu.dot_dimension_numbers<[1], [0], [0], [1], [0, 0, 1, 1], [], []>} : vector<16x128xf32>, vector<128x64xf32>, vector<16x64xf32> -> vector<16x64xf32>
    %c4 = arith.constant 4 : index
    %c0_57 = arith.constant 0 : index
    %c0_58 = arith.constant 0 : index
    %49 = vector.load %arg0[%c4, %c0_57, %c0_58] : memref<6x16x128xf32, #tpu.memory_space<vmem>>, vector<1x16x128xf32>
    %50 = vector.shape_cast %49 : vector<1x16x128xf32> to vector<16x128xf32>
    %c1_59 = arith.constant 1 : index
    %c0_60 = arith.constant 0 : index
    %c0_61 = arith.constant 0 : index
    %c0_62 = arith.constant 0 : index
    %51 = vector.load %arg1[%c1_59, %c0_60, %c0_61, %c0_62] : memref<3x2x128x64xf32, #tpu.memory_space<vmem>>, vector<1x1x128x64xf32>
    %52 = vector.shape_cast %51 : vector<1x1x128x64xf32> to vector<128x64xf32>
    %cst_63 = arith.constant dense<0.000000e+00> : vector<16x64xf32>
    %53 = tpu.matmul %50, %52, %cst_63 {dimension_numbers = #tpu.dot_dimension_numbers<[1], [0], [0], [1], [0, 0, 1, 1], [], []>} : vector<16x128xf32>, vector<128x64xf32>, vector<16x64xf32> -> vector<16x64xf32>
    %54 = arith.addf %48, %53 : vector<16x64xf32>
    %c5 = arith.constant 5 : index
    %c0_64 = arith.constant 0 : index
    %c0_65 = arith.constant 0 : index
    %55 = vector.load %arg0[%c5, %c0_64, %c0_65] : memref<6x16x128xf32, #tpu.memory_space<vmem>>, vector<1x16x128xf32>
    %56 = vector.shape_cast %55 : vector<1x16x128xf32> to vector<16x128xf32>
    %c2_66 = arith.constant 2 : index
    %c0_67 = arith.constant 0 : index
    %c0_68 = arith.constant 0 : index
    %c0_69 = arith.constant 0 : index
    %57 = vector.load %arg1[%c2_66, %c0_67, %c0_68, %c0_69] : memref<3x2x128x64xf32, #tpu.memory_space<vmem>>, vector<1x1x128x64xf32>
    %58 = vector.shape_cast %57 : vector<1x1x128x64xf32> to vector<128x64xf32>
    %cst_70 = arith.constant dense<0.000000e+00> : vector<16x64xf32>
    %59 = tpu.matmul %56, %58, %cst_70 {dimension_numbers = #tpu.dot_dimension_numbers<[1], [0], [0], [1], [0, 0, 1, 1], [], []>} : vector<16x128xf32>, vector<128x64xf32>, vector<16x64xf32> -> vector<16x64xf32>
    %60 = arith.addf %54, %59 : vector<16x64xf32>
    %c0_71 = arith.constant 0 : index
    %c0_72 = arith.constant 0 : index
    %61 = vector.load %arg2[%c0_71, %c0_72] : memref<1x64xf32, #tpu.memory_space<vmem>>, vector<1x64xf32>
    %62 = vector.broadcast %61 : vector<1x64xf32> to vector<16x64xf32>
    %63 = arith.addf %60, %62 : vector<16x64xf32>
    %cst_73 = arith.constant 0.000000e+00 : f32
    %64 = vector.broadcast %cst_73 : f32 to vector<16x64xf32>
    %65 = arith.maximumf %63, %64 : vector<16x64xf32>
    %c3_74 = arith.constant 3 : index
    %c0_75 = arith.constant 0 : index
    %c0_76 = arith.constant 0 : index
    %66 = vector.load %arg0[%c3_74, %c0_75, %c0_76] : memref<6x16x128xf32, #tpu.memory_space<vmem>>, vector<1x16x128xf32>
    %67 = vector.shape_cast %66 : vector<1x16x128xf32> to vector<16x128xf32>
    %c0_77 = arith.constant 0 : index
    %c1_78 = arith.constant 1 : index
    %c0_79 = arith.constant 0 : index
    %c0_80 = arith.constant 0 : index
    %68 = vector.load %arg1[%c0_77, %c1_78, %c0_79, %c0_80] : memref<3x2x128x64xf32, #tpu.memory_space<vmem>>, vector<1x1x128x64xf32>
    %69 = vector.shape_cast %68 : vector<1x1x128x64xf32> to vector<128x64xf32>
    %cst_81 = arith.constant dense<0.000000e+00> : vector<16x64xf32>
    %70 = tpu.matmul %67, %69, %cst_81 {dimension_numbers = #tpu.dot_dimension_numbers<[1], [0], [0], [1], [0, 0, 1, 1], [], []>} : vector<16x128xf32>, vector<128x64xf32>, vector<16x64xf32> -> vector<16x64xf32>
    %c4_82 = arith.constant 4 : index
    %c0_83 = arith.constant 0 : index
    %c0_84 = arith.constant 0 : index
    %71 = vector.load %arg0[%c4_82, %c0_83, %c0_84] : memref<6x16x128xf32, #tpu.memory_space<vmem>>, vector<1x16x128xf32>
    %72 = vector.shape_cast %71 : vector<1x16x128xf32> to vector<16x128xf32>
    %c1_85 = arith.constant 1 : index
    %c1_86 = arith.constant 1 : index
    %c0_87 = arith.constant 0 : index
    %c0_88 = arith.constant 0 : index
    %73 = vector.load %arg1[%c1_85, %c1_86, %c0_87, %c0_88] : memref<3x2x128x64xf32, #tpu.memory_space<vmem>>, vector<1x1x128x64xf32>
    %74 = vector.shape_cast %73 : vector<1x1x128x64xf32> to vector<128x64xf32>
    %cst_89 = arith.constant dense<0.000000e+00> : vector<16x64xf32>
    %75 = tpu.matmul %72, %74, %cst_89 {dimension_numbers = #tpu.dot_dimension_numbers<[1], [0], [0], [1], [0, 0, 1, 1], [], []>} : vector<16x128xf32>, vector<128x64xf32>, vector<16x64xf32> -> vector<16x64xf32>
    %76 = arith.addf %70, %75 : vector<16x64xf32>
    %c5_90 = arith.constant 5 : index
    %c0_91 = arith.constant 0 : index
    %c0_92 = arith.constant 0 : index
    %77 = vector.load %arg0[%c5_90, %c0_91, %c0_92] : memref<6x16x128xf32, #tpu.memory_space<vmem>>, vector<1x16x128xf32>
    %78 = vector.shape_cast %77 : vector<1x16x128xf32> to vector<16x128xf32>
    %c2_93 = arith.constant 2 : index
    %c1_94 = arith.constant 1 : index
    %c0_95 = arith.constant 0 : index
    %c0_96 = arith.constant 0 : index
    %79 = vector.load %arg1[%c2_93, %c1_94, %c0_95, %c0_96] : memref<3x2x128x64xf32, #tpu.memory_space<vmem>>, vector<1x1x128x64xf32>
    %80 = vector.shape_cast %79 : vector<1x1x128x64xf32> to vector<128x64xf32>
    %cst_97 = arith.constant dense<0.000000e+00> : vector<16x64xf32>
    %81 = tpu.matmul %78, %80, %cst_97 {dimension_numbers = #tpu.dot_dimension_numbers<[1], [0], [0], [1], [0, 0, 1, 1], [], []>} : vector<16x128xf32>, vector<128x64xf32>, vector<16x64xf32> -> vector<16x64xf32>
    %82 = arith.addf %76, %81 : vector<16x64xf32>
    %c0_98 = arith.constant 0 : index
    %c0_99 = arith.constant 0 : index
    %83 = vector.load %arg2[%c0_98, %c0_99] : memref<1x64xf32, #tpu.memory_space<vmem>>, vector<1x64xf32>
    %84 = vector.broadcast %83 : vector<1x64xf32> to vector<16x64xf32>
    %85 = arith.addf %82, %84 : vector<16x64xf32>
    %cst_100 = arith.constant 0.000000e+00 : f32
    %86 = vector.broadcast %cst_100 : f32 to vector<16x64xf32>
    %87 = arith.maximumf %85, %86 : vector<16x64xf32>
    %88 = arith.maximumf %21, %43 : vector<16x64xf32>
    %89 = arith.maximumf %65, %87 : vector<16x64xf32>
    %90 = arith.maximumf %88, %89 : vector<16x64xf32>
    %c0_101 = arith.constant 0 : index
    %c0_102 = arith.constant 0 : index
    %c0_103 = arith.constant 0 : index
    %c0_104 = arith.constant 0 : index
    %91 = vector.load %arg3[%c0_101, %c0_102, %c0_103, %c0_104] : memref<2x3x4x16xf32, #tpu.memory_space<vmem>>, vector<1x1x4x16xf32>
    %92 = vector.shape_cast %91 : vector<1x1x4x16xf32> to vector<4x16xf32>
    %cst_105 = arith.constant dense<0.000000e+00> : vector<4x64xf32>
    %93 = tpu.matmul %92, %90, %cst_105 {dimension_numbers = #tpu.dot_dimension_numbers<[1], [0], [0], [1], [0, 0, 1, 1], [], []>} : vector<4x16xf32>, vector<16x64xf32>, vector<4x64xf32> -> vector<4x64xf32>
    %c0_106 = arith.constant 0 : index
    %c1_107 = arith.constant 1 : index
    %c0_108 = arith.constant 0 : index
    %c0_109 = arith.constant 0 : index
    %94 = vector.load %arg3[%c0_106, %c1_107, %c0_108, %c0_109] : memref<2x3x4x16xf32, #tpu.memory_space<vmem>>, vector<1x1x4x16xf32>
    %95 = vector.shape_cast %94 : vector<1x1x4x16xf32> to vector<4x16xf32>
    %cst_110 = arith.constant dense<0.000000e+00> : vector<4x64xf32>
    %96 = tpu.matmul %95, %90, %cst_110 {dimension_numbers = #tpu.dot_dimension_numbers<[1], [0], [0], [1], [0, 0, 1, 1], [], []>} : vector<4x16xf32>, vector<16x64xf32>, vector<4x64xf32> -> vector<4x64xf32>
    %c0_111 = arith.constant 0 : index
    %c2_112 = arith.constant 2 : index
    %c0_113 = arith.constant 0 : index
    %c0_114 = arith.constant 0 : index
    %97 = vector.load %arg3[%c0_111, %c2_112, %c0_113, %c0_114] : memref<2x3x4x16xf32, #tpu.memory_space<vmem>>, vector<1x1x4x16xf32>
    %98 = vector.shape_cast %97 : vector<1x1x4x16xf32> to vector<4x16xf32>
    %cst_115 = arith.constant dense<0.000000e+00> : vector<4x64xf32>
    %99 = tpu.matmul %98, %90, %cst_115 {dimension_numbers = #tpu.dot_dimension_numbers<[1], [0], [0], [1], [0, 0, 1, 1], [], []>} : vector<4x16xf32>, vector<16x64xf32>, vector<4x64xf32> -> vector<4x64xf32>
    %c0_116 = arith.constant 0 : index
    %c0_117 = arith.constant 0 : index
    %c0_118 = arith.constant 0 : index
    %c0_119 = arith.constant 0 : index
    %100 = vector.load %arg4[%c0_116, %c0_117, %c0_118, %c0_119] : memref<3x2x64x32xf32, #tpu.memory_space<vmem>>, vector<1x1x64x32xf32>
    %101 = vector.shape_cast %100 : vector<1x1x64x32xf32> to vector<64x32xf32>
    %cst_120 = arith.constant dense<0.000000e+00> : vector<4x32xf32>
    %102 = tpu.matmul %93, %101, %cst_120 {dimension_numbers = #tpu.dot_dimension_numbers<[1], [0], [0], [1], [0, 0, 1, 1], [], []>} : vector<4x64xf32>, vector<64x32xf32>, vector<4x32xf32> -> vector<4x32xf32>
    %c1_121 = arith.constant 1 : index
    %c0_122 = arith.constant 0 : index
    %c0_123 = arith.constant 0 : index
    %c0_124 = arith.constant 0 : index
    %103 = vector.load %arg4[%c1_121, %c0_122, %c0_123, %c0_124] : memref<3x2x64x32xf32, #tpu.memory_space<vmem>>, vector<1x1x64x32xf32>
    %104 = vector.shape_cast %103 : vector<1x1x64x32xf32> to vector<64x32xf32>
    %cst_125 = arith.constant dense<0.000000e+00> : vector<4x32xf32>
    %105 = tpu.matmul %96, %104, %cst_125 {dimension_numbers = #tpu.dot_dimension_numbers<[1], [0], [0], [1], [0, 0, 1, 1], [], []>} : vector<4x64xf32>, vector<64x32xf32>, vector<4x32xf32> -> vector<4x32xf32>
    %106 = arith.addf %102, %105 : vector<4x32xf32>
    %c2_126 = arith.constant 2 : index
    %c0_127 = arith.constant 0 : index
    %c0_128 = arith.constant 0 : index
    %c0_129 = arith.constant 0 : index
    %107 = vector.load %arg4[%c2_126, %c0_127, %c0_128, %c0_129] : memref<3x2x64x32xf32, #tpu.memory_space<vmem>>, vector<1x1x64x32xf32>
    %108 = vector.shape_cast %107 : vector<1x1x64x32xf32> to vector<64x32xf32>
    %cst_130 = arith.constant dense<0.000000e+00> : vector<4x32xf32>
    %109 = tpu.matmul %99, %108, %cst_130 {dimension_numbers = #tpu.dot_dimension_numbers<[1], [0], [0], [1], [0, 0, 1, 1], [], []>} : vector<4x64xf32>, vector<64x32xf32>, vector<4x32xf32> -> vector<4x32xf32>
    %110 = arith.addf %106, %109 : vector<4x32xf32>
    %c0_131 = arith.constant 0 : index
    %c0_132 = arith.constant 0 : index
    %111 = vector.load %arg5[%c0_131, %c0_132] : memref<1x32xf32, #tpu.memory_space<vmem>>, vector<1x32xf32>
    %112 = vector.broadcast %111 : vector<1x32xf32> to vector<4x32xf32>
    %113 = arith.addf %110, %112 : vector<4x32xf32>
    %cst_133 = arith.constant 0.000000e+00 : f32
    %114 = vector.broadcast %cst_133 : f32 to vector<4x32xf32>
    %115 = arith.maximumf %113, %114 : vector<4x32xf32>
    %c0_134 = arith.constant 0 : index
    %c1_135 = arith.constant 1 : index
    %c0_136 = arith.constant 0 : index
    %c0_137 = arith.constant 0 : index
    %116 = vector.load %arg4[%c0_134, %c1_135, %c0_136, %c0_137] : memref<3x2x64x32xf32, #tpu.memory_space<vmem>>, vector<1x1x64x32xf32>
    %117 = vector.shape_cast %116 : vector<1x1x64x32xf32> to vector<64x32xf32>
    %cst_138 = arith.constant dense<0.000000e+00> : vector<4x32xf32>
    %118 = tpu.matmul %93, %117, %cst_138 {dimension_numbers = #tpu.dot_dimension_numbers<[1], [0], [0], [1], [0, 0, 1, 1], [], []>} : vector<4x64xf32>, vector<64x32xf32>, vector<4x32xf32> -> vector<4x32xf32>
    %c1_139 = arith.constant 1 : index
    %c1_140 = arith.constant 1 : index
    %c0_141 = arith.constant 0 : index
    %c0_142 = arith.constant 0 : index
    %119 = vector.load %arg4[%c1_139, %c1_140, %c0_141, %c0_142] : memref<3x2x64x32xf32, #tpu.memory_space<vmem>>, vector<1x1x64x32xf32>
    %120 = vector.shape_cast %119 : vector<1x1x64x32xf32> to vector<64x32xf32>
    %cst_143 = arith.constant dense<0.000000e+00> : vector<4x32xf32>
    %121 = tpu.matmul %96, %120, %cst_143 {dimension_numbers = #tpu.dot_dimension_numbers<[1], [0], [0], [1], [0, 0, 1, 1], [], []>} : vector<4x64xf32>, vector<64x32xf32>, vector<4x32xf32> -> vector<4x32xf32>
    %122 = arith.addf %118, %121 : vector<4x32xf32>
    %c2_144 = arith.constant 2 : index
    %c1_145 = arith.constant 1 : index
    %c0_146 = arith.constant 0 : index
    %c0_147 = arith.constant 0 : index
    %123 = vector.load %arg4[%c2_144, %c1_145, %c0_146, %c0_147] : memref<3x2x64x32xf32, #tpu.memory_space<vmem>>, vector<1x1x64x32xf32>
    %124 = vector.shape_cast %123 : vector<1x1x64x32xf32> to vector<64x32xf32>
    %cst_148 = arith.constant dense<0.000000e+00> : vector<4x32xf32>
    %125 = tpu.matmul %99, %124, %cst_148 {dimension_numbers = #tpu.dot_dimension_numbers<[1], [0], [0], [1], [0, 0, 1, 1], [], []>} : vector<4x64xf32>, vector<64x32xf32>, vector<4x32xf32> -> vector<4x32xf32>
    %126 = arith.addf %122, %125 : vector<4x32xf32>
    %c0_149 = arith.constant 0 : index
    %c0_150 = arith.constant 0 : index
    %127 = vector.load %arg5[%c0_149, %c0_150] : memref<1x32xf32, #tpu.memory_space<vmem>>, vector<1x32xf32>
    %128 = vector.broadcast %127 : vector<1x32xf32> to vector<4x32xf32>
    %129 = arith.addf %126, %128 : vector<4x32xf32>
    %cst_151 = arith.constant 0.000000e+00 : f32
    %130 = vector.broadcast %cst_151 : f32 to vector<4x32xf32>
    %131 = arith.maximumf %129, %130 : vector<4x32xf32>
    %c1_152 = arith.constant 1 : index
    %c0_153 = arith.constant 0 : index
    %c0_154 = arith.constant 0 : index
    %c0_155 = arith.constant 0 : index
    %132 = vector.load %arg3[%c1_152, %c0_153, %c0_154, %c0_155] : memref<2x3x4x16xf32, #tpu.memory_space<vmem>>, vector<1x1x4x16xf32>
    %133 = vector.shape_cast %132 : vector<1x1x4x16xf32> to vector<4x16xf32>
    %cst_156 = arith.constant dense<0.000000e+00> : vector<4x64xf32>
    %134 = tpu.matmul %133, %90, %cst_156 {dimension_numbers = #tpu.dot_dimension_numbers<[1], [0], [0], [1], [0, 0, 1, 1], [], []>} : vector<4x16xf32>, vector<16x64xf32>, vector<4x64xf32> -> vector<4x64xf32>
    %c1_157 = arith.constant 1 : index
    %c1_158 = arith.constant 1 : index
    %c0_159 = arith.constant 0 : index
    %c0_160 = arith.constant 0 : index
    %135 = vector.load %arg3[%c1_157, %c1_158, %c0_159, %c0_160] : memref<2x3x4x16xf32, #tpu.memory_space<vmem>>, vector<1x1x4x16xf32>
    %136 = vector.shape_cast %135 : vector<1x1x4x16xf32> to vector<4x16xf32>
    %cst_161 = arith.constant dense<0.000000e+00> : vector<4x64xf32>
    %137 = tpu.matmul %136, %90, %cst_161 {dimension_numbers = #tpu.dot_dimension_numbers<[1], [0], [0], [1], [0, 0, 1, 1], [], []>} : vector<4x16xf32>, vector<16x64xf32>, vector<4x64xf32> -> vector<4x64xf32>
    %c1_162 = arith.constant 1 : index
    %c2_163 = arith.constant 2 : index
    %c0_164 = arith.constant 0 : index
    %c0_165 = arith.constant 0 : index
    %138 = vector.load %arg3[%c1_162, %c2_163, %c0_164, %c0_165] : memref<2x3x4x16xf32, #tpu.memory_space<vmem>>, vector<1x1x4x16xf32>
    %139 = vector.shape_cast %138 : vector<1x1x4x16xf32> to vector<4x16xf32>
    %cst_166 = arith.constant dense<0.000000e+00> : vector<4x64xf32>
    %140 = tpu.matmul %139, %90, %cst_166 {dimension_numbers = #tpu.dot_dimension_numbers<[1], [0], [0], [1], [0, 0, 1, 1], [], []>} : vector<4x16xf32>, vector<16x64xf32>, vector<4x64xf32> -> vector<4x64xf32>
    %c0_167 = arith.constant 0 : index
    %c0_168 = arith.constant 0 : index
    %c0_169 = arith.constant 0 : index
    %c0_170 = arith.constant 0 : index
    %141 = vector.load %arg4[%c0_167, %c0_168, %c0_169, %c0_170] : memref<3x2x64x32xf32, #tpu.memory_space<vmem>>, vector<1x1x64x32xf32>
    %142 = vector.shape_cast %141 : vector<1x1x64x32xf32> to vector<64x32xf32>
    %cst_171 = arith.constant dense<0.000000e+00> : vector<4x32xf32>
    %143 = tpu.matmul %134, %142, %cst_171 {dimension_numbers = #tpu.dot_dimension_numbers<[1], [0], [0], [1], [0, 0, 1, 1], [], []>} : vector<4x64xf32>, vector<64x32xf32>, vector<4x32xf32> -> vector<4x32xf32>
    %c1_172 = arith.constant 1 : index
    %c0_173 = arith.constant 0 : index
    %c0_174 = arith.constant 0 : index
    %c0_175 = arith.constant 0 : index
    %144 = vector.load %arg4[%c1_172, %c0_173, %c0_174, %c0_175] : memref<3x2x64x32xf32, #tpu.memory_space<vmem>>, vector<1x1x64x32xf32>
    %145 = vector.shape_cast %144 : vector<1x1x64x32xf32> to vector<64x32xf32>
    %cst_176 = arith.constant dense<0.000000e+00> : vector<4x32xf32>
    %146 = tpu.matmul %137, %145, %cst_176 {dimension_numbers = #tpu.dot_dimension_numbers<[1], [0], [0], [1], [0, 0, 1, 1], [], []>} : vector<4x64xf32>, vector<64x32xf32>, vector<4x32xf32> -> vector<4x32xf32>
    %147 = arith.addf %143, %146 : vector<4x32xf32>
    %c2_177 = arith.constant 2 : index
    %c0_178 = arith.constant 0 : index
    %c0_179 = arith.constant 0 : index
    %c0_180 = arith.constant 0 : index
    %148 = vector.load %arg4[%c2_177, %c0_178, %c0_179, %c0_180] : memref<3x2x64x32xf32, #tpu.memory_space<vmem>>, vector<1x1x64x32xf32>
    %149 = vector.shape_cast %148 : vector<1x1x64x32xf32> to vector<64x32xf32>
    %cst_181 = arith.constant dense<0.000000e+00> : vector<4x32xf32>
    %150 = tpu.matmul %140, %149, %cst_181 {dimension_numbers = #tpu.dot_dimension_numbers<[1], [0], [0], [1], [0, 0, 1, 1], [], []>} : vector<4x64xf32>, vector<64x32xf32>, vector<4x32xf32> -> vector<4x32xf32>
    %151 = arith.addf %147, %150 : vector<4x32xf32>
    %c0_182 = arith.constant 0 : index
    %c0_183 = arith.constant 0 : index
    %152 = vector.load %arg5[%c0_182, %c0_183] : memref<1x32xf32, #tpu.memory_space<vmem>>, vector<1x32xf32>
    %153 = vector.broadcast %152 : vector<1x32xf32> to vector<4x32xf32>
    %154 = arith.addf %151, %153 : vector<4x32xf32>
    %cst_184 = arith.constant 0.000000e+00 : f32
    %155 = vector.broadcast %cst_184 : f32 to vector<4x32xf32>
    %156 = arith.maximumf %154, %155 : vector<4x32xf32>
    %c0_185 = arith.constant 0 : index
    %c1_186 = arith.constant 1 : index
    %c0_187 = arith.constant 0 : index
    %c0_188 = arith.constant 0 : index
    %157 = vector.load %arg4[%c0_185, %c1_186, %c0_187, %c0_188] : memref<3x2x64x32xf32, #tpu.memory_space<vmem>>, vector<1x1x64x32xf32>
    %158 = vector.shape_cast %157 : vector<1x1x64x32xf32> to vector<64x32xf32>
    %cst_189 = arith.constant dense<0.000000e+00> : vector<4x32xf32>
    %159 = tpu.matmul %134, %158, %cst_189 {dimension_numbers = #tpu.dot_dimension_numbers<[1], [0], [0], [1], [0, 0, 1, 1], [], []>} : vector<4x64xf32>, vector<64x32xf32>, vector<4x32xf32> -> vector<4x32xf32>
    %c1_190 = arith.constant 1 : index
    %c1_191 = arith.constant 1 : index
    %c0_192 = arith.constant 0 : index
    %c0_193 = arith.constant 0 : index
    %160 = vector.load %arg4[%c1_190, %c1_191, %c0_192, %c0_193] : memref<3x2x64x32xf32, #tpu.memory_space<vmem>>, vector<1x1x64x32xf32>
    %161 = vector.shape_cast %160 : vector<1x1x64x32xf32> to vector<64x32xf32>
    %cst_194 = arith.constant dense<0.000000e+00> : vector<4x32xf32>
    %162 = tpu.matmul %137, %161, %cst_194 {dimension_numbers = #tpu.dot_dimension_numbers<[1], [0], [0], [1], [0, 0, 1, 1], [], []>} : vector<4x64xf32>, vector<64x32xf32>, vector<4x32xf32> -> vector<4x32xf32>
    %163 = arith.addf %159, %162 : vector<4x32xf32>
    %c2_195 = arith.constant 2 : index
    %c1_196 = arith.constant 1 : index
    %c0_197 = arith.constant 0 : index
    %c0_198 = arith.constant 0 : index
    %164 = vector.load %arg4[%c2_195, %c1_196, %c0_197, %c0_198] : memref<3x2x64x32xf32, #tpu.memory_space<vmem>>, vector<1x1x64x32xf32>
    %165 = vector.shape_cast %164 : vector<1x1x64x32xf32> to vector<64x32xf32>
    %cst_199 = arith.constant dense<0.000000e+00> : vector<4x32xf32>
    %166 = tpu.matmul %140, %165, %cst_199 {dimension_numbers = #tpu.dot_dimension_numbers<[1], [0], [0], [1], [0, 0, 1, 1], [], []>} : vector<4x64xf32>, vector<64x32xf32>, vector<4x32xf32> -> vector<4x32xf32>
    %167 = arith.addf %163, %166 : vector<4x32xf32>
    %c0_200 = arith.constant 0 : index
    %c0_201 = arith.constant 0 : index
    %168 = vector.load %arg5[%c0_200, %c0_201] : memref<1x32xf32, #tpu.memory_space<vmem>>, vector<1x32xf32>
    %169 = vector.broadcast %168 : vector<1x32xf32> to vector<4x32xf32>
    %170 = arith.addf %167, %169 : vector<4x32xf32>
    %cst_202 = arith.constant 0.000000e+00 : f32
    %171 = vector.broadcast %cst_202 : f32 to vector<4x32xf32>
    %172 = arith.maximumf %170, %171 : vector<4x32xf32>
    %173 = arith.maximumf %115, %131 : vector<4x32xf32>
    %174 = arith.maximumf %156, %172 : vector<4x32xf32>
    %175 = arith.maximumf %173, %174 : vector<4x32xf32>
    %c0_203 = arith.constant 0 : index
    %c0_204 = arith.constant 0 : index
    %c0_205 = arith.constant 0 : index
    %176 = vector.load %arg6[%c0_203, %c0_204, %c0_205] : memref<2x2x4xf32, #tpu.memory_space<vmem>>, vector<1x2x4xf32>
    %177 = vector.shape_cast %176 : vector<1x2x4xf32> to vector<2x4xf32>
    %cst_206 = arith.constant dense<0.000000e+00> : vector<2x32xf32>
    %178 = tpu.matmul %177, %175, %cst_206 {dimension_numbers = #tpu.dot_dimension_numbers<[1], [0], [0], [1], [0, 0, 1, 1], [], []>} : vector<2x4xf32>, vector<4x32xf32>, vector<2x32xf32> -> vector<2x32xf32>
    %c0_207 = arith.constant 0 : index
    %c0_208 = arith.constant 0 : index
    %c0_209 = arith.constant 0 : index
    %179 = vector.load %arg7[%c0_207, %c0_208, %c0_209] : memref<2x32x10xf32, #tpu.memory_space<vmem>>, vector<1x32x10xf32>
    %180 = vector.shape_cast %179 : vector<1x32x10xf32> to vector<32x10xf32>
    %cst_210 = arith.constant dense<0.000000e+00> : vector<2x10xf32>
    %181 = tpu.matmul %178, %180, %cst_210 {dimension_numbers = #tpu.dot_dimension_numbers<[1], [0], [0], [1], [0, 0, 1, 1], [], []>} : vector<2x32xf32>, vector<32x10xf32>, vector<2x10xf32> -> vector<2x10xf32>
    %c1_211 = arith.constant 1 : index
    %c0_212 = arith.constant 0 : index
    %c0_213 = arith.constant 0 : index
    %182 = vector.load %arg6[%c1_211, %c0_212, %c0_213] : memref<2x2x4xf32, #tpu.memory_space<vmem>>, vector<1x2x4xf32>
    %183 = vector.shape_cast %182 : vector<1x2x4xf32> to vector<2x4xf32>
    %cst_214 = arith.constant dense<0.000000e+00> : vector<2x32xf32>
    %184 = tpu.matmul %183, %175, %cst_214 {dimension_numbers = #tpu.dot_dimension_numbers<[1], [0], [0], [1], [0, 0, 1, 1], [], []>} : vector<2x4xf32>, vector<4x32xf32>, vector<2x32xf32> -> vector<2x32xf32>
    %c1_215 = arith.constant 1 : index
    %c0_216 = arith.constant 0 : index
    %c0_217 = arith.constant 0 : index
    %185 = vector.load %arg7[%c1_215, %c0_216, %c0_217] : memref<2x32x10xf32, #tpu.memory_space<vmem>>, vector<1x32x10xf32>
    %186 = vector.shape_cast %185 : vector<1x32x10xf32> to vector<32x10xf32>
    %cst_218 = arith.constant dense<0.000000e+00> : vector<2x10xf32>
    %187 = tpu.matmul %184, %186, %cst_218 {dimension_numbers = #tpu.dot_dimension_numbers<[1], [0], [0], [1], [0, 0, 1, 1], [], []>} : vector<2x32xf32>, vector<32x10xf32>, vector<2x10xf32> -> vector<2x10xf32>
    %188 = arith.addf %181, %187 : vector<2x10xf32>
    %c0_219 = arith.constant 0 : index
    %c0_220 = arith.constant 0 : index
    %189 = vector.load %arg8[%c0_219, %c0_220] : memref<1x10xf32, #tpu.memory_space<vmem>>, vector<1x10xf32>
    %190 = vector.broadcast %189 : vector<1x10xf32> to vector<2x10xf32>
    %191 = arith.addf %188, %190 : vector<2x10xf32>
    %c0_221 = arith.constant 0 : index
    %c0_222 = arith.constant 0 : index
    %192 = vector.load %arg9[%c0_221, %c0_222] : memref<2x10xf32, #tpu.memory_space<vmem>>, vector<2x10xf32>
    tpu.vector_store %arg9[%c0_221, %c0_222], %191 {strides = array<i32>} : memref<2x10xf32, #tpu.memory_space<vmem>>, vector<2x10xf32>,
    return
  }
}

</mosaic_0001>

<llo_original>
// kernel: tile.13
$region0: #{tile.13}
  #allocation0 [shape = 's32[1]{0}', space=sflag, size = 0x4, scoped, tag = 'scoped memory for tile.13']
  %s0 = inlined_call_operand.vmem [shape: f32[8], index: 0, kind: input, shape index: {}]
  %s1 = inlined_call_operand.vmem [shape: f32[8,8], index: 1, kind: output, shape index: {}]
  // Predicated region
  $region2: #{tile.13} parent=0 // pred_check
    _
  $region3: #{tile.13} parent=0 // pred_check_branch
    %3 = sbr.rel (0) target = $region5
  $region4: #{tile.13} parent=0 // pred_region
    _
  $region5: #{tile.13} parent=0 // pred_fallthru
    _
  %v4 = vld [vmem:[%s0] ss:$0 sm:$0xff]
  %5 = vst [vmem:[%s1] sm:$0xff] %v4

// kernel: tile.14
$region0: #{tile.14}
  %s0 = inlined_call_operand.vmem [shape: f32[8,8], index: 0, kind: input, shape index: {}]
  %s1 = inlined_call_operand.vmem [shape: f32[1,64], index: 1, kind: output, shape index: {}]
  $region1: #{tile.14} parent=0
    #allocation0 [shape = 'u8[4096]{0}', space=vmem, size = 0x1000, scoped, tag = 'scoped mem for output reshape']
    %v2 = vld [vmem:[%s0] sm:$0x1]
    %vm3 = vcmask 64512
    %4 = vst.msk [vmem:[#allocation0] sm:$0x1] %vm3, %v2
    %s5 = scalar_lea.vmem %s0, 7
    %v6 = vld [vmem:[%s5] sm:$0x1]
    %7 = vrot.lane.b32.xlu0 %v6, 56
    %v8 = vpop.permute.xlu0 %7
    %vm9 = vcmask 523712
    %10 = vst.msk [vmem:[#allocation0] sm:$0x1] %vm9, %v8
    %s11 = scalar_lea.vmem %s0, 6
    %v12 = vld [vmem:[%s11] sm:$0x1]
    %13 = vrot.lane.b32.xlu0 %v12, 48
    %v14 = vpop.permute.xlu0 %13
    %vm15 = vcmask 458112
    %16 = vst.msk [vmem:[#allocation0] sm:$0x1] %vm15, %v14
    %s17 = scalar_lea.vmem %s0, 5
    %v18 = vld [vmem:[%s17] sm:$0x1]
    %19 = vrot.lane.b32.xlu0 %v18, 40
    %v20 = vpop.permute.xlu0 %19
    %vm21 = vcmask 392512
    %22 = vst.msk [vmem:[#allocation0] sm:$0x1] %vm21, %v20
    %s23 = scalar_lea.vmem %s0, 4
    %v24 = vld [vmem:[%s23] sm:$0x1]
    %25 = vrot.lane.b32.xlu0 %v24, 32
    %v26 = vpop.permute.xlu0 %25
    %vm27 = vcmask 326912
    %28 = vst.msk [vmem:[#allocation0] sm:$0x1] %vm27, %v26
    %s29 = scalar_lea.vmem %s0, 3
    %v30 = vld [vmem:[%s29] sm:$0x1]
    %31 = vrot.lane.b32.xlu0 %v30, 24
    %v32 = vpop.permute.xlu0 %31
    %vm33 = vcmask 261312
    %34 = vst.msk [vmem:[#allocation0] sm:$0x1] %vm33, %v32
    %s35 = scalar_lea.vmem %s0, 2
    %v36 = vld [vmem:[%s35] sm:$0x1]
    %37 = vrot.lane.b32.xlu0 %v36, 16
    %v38 = vpop.permute.xlu0 %37
    %vm39 = vcmask 195712
    %40 = vst.msk [vmem:[#allocation0] sm:$0x1] %vm39, %v38
    %s41 = scalar_lea.vmem %s0, 1
    %v42 = vld [vmem:[%s41] sm:$0x1]
    %43 = vrot.lane.b32.xlu0 %v42, 8
    %v44 = vpop.permute.xlu0 %43
    %vm45 = vcmask 130112
    %46 = vst.msk [vmem:[#allocation0] sm:$0x1] %vm45, %v44
    %s48 = sshll.u32 1, 1
    %s49 = ssub.s32 %s48, 1
    %v51 = vld [vmem:[#allocation0] sm:%s49]
    %s52 = sshll.u32 1, 1
    %s53 = ssub.s32 %s52, 1
    %54 = vst [vmem:[%s1] sm:%s53] %v51

// kernel: tile.18
$region0: #{tile.18}
  #allocation0 [shape = 's32[1]{0}', space=sflag, size = 0x4, scoped, tag = 'scoped memory for tile.18']
  %s0 = inlined_call_operand.vmem [shape: f32[16], index: 0, kind: input, shape index: {}]
  %s1 = inlined_call_operand.vmem [shape: f32[2,16], index: 1, kind: output, shape index: {}]
  // Predicated region
  $region2: #{tile.18} parent=0 // pred_check
    _
  $region3: #{tile.18} parent=0 // pred_check_branch
    %3 = sbr.rel (0) target = $region5
  $region4: #{tile.18} parent=0 // pred_region
    _
  $region5: #{tile.18} parent=0 // pred_fallthru
    _
  %v4 = vld [vmem:[%s0] ss:$0 sm:$0xff]
  %5 = vst [vmem:[%s1] sm:$0x3] %v4

// kernel: tile.19
$region0: #{tile.19}
  %s0 = inlined_call_operand.vmem [shape: f32[2,16], index: 0, kind: input, shape index: {}]
  %s1 = inlined_call_operand.vmem [shape: f32[1,32], index: 1, kind: output, shape index: {}]
  $region1: #{tile.19} parent=0
    #allocation0 [shape = 'u8[4096]{0}', space=vmem, size = 0x1000, scoped, tag = 'scoped mem for output reshape']
    #allocation1 [shape = 'u8[4096]{0}', space=vmem, size = 0x1000, scoped, tag = 'scoped mem for input reshape']
    %s3 = sshll.u32 1, 2
    %s4 = ssub.s32 %s3, 1
    %v5 = vld [vmem:[%s0] sm:%s4]
    %6 = vst [vmem:[#allocation1] sm:%s4] %v5
    %v7 = vld [vmem:[#allocation1] sm:$0x1]
    %vm8 = vcmask 130048
    %9 = vst.msk [vmem:[#allocation0] sm:$0x1] %vm8, %v7
    %s10 = scalar_lea.vmem [#allocation1], 1
    %v11 = vld [vmem:[%s10] sm:$0x1]
    %12 = vrot.lane.b32.xlu0 %v11, 16
    %v13 = vpop.permute.xlu0 %12
    %vm14 = vcmask 261248
    %15 = vst.msk [vmem:[#allocation0] sm:$0x1] %vm14, %v13
    %s17 = sshll.u32 1, 1
    %s18 = ssub.s32 %s17, 1
    %v20 = vld [vmem:[#allocation0] sm:%s18]
    %s21 = sshll.u32 1, 1
    %s22 = ssub.s32 %s21, 1
    %23 = vst [vmem:[%s1] sm:%s22] %v20

// kernel: _forward_impl.1
$region0: #{_forward_impl.1}
  #allocation0 [shape = 'u32[]', space=smem, size = 0x4, offset = 0x4, fixed_abs, tag = 'smem constant byte address 0x4 - core index']
  #allocation1 [shape = 'u32[144,128]{1,0:T(1,128)}', space=vmem, size = 0x12000, scoped, tag = 'internal scratch']
  %s0 = inlined_call_operand.vmem [shape: f32[6,16,128], index: 0, kind: input, shape index: {}]
  %s1 = inlined_call_operand.vmem [shape: f32[3,2,128,64], index: 1, kind: input, shape index: {}]
  %s2 = inlined_call_operand.vmem [shape: f32[1,64], index: 2, kind: input, shape index: {}]
  %s3 = inlined_call_operand.vmem [shape: f32[2,3,4,16], index: 3, kind: input, shape index: {}]
  %s4 = inlined_call_operand.vmem [shape: f32[3,2,64,32], index: 4, kind: input, shape index: {}]
  %s5 = inlined_call_operand.vmem [shape: f32[1,32], index: 5, kind: input, shape index: {}]
  %s6 = inlined_call_operand.vmem [shape: f32[2,2,4], index: 6, kind: input, shape index: {}]
  %s7 = inlined_call_operand.vmem [shape: f32[2,32,10], index: 7, kind: input, shape index: {}]
  %s8 = inlined_call_operand.vmem [shape: f32[1,10], index: 8, kind: input, shape index: {}]
  %s9 = inlined_call_operand.hbm [shape: f32[2,10], index: 9, kind: output, shape index: {}]
  %s10 = sld [smem:[#allocation0]]
  $region46: #{_forward_impl.1} parent=0
    _
  %s12 = ssub.s32 1, %s10
  %s13 = scalar_select 0, %s12, %s10
  $region1: #{_forward_impl.1} parent=0
    #allocation2 [shape = 'u8[1024]{0}', space=vmem, size = 0x400, scoped, tag = 'output window, operand 0, single buffered']
    #allocation3 [shape = 's32[1]{0}', space=sflag, size = 0x4, scoped, tag = 'scoped memory for _forward_impl.1']
    %14 = vsyncpa [#allocation3], 0
    // Predicated region
    $region2: #{_forward_impl.1} parent=1 // pred_check
      _
    $region3: #{_forward_impl.1} parent=1 // pred_check_branch
      %16 = sbr.rel (0) target = $region5
    $region4: #{_forward_impl.1} parent=1 // pred_region
      _
    $region5: #{_forward_impl.1} parent=1 // pred_fallthru
      _
    // Predicated region
    $region6: #{_forward_impl.1} parent=1 // pred_check
      _
    $region7: #{_forward_impl.1} parent=1 // pred_check_branch
      %18 = sbr.rel (0) target = $region9
    $region8: #{_forward_impl.1} parent=1 // pred_region
      _
    $region9: #{_forward_impl.1} parent=1 // pred_fallthru
      _
    // Predicated region
    $region10: #{_forward_impl.1} parent=1 // pred_check
      _
    $region11: #{_forward_impl.1} parent=1 // pred_check_branch
      %20 = sbr.rel (0) target = $region13
    $region12: #{_forward_impl.1} parent=1 // pred_region
      _
    $region13: #{_forward_impl.1} parent=1 // pred_fallthru
      _
    // Predicated region
    $region14: #{_forward_impl.1} parent=1 // pred_check
      _
    $region15: #{_forward_impl.1} parent=1 // pred_check_branch
      %22 = sbr.rel (0) target = $region17
    $region16: #{_forward_impl.1} parent=1 // pred_region
      _
    $region17: #{_forward_impl.1} parent=1 // pred_fallthru
      _
    // Predicated region
    $region18: #{_forward_impl.1} parent=1 // pred_check
      _
    $region19: #{_forward_impl.1} parent=1 // pred_check_branch
      %24 = sbr.rel (0) target = $region21
    $region20: #{_forward_impl.1} parent=1 // pred_region
      _
    $region21: #{_forward_impl.1} parent=1 // pred_fallthru
      _
    // Predicated region
    $region22: #{_forward_impl.1} parent=1 // pred_check
      _
    $region23: #{_forward_impl.1} parent=1 // pred_check_branch
      %26 = sbr.rel (0) target = $region25
    $region24: #{_forward_impl.1} parent=1 // pred_region
      _
    $region25: #{_forward_impl.1} parent=1 // pred_fallthru
      _
    // Predicated region
    $region26: #{_forward_impl.1} parent=1 // pred_check
      _
    $region27: #{_forward_impl.1} parent=1 // pred_check_branch
      %28 = sbr.rel (0) target = $region29
    $region28: #{_forward_impl.1} parent=1 // pred_region
      _
    $region29: #{_forward_impl.1} parent=1 // pred_fallthru
      _
    // Predicated region
    $region30: #{_forward_impl.1} parent=1 // pred_check
      _
    $region31: #{_forward_impl.1} parent=1 // pred_check_branch
      %30 = sbr.rel (0) target = $region33
    $region32: #{_forward_impl.1} parent=1 // pred_region
      _
    $region33: #{_forward_impl.1} parent=1 // pred_fallthru
      _
    // Predicated region
    $region34: #{_forward_impl.1} parent=1 // pred_check
      _
    $region35: #{_forward_impl.1} parent=1 // pred_check_branch
      %32 = sbr.rel (0) target = $region37
    $region36: #{_forward_impl.1} parent=1 // pred_region
      _
    $region37: #{_forward_impl.1} parent=1 // pred_fallthru
      _
    %v33 = vld [vmem:[%s0] sm:$0xff]
    %v34 = vld [vmem:[%s0 + $0x8] sm:$0xff]
    %v35 = vld [vmem:[%s1] sm:$0xff]
    %v36 = vld [vmem:[%s1 + $0x8] sm:$0xff]
    %v37 = vld [vmem:[%s1 + $0x10] sm:$0xff]
    %v38 = vld [vmem:[%s1 + $0x18] sm:$0xff]
    %v39 = vld [vmem:[%s1 + $0x20] sm:$0xff]
    %v40 = vld [vmem:[%s1 + $0x28] sm:$0xff]
    %v41 = vld [vmem:[%s1 + $0x30] sm:$0xff]
    %v42 = vld [vmem:[%s1 + $0x38] sm:$0xff]
    %v43 = vld [vmem:[%s1 + $0x40] sm:$0xff]
    %v44 = vld [vmem:[%s1 + $0x48] sm:$0xff]
    %v45 = vld [vmem:[%s1 + $0x50] sm:$0xff]
    %v46 = vld [vmem:[%s1 + $0x58] sm:$0xff]
    %v47 = vld [vmem:[%s1 + $0x60] sm:$0xff]
    %v48 = vld [vmem:[%s1 + $0x68] sm:$0xff]
    %v49 = vld [vmem:[%s1 + $0x70] sm:$0xff]
    %v50 = vld [vmem:[%s1 + $0x78] sm:$0xff]
    %s51 = scalar_lea.vmem %s0, 16
    %v52 = vld [vmem:[%s51] sm:$0xff]
    %v53 = vld [vmem:[%s51 + $0x8] sm:$0xff]
    %s54 = scalar_lea.vmem %s1, 256
    %v55 = vld [vmem:[%s54] sm:$0xff]
    %v56 = vld [vmem:[%s54 + $0x8] sm:$0xff]
    %v57 = vld [vmem:[%s54 + $0x10] sm:$0xff]
    %v58 = vld [vmem:[%s54 + $0x18] sm:$0xff]
    %v59 = vld [vmem:[%s54 + $0x20] sm:$0xff]
    %v60 = vld [vmem:[%s54 + $0x28] sm:$0xff]
    %v61 = vld [vmem:[%s54 + $0x30] sm:$0xff]
    %v62 = vld [vmem:[%s54 + $0x38] sm:$0xff]
    %v63 = vld [vmem:[%s54 + $0x40] sm:$0xff]
    %v64 = vld [vmem:[%s54 + $0x48] sm:$0xff]
    %v65 = vld [vmem:[%s54 + $0x50] sm:$0xff]
    %v66 = vld [vmem:[%s54 + $0x58] sm:$0xff]
    %v67 = vld [vmem:[%s54 + $0x60] sm:$0xff]
    %v68 = vld [vmem:[%s54 + $0x68] sm:$0xff]
    %v69 = vld [vmem:[%s54 + $0x70] sm:$0xff]
    %v70 = vld [vmem:[%s54 + $0x78] sm:$0xff]
    %71 = vmatprep.subr.mxu0 0.0
    %72 = vmatpush1.msra.mxu0 %v70
    %73 = vmatprep.subr.mxu0 0.0
    %74 = vmatpush1.msra.mxu0 %v69
    %75 = vmatprep.subr.mxu0 0.0
    %76 = vmatpush1.msra.mxu0 %v68
    %77 = vmatprep.subr.mxu0 0.0
    %78 = vmatpush1.msra.mxu0 %v67
    %79 = vmatprep.subr.mxu0 0.0
    %80 = vmatpush1.msra.mxu0 %v66
    %81 = vmatprep.subr.mxu0 0.0
    %82 = vmatpush1.msra.mxu0 %v65
    %83 = vmatprep.subr.mxu0 0.0
    %84 = vmatpush1.msra.mxu0 %v64
    %85 = vmatprep.subr.mxu0 0.0
    %86 = vmatpush1.msra.mxu0 %v63
    %87 = vmatprep.subr.mxu0 0.0
    %88 = vmatpush1.msra.mxu0 %v62
    %89 = vmatprep.subr.mxu0 0.0
    %90 = vmatpush1.msra.mxu0 %v61
    %91 = vmatprep.subr.mxu0 0.0
    %92 = vmatpush1.msra.mxu0 %v60
    %93 = vmatprep.subr.mxu0 0.0
    %94 = vmatpush1.msra.mxu0 %v59
    %95 = vmatprep.subr.mxu0 0.0
    %96 = vmatpush1.msra.mxu0 %v58
    %97 = vmatprep.subr.mxu0 0.0
    %98 = vmatpush1.msra.mxu0 %v57
    %99 = vmatprep.subr.mxu0 0.0
    %100 = vmatpush1.msra.mxu0 %v56
    %101 = vmatprep.subr.mxu0 0.0
    %102 = vmatpush1.msra.mxu0 %v55
    %103 = vmatprep.subr.mxu0 0.0
    %104 = vmatpush2.msra.mxu0 0.0
    %105 = vmatprep.subr.mxu0 0.0
    %106 = vmatpush2.msra.mxu0 0.0
    %107 = vmatprep.subr.mxu0 0.0
    %108 = vmatpush2.msra.mxu0 0.0
    %109 = vmatprep.subr.mxu0 0.0
    %110 = vmatpush2.msra.mxu0 0.0
    %111 = vmatprep.subr.mxu0 0.0
    %112 = vmatpush2.msra.mxu0 0.0
    %113 = vmatprep.subr.mxu0 0.0
    %114 = vmatpush2.msra.mxu0 0.0
    %115 = vmatprep.subr.mxu0 0.0
    %116 = vmatpush2.msra.mxu0 0.0
    %117 = vmatprep.subr.mxu0 0.0
    %118 = vmatpush2.msra.mxu0 0.0
    %119 = vmatprep.subr.mxu0 0.0
    %120 = vmatpush2.msra.mxu0 0.0
    %121 = vmatprep.subr.mxu0 0.0
    %122 = vmatpush2.msra.mxu0 0.0
    %123 = vmatprep.subr.mxu0 0.0
    %124 = vmatpush2.msra.mxu0 0.0
    %125 = vmatprep.subr.mxu0 0.0
    %126 = vmatpush2.msra.mxu0 0.0
    %127 = vmatprep.subr.mxu0 0.0
    %128 = vmatpush2.msra.mxu0 0.0
    %129 = vmatprep.subr.mxu0 0.0
    %130 = vmatpush2.msra.mxu0 0.0
    %131 = vmatprep.subr.mxu0 0.0
    %132 = vmatpush2.msra.mxu0 0.0
    %133 = vmatprep.subr.mxu0 0.0
    %134 = vmatpush2.msra.mxu0 0.0
    %135 = vmatprep.mubr.f32.mxu0 0.0
    %136 = vmatmul.mubr.f32.gmra.mxu0 %v52
    %v137 = vpop.f32.mrf.mxu0
    %v138 = vadd.f32 0.0, %v137
    %v139 = vpop.f32.mrf.mxu0
    %140 = vmatprep.mubr.f32.mxu0 0.0
    %141 = vmatmul.mubr.f32.gmra.mxu0 %v53
    %v142 = vpop.f32.mrf.mxu0
    %v143 = vadd.f32 0.0, %v142
    %v144 = vpop.f32.mrf.mxu0
    %145 = vdwg.mxu0
    %146 = vmatprep.subr.mxu0 0.0
    %147 = vmatpush1.msra.mxu0 %v50
    %148 = vmatprep.subr.mxu0 0.0
    %149 = vmatpush1.msra.mxu0 %v49
    %150 = vmatprep.subr.mxu0 0.0
    %151 = vmatpush1.msra.mxu0 %v48
    %152 = vmatprep.subr.mxu0 0.0
    %153 = vmatpush1.msra.mxu0 %v47
    %154 = vmatprep.subr.mxu0 0.0
    %155 = vmatpush1.msra.mxu0 %v46
    %156 = vmatprep.subr.mxu0 0.0
    %157 = vmatpush1.msra.mxu0 %v45
    %158 = vmatprep.subr.mxu0 0.0
    %159 = vmatpush1.msra.mxu0 %v44
    %160 = vmatprep.subr.mxu0 0.0
    %161 = vmatpush1.msra.mxu0 %v43
    %162 = vmatprep.subr.mxu0 0.0
    %163 = vmatpush1.msra.mxu0 %v42
    %164 = vmatprep.subr.mxu0 0.0
    %165 = vmatpush1.msra.mxu0 %v41
    %166 = vmatprep.subr.mxu0 0.0
    %167 = vmatpush1.msra.mxu0 %v40
    %168 = vmatprep.subr.mxu0 0.0
    %169 = vmatpush1.msra.mxu0 %v39
    %170 = vmatprep.subr.mxu0 0.0
    %171 = vmatpush1.msra.mxu0 %v38
    %172 = vmatprep.subr.mxu0 0.0
    %173 = vmatpush1.msra.mxu0 %v37
    %174 = vmatprep.subr.mxu0 0.0
    %175 = vmatpush1.msra.mxu0 %v36
    %176 = vmatprep.subr.mxu0 0.0
    %177 = vmatpush1.msra.mxu0 %v35
    %178 = vmatprep.subr.mxu0 0.0
    %179 = vmatpush2.msra.mxu0 0.0
    %180 = vmatprep.subr.mxu0 0.0
    %181 = vmatpush2.msra.mxu0 0.0
    %182 = vmatprep.subr.mxu0 0.0
    %183 = vmatpush2.msra.mxu0 0.0
    %184 = vmatprep.subr.mxu0 0.0
    %185 = vmatpush2.msra.mxu0 0.0
    %186 = vmatprep.subr.mxu0 0.0
    %187 = vmatpush2.msra.mxu0 0.0
    %188 = vmatprep.subr.mxu0 0.0
    %189 = vmatpush2.msra.mxu0 0.0
    %190 = vmatprep.subr.mxu0 0.0
    %191 = vmatpush2.msra.mxu0 0.0
    %192 = vmatprep.subr.mxu0 0.0
    %193 = vmatpush2.msra.mxu0 0.0
    %194 = vmatprep.subr.mxu0 0.0
    %195 = vmatpush2.msra.mxu0 0.0
    %196 = vmatprep.subr.mxu0 0.0
    %197 = vmatpush2.msra.mxu0 0.0
    %198 = vmatprep.subr.mxu0 0.0
    %199 = vmatpush2.msra.mxu0 0.0
    %200 = vmatprep.subr.mxu0 0.0
    %201 = vmatpush2.msra.mxu0 0.0
    %202 = vmatprep.subr.mxu0 0.0
    %203 = vmatpush2.msra.mxu0 0.0
    %204 = vmatprep.subr.mxu0 0.0
    %205 = vmatpush2.msra.mxu0 0.0
    %206 = vmatprep.subr.mxu0 0.0
    %207 = vmatpush2.msra.mxu0 0.0
    %208 = vmatprep.subr.mxu0 0.0
    %209 = vmatpush2.msra.mxu0 0.0
    %210 = vmatprep.mubr.f32.mxu0 0.0
    %211 = vmatmul.mubr.f32.gmra.mxu0 %v33
    %v212 = vpop.f32.mrf.mxu0
    %v213 = vadd.f32 %v138, %v212
    %v214 = vpop.f32.mrf.mxu0
    %215 = vmatprep.mubr.f32.mxu0 0.0
    %216 = vmatmul.mubr.f32.gmra.mxu0 %v34
    %v217 = vpop.f32.mrf.mxu0
    %v218 = vadd.f32 %v143, %v217
    %v219 = vpop.f32.mrf.mxu0
    %220 = vdwg.mxu0
    %s221 = scalar_lea.vmem %s0, 32
    %v222 = vld [vmem:[%s221] sm:$0xff]
    %v223 = vld [vmem:[%s221 + $0x8] sm:$0xff]
    %s224 = scalar_lea.vmem %s1, 512
    %v225 = vld [vmem:[%s224] sm:$0xff]
    %v226 = vld [vmem:[%s224 + $0x8] sm:$0xff]
    %v227 = vld [vmem:[%s224 + $0x10] sm:$0xff]
    %v228 = vld [vmem:[%s224 + $0x18] sm:$0xff]
    %v229 = vld [vmem:[%s224 + $0x20] sm:$0xff]
    %v230 = vld [vmem:[%s224 + $0x28] sm:$0xff]
    %v231 = vld [vmem:[%s224 + $0x30] sm:$0xff]
    %v232 = vld [vmem:[%s224 + $0x38] sm:$0xff]
    %v233 = vld [vmem:[%s224 + $0x40] sm:$0xff]
    %v234 = vld [vmem:[%s224 + $0x48] sm:$0xff]
    %v235 = vld [vmem:[%s224 + $0x50] sm:$0xff]
    %v236 = vld [vmem:[%s224 + $0x58] sm:$0xff]
    %v237 = vld [vmem:[%s224 + $0x60] sm:$0xff]
    %v238 = vld [vmem:[%s224 + $0x68] sm:$0xff]
    %v239 = vld [vmem:[%s224 + $0x70] sm:$0xff]
    %v240 = vld [vmem:[%s224 + $0x78] sm:$0xff]
    %241 = vmatprep.subr.mxu0 0.0
    %242 = vmatpush1.msra.mxu0 %v240
    %243 = vmatprep.subr.mxu0 0.0
    %244 = vmatpush1.msra.mxu0 %v239
    %245 = vmatprep.subr.mxu0 0.0
    %246 = vmatpush1.msra.mxu0 %v238
    %247 = vmatprep.subr.mxu0 0.0
    %248 = vmatpush1.msra.mxu0 %v237
    %249 = vmatprep.subr.mxu0 0.0
    %250 = vmatpush1.msra.mxu0 %v236
    %251 = vmatprep.subr.mxu0 0.0
    %252 = vmatpush1.msra.mxu0 %v235
    %253 = vmatprep.subr.mxu0 0.0
    %254 = vmatpush1.msra.mxu0 %v234
    %255 = vmatprep.subr.mxu0 0.0
    %256 = vmatpush1.msra.mxu0 %v233
    %257 = vmatprep.subr.mxu0 0.0
    %258 = vmatpush1.msra.mxu0 %v232
    %259 = vmatprep.subr.mxu0 0.0
    %260 = vmatpush1.msra.mxu0 %v231
    %261 = vmatprep.subr.mxu0 0.0
    %262 = vmatpush1.msra.mxu0 %v230
    %263 = vmatprep.subr.mxu0 0.0
    %264 = vmatpush1.msra.mxu0 %v229
    %265 = vmatprep.subr.mxu0 0.0
    %266 = vmatpush1.msra.mxu0 %v228
    %267 = vmatprep.subr.mxu0 0.0
    %268 = vmatpush1.msra.mxu0 %v227
    %269 = vmatprep.subr.mxu0 0.0
    %270 = vmatpush1.msra.mxu0 %v226
    %271 = vmatprep.subr.mxu0 0.0
    %272 = vmatpush1.msra.mxu0 %v225
    %273 = vmatprep.subr.mxu0 0.0
    %274 = vmatpush2.msra.mxu0 0.0
    %275 = vmatprep.subr.mxu0 0.0
    %276 = vmatpush2.msra.mxu0 0.0
    %277 = vmatprep.subr.mxu0 0.0
    %278 = vmatpush2.msra.mxu0 0.0
    %279 = vmatprep.subr.mxu0 0.0
    %280 = vmatpush2.msra.mxu0 0.0
    %281 = vmatprep.subr.mxu0 0.0
    %282 = vmatpush2.msra.mxu0 0.0
    %283 = vmatprep.subr.mxu0 0.0
    %284 = vmatpush2.msra.mxu0 0.0
    %285 = vmatprep.subr.mxu0 0.0
    %286 = vmatpush2.msra.mxu0 0.0
    %287 = vmatprep.subr.mxu0 0.0
    %288 = vmatpush2.msra.mxu0 0.0
    %289 = vmatprep.subr.mxu0 0.0
    %290 = vmatpush2.msra.mxu0 0.0
    %291 = vmatprep.subr.mxu0 0.0
    %292 = vmatpush2.msra.mxu0 0.0
    %293 = vmatprep.subr.mxu0 0.0
    %294 = vmatpush2.msra.mxu0 0.0
    %295 = vmatprep.subr.mxu0 0.0
    %296 = vmatpush2.msra.mxu0 0.0
    %297 = vmatprep.subr.mxu0 0.0
    %298 = vmatpush2.msra.mxu0 0.0
    %299 = vmatprep.subr.mxu0 0.0
    %300 = vmatpush2.msra.mxu0 0.0
    %301 = vmatprep.subr.mxu0 0.0
    %302 = vmatpush2.msra.mxu0 0.0
    %303 = vmatprep.subr.mxu0 0.0
    %304 = vmatpush2.msra.mxu0 0.0
    %305 = vmatprep.mubr.f32.mxu0 0.0
    %306 = vmatmul.mubr.f32.gmra.mxu0 %v222
    %v307 = vpop.f32.mrf.mxu0
    %v308 = vadd.f32 0.0, %v307
    %v309 = vpop.f32.mrf.mxu0
    %310 = vmatprep.mubr.f32.mxu0 0.0
    %311 = vmatmul.mubr.f32.gmra.mxu0 %v223
    %v312 = vpop.f32.mrf.mxu0
    %v313 = vadd.f32 0.0, %v312
    %v314 = vpop.f32.mrf.mxu0
    %315 = vdwg.mxu0
    %v316 = vadd.f32 %v213, %v308
    %v317 = vadd.f32 %v218, %v313
    %v318 = vld [vmem:[%s2] sm:$0x1]
    %v320 = vlaneseq
    %v321 = vshrl.u32 %v320, 7
    %v322 = vsub.s32 0, %v321
    %v323 = vrot.slane %v318, %v322
    %v325 = vadd.f32 %v316, %v323
    %v326 = vadd.f32 %v317, %v323
    %v327 = vmax.f32 %v325, 0.0
    %v328 = vmax.f32 %v326, 0.0
    %s329 = scalar_lea.vmem %s1, 128
    %v330 = vld [vmem:[%s329] sm:$0xff]
    %v331 = vld [vmem:[%s329 + $0x8] sm:$0xff]
    %v332 = vld [vmem:[%s329 + $0x10] sm:$0xff]
    %v333 = vld [vmem:[%s329 + $0x18] sm:$0xff]
    %v334 = vld [vmem:[%s329 + $0x20] sm:$0xff]
    %v335 = vld [vmem:[%s329 + $0x28] sm:$0xff]
    %v336 = vld [vmem:[%s329 + $0x30] sm:$0xff]
    %v337 = vld [vmem:[%s329 + $0x38] sm:$0xff]
    %v338 = vld [vmem:[%s329 + $0x40] sm:$0xff]
    %v339 = vld [vmem:[%s329 + $0x48] sm:$0xff]
    %v340 = vld [vmem:[%s329 + $0x50] sm:$0xff]
    %v341 = vld [vmem:[%s329 + $0x58] sm:$0xff]
    %v342 = vld [vmem:[%s329 + $0x60] sm:$0xff]
    %v343 = vld [vmem:[%s329 + $0x68] sm:$0xff]
    %v344 = vld [vmem:[%s329 + $0x70] sm:$0xff]
    %v345 = vld [vmem:[%s329 + $0x78] sm:$0xff]
    %s346 = scalar_lea.vmem %s1, 384
    %v347 = vld [vmem:[%s346] sm:$0xff]
    %v348 = vld [vmem:[%s346 + $0x8] sm:$0xff]
    %v349 = vld [vmem:[%s346 + $0x10] sm:$0xff]
    %v350 = vld [vmem:[%s346 + $0x18] sm:$0xff]
    %v351 = vld [vmem:[%s346 + $0x20] sm:$0xff]
    %v352 = vld [vmem:[%s346 + $0x28] sm:$0xff]
    %v353 = vld [vmem:[%s346 + $0x30] sm:$0xff]
    %v354 = vld [vmem:[%s346 + $0x38] sm:$0xff]
    %v355 = vld [vmem:[%s346 + $0x40] sm:$0xff]
    %v356 = vld [vmem:[%s346 + $0x48] sm:$0xff]
    %v357 = vld [vmem:[%s346 + $0x50] sm:$0xff]
    %v358 = vld [vmem:[%s346 + $0x58] sm:$0xff]
    %v359 = vld [vmem:[%s346 + $0x60] sm:$0xff]
    %v360 = vld [vmem:[%s346 + $0x68] sm:$0xff]
    %v361 = vld [vmem:[%s346 + $0x70] sm:$0xff]
    %v362 = vld [vmem:[%s346 + $0x78] sm:$0xff]
    %363 = vmatprep.subr.mxu0 0.0
    %364 = vmatpush1.msra.mxu0 %v362
    %365 = vmatprep.subr.mxu0 0.0
    %366 = vmatpush1.msra.mxu0 %v361
    %367 = vmatprep.subr.mxu0 0.0
    %368 = vmatpush1.msra.mxu0 %v360
    %369 = vmatprep.subr.mxu0 0.0
    %370 = vmatpush1.msra.mxu0 %v359
    %371 = vmatprep.subr.mxu0 0.0
    %372 = vmatpush1.msra.mxu0 %v358
    %373 = vmatprep.subr.mxu0 0.0
    %374 = vmatpush1.msra.mxu0 %v357
    %375 = vmatprep.subr.mxu0 0.0
    %376 = vmatpush1.msra.mxu0 %v356
    %377 = vmatprep.subr.mxu0 0.0
    %378 = vmatpush1.msra.mxu0 %v355
    %379 = vmatprep.subr.mxu0 0.0
    %380 = vmatpush1.msra.mxu0 %v354
    %381 = vmatprep.subr.mxu0 0.0
    %382 = vmatpush1.msra.mxu0 %v353
    %383 = vmatprep.subr.mxu0 0.0
    %384 = vmatpush1.msra.mxu0 %v352
    %385 = vmatprep.subr.mxu0 0.0
    %386 = vmatpush1.msra.mxu0 %v351
    %387 = vmatprep.subr.mxu0 0.0
    %388 = vmatpush1.msra.mxu0 %v350
    %389 = vmatprep.subr.mxu0 0.0
    %390 = vmatpush1.msra.mxu0 %v349
    %391 = vmatprep.subr.mxu0 0.0
    %392 = vmatpush1.msra.mxu0 %v348
    %393 = vmatprep.subr.mxu0 0.0
    %394 = vmatpush1.msra.mxu0 %v347
    %395 = vmatprep.subr.mxu0 0.0
    %396 = vmatpush2.msra.mxu0 0.0
    %397 = vmatprep.subr.mxu0 0.0
    %398 = vmatpush2.msra.mxu0 0.0
    %399 = vmatprep.subr.mxu0 0.0
    %400 = vmatpush2.msra.mxu0 0.0
    %401 = vmatprep.subr.mxu0 0.0
    %402 = vmatpush2.msra.mxu0 0.0
    %403 = vmatprep.subr.mxu0 0.0
    %404 = vmatpush2.msra.mxu0 0.0
    %405 = vmatprep.subr.mxu0 0.0
    %406 = vmatpush2.msra.mxu0 0.0
    %407 = vmatprep.subr.mxu0 0.0
    %408 = vmatpush2.msra.mxu0 0.0
    %409 = vmatprep.subr.mxu0 0.0
    %410 = vmatpush2.msra.mxu0 0.0
    %411 = vmatprep.subr.mxu0 0.0
    %412 = vmatpush2.msra.mxu0 0.0
    %413 = vmatprep.subr.mxu0 0.0
    %414 = vmatpush2.msra.mxu0 0.0
    %415 = vmatprep.subr.mxu0 0.0
    %416 = vmatpush2.msra.mxu0 0.0
    %417 = vmatprep.subr.mxu0 0.0
    %418 = vmatpush2.msra.mxu0 0.0
    %419 = vmatprep.subr.mxu0 0.0
    %420 = vmatpush2.msra.mxu0 0.0
    %421 = vmatprep.subr.mxu0 0.0
    %422 = vmatpush2.msra.mxu0 0.0
    %423 = vmatprep.subr.mxu0 0.0
    %424 = vmatpush2.msra.mxu0 0.0
    %425 = vmatprep.subr.mxu0 0.0
    %426 = vmatpush2.msra.mxu0 0.0
    %427 = vmatprep.mubr.f32.mxu0 0.0
    %428 = vmatmul.mubr.f32.gmra.mxu0 %v52
    %v429 = vpop.f32.mrf.mxu0
    %v430 = vadd.f32 0.0, %v429
    %v431 = vpop.f32.mrf.mxu0
    %432 = vmatprep.mubr.f32.mxu0 0.0
    %433 = vmatmul.mubr.f32.gmra.mxu0 %v53
    %v434 = vpop.f32.mrf.mxu0
    %v435 = vadd.f32 0.0, %v434
    %v436 = vpop.f32.mrf.mxu0
    %437 = vdwg.mxu0
    %438 = vmatprep.subr.mxu0 0.0
    %439 = vmatpush1.msra.mxu0 %v345
    %440 = vmatprep.subr.mxu0 0.0
    %441 = vmatpush1.msra.mxu0 %v344
    %442 = vmatprep.subr.mxu0 0.0
    %443 = vmatpush1.msra.mxu0 %v343
    %444 = vmatprep.subr.mxu0 0.0
    %445 = vmatpush1.msra.mxu0 %v342
    %446 = vmatprep.subr.mxu0 0.0
    %447 = vmatpush1.msra.mxu0 %v341
    %448 = vmatprep.subr.mxu0 0.0
    %449 = vmatpush1.msra.mxu0 %v340
    %450 = vmatprep.subr.mxu0 0.0
    %451 = vmatpush1.msra.mxu0 %v339
    %452 = vmatprep.subr.mxu0 0.0
    %453 = vmatpush1.msra.mxu0 %v338
    %454 = vmatprep.subr.mxu0 0.0
    %455 = vmatpush1.msra.mxu0 %v337
    %456 = vmatprep.subr.mxu0 0.0
    %457 = vmatpush1.msra.mxu0 %v336
    %458 = vmatprep.subr.mxu0 0.0
    %459 = vmatpush1.msra.mxu0 %v335
    %460 = vmatprep.subr.mxu0 0.0
    %461 = vmatpush1.msra.mxu0 %v334
    %462 = vmatprep.subr.mxu0 0.0
    %463 = vmatpush1.msra.mxu0 %v333
    %464 = vmatprep.subr.mxu0 0.0
    %465 = vmatpush1.msra.mxu0 %v332
    %466 = vmatprep.subr.mxu0 0.0
    %467 = vmatpush1.msra.mxu0 %v331
    %468 = vmatprep.subr.mxu0 0.0
    %469 = vmatpush1.msra.mxu0 %v330
    %470 = vmatprep.subr.mxu0 0.0
    %471 = vmatpush2.msra.mxu0 0.0
    %472 = vmatprep.subr.mxu0 0.0
    %473 = vmatpush2.msra.mxu0 0.0
    %474 = vmatprep.subr.mxu0 0.0
    %475 = vmatpush2.msra.mxu0 0.0
    %476 = vmatprep.subr.mxu0 0.0
    %477 = vmatpush2.msra.mxu0 0.0
    %478 = vmatprep.subr.mxu0 0.0
    %479 = vmatpush2.msra.mxu0 0.0
    %480 = vmatprep.subr.mxu0 0.0
    %481 = vmatpush2.msra.mxu0 0.0
    %482 = vmatprep.subr.mxu0 0.0
    %483 = vmatpush2.msra.mxu0 0.0
    %484 = vmatprep.subr.mxu0 0.0
    %485 = vmatpush2.msra.mxu0 0.0
    %486 = vmatprep.subr.mxu0 0.0
    %487 = vmatpush2.msra.mxu0 0.0
    %488 = vmatprep.subr.mxu0 0.0
    %489 = vmatpush2.msra.mxu0 0.0
    %490 = vmatprep.subr.mxu0 0.0
    %491 = vmatpush2.msra.mxu0 0.0
    %492 = vmatprep.subr.mxu0 0.0
    %493 = vmatpush2.msra.mxu0 0.0
    %494 = vmatprep.subr.mxu0 0.0
    %495 = vmatpush2.msra.mxu0 0.0
    %496 = vmatprep.subr.mxu0 0.0
    %497 = vmatpush2.msra.mxu0 0.0
    %498 = vmatprep.subr.mxu0 0.0
    %499 = vmatpush2.msra.mxu0 0.0
    %500 = vmatprep.subr.mxu0 0.0
    %501 = vmatpush2.msra.mxu0 0.0
    %502 = vmatprep.mubr.f32.mxu0 0.0
    %503 = vmatmul.mubr.f32.gmra.mxu0 %v33
    %v504 = vpop.f32.mrf.mxu0
    %v505 = vadd.f32 %v430, %v504
    %v506 = vpop.f32.mrf.mxu0
    %507 = vmatprep.mubr.f32.mxu0 0.0
    %508 = vmatmul.mubr.f32.gmra.mxu0 %v34
    %v509 = vpop.f32.mrf.mxu0
    %v510 = vadd.f32 %v435, %v509
    %v511 = vpop.f32.mrf.mxu0
    %512 = vdwg.mxu0
    %s513 = scalar_lea.vmem %s1, 640
    %v514 = vld [vmem:[%s513] sm:$0xff]
    %v515 = vld [vmem:[%s513 + $0x8] sm:$0xff]
    %v516 = vld [vmem:[%s513 + $0x10] sm:$0xff]
    %v517 = vld [vmem:[%s513 + $0x18] sm:$0xff]
    %v518 = vld [vmem:[%s513 + $0x20] sm:$0xff]
    %v519 = vld [vmem:[%s513 + $0x28] sm:$0xff]
    %v520 = vld [vmem:[%s513 + $0x30] sm:$0xff]
    %v521 = vld [vmem:[%s513 + $0x38] sm:$0xff]
    %v522 = vld [vmem:[%s513 + $0x40] sm:$0xff]
    %v523 = vld [vmem:[%s513 + $0x48] sm:$0xff]
    %v524 = vld [vmem:[%s513 + $0x50] sm:$0xff]
    %v525 = vld [vmem:[%s513 + $0x58] sm:$0xff]
    %v526 = vld [vmem:[%s513 + $0x60] sm:$0xff]
    %v527 = vld [vmem:[%s513 + $0x68] sm:$0xff]
    %v528 = vld [vmem:[%s513 + $0x70] sm:$0xff]
    %v529 = vld [vmem:[%s513 + $0x78] sm:$0xff]
    %530 = vmatprep.subr.mxu0 0.0
    %531 = vmatpush1.msra.mxu0 %v529
    %532 = vmatprep.subr.mxu0 0.0
    %533 = vmatpush1.msra.mxu0 %v528
    %534 = vmatprep.subr.mxu0 0.0
    %535 = vmatpush1.msra.mxu0 %v527
    %536 = vmatprep.subr.mxu0 0.0
    %537 = vmatpush1.msra.mxu0 %v526
    %538 = vmatprep.subr.mxu0 0.0
    %539 = vmatpush1.msra.mxu0 %v525
    %540 = vmatprep.subr.mxu0 0.0
    %541 = vmatpush1.msra.mxu0 %v524
    %542 = vmatprep.subr.mxu0 0.0
    %543 = vmatpush1.msra.mxu0 %v523
    %544 = vmatprep.subr.mxu0 0.0
    %545 = vmatpush1.msra.mxu0 %v522
    %546 = vmatprep.subr.mxu0 0.0
    %547 = vmatpush1.msra.mxu0 %v521
    %548 = vmatprep.subr.mxu0 0.0
    %549 = vmatpush1.msra.mxu0 %v520
    %550 = vmatprep.subr.mxu0 0.0
    %551 = vmatpush1.msra.mxu0 %v519
    %552 = vmatprep.subr.mxu0 0.0
    %553 = vmatpush1.msra.mxu0 %v518
    %554 = vmatprep.subr.mxu0 0.0
    %555 = vmatpush1.msra.mxu0 %v517
    %556 = vmatprep.subr.mxu0 0.0
    %557 = vmatpush1.msra.mxu0 %v516
    %558 = vmatprep.subr.mxu0 0.0
    %559 = vmatpush1.msra.mxu0 %v515
    %560 = vmatprep.subr.mxu0 0.0
    %561 = vmatpush1.msra.mxu0 %v514
    %562 = vmatprep.subr.mxu0 0.0
    %563 = vmatpush2.msra.mxu0 0.0
    %564 = vmatprep.subr.mxu0 0.0
    %565 = vmatpush2.msra.mxu0 0.0
    %566 = vmatprep.subr.mxu0 0.0
    %567 = vmatpush2.msra.mxu0 0.0
    %568 = vmatprep.subr.mxu0 0.0
    %569 = vmatpush2.msra.mxu0 0.0
    %570 = vmatprep.subr.mxu0 0.0
    %571 = vmatpush2.msra.mxu0 0.0
    %572 = vmatprep.subr.mxu0 0.0
    %573 = vmatpush2.msra.mxu0 0.0
    %574 = vmatprep.subr.mxu0 0.0
    %575 = vmatpush2.msra.mxu0 0.0
    %576 = vmatprep.subr.mxu0 0.0
    %577 = vmatpush2.msra.mxu0 0.0
    %578 = vmatprep.subr.mxu0 0.0
    %579 = vmatpush2.msra.mxu0 0.0
    %580 = vmatprep.subr.mxu0 0.0
    %581 = vmatpush2.msra.mxu0 0.0
    %582 = vmatprep.subr.mxu0 0.0
    %583 = vmatpush2.msra.mxu0 0.0
    %584 = vmatprep.subr.mxu0 0.0
    %585 = vmatpush2.msra.mxu0 0.0
    %586 = vmatprep.subr.mxu0 0.0
    %587 = vmatpush2.msra.mxu0 0.0
    %588 = vmatprep.subr.mxu0 0.0
    %589 = vmatpush2.msra.mxu0 0.0
    %590 = vmatprep.subr.mxu0 0.0
    %591 = vmatpush2.msra.mxu0 0.0
    %592 = vmatprep.subr.mxu0 0.0
    %593 = vmatpush2.msra.mxu0 0.0
    %594 = vmatprep.mubr.f32.mxu0 0.0
    %595 = vmatmul.mubr.f32.gmra.mxu0 %v222
    %v596 = vpop.f32.mrf.mxu0
    %v597 = vadd.f32 0.0, %v596
    %v598 = vpop.f32.mrf.mxu0
    %599 = vmatprep.mubr.f32.mxu0 0.0
    %600 = vmatmul.mubr.f32.gmra.mxu0 %v223
    %v601 = vpop.f32.mrf.mxu0
    %v602 = vadd.f32 0.0, %v601
    %v603 = vpop.f32.mrf.mxu0
    %604 = vdwg.mxu0
    %v605 = vadd.f32 %v505, %v597
    %v606 = vadd.f32 %v510, %v602
    %v607 = vadd.f32 %v605, %v323
    %v608 = vadd.f32 %v606, %v323
    %v609 = vmax.f32 %v607, 0.0
    %v610 = vmax.f32 %v608, 0.0
    %s611 = scalar_lea.vmem %s0, 48
    %v612 = vld [vmem:[%s611] sm:$0xff]
    %v613 = vld [vmem:[%s611 + $0x8] sm:$0xff]
    %s614 = scalar_lea.vmem %s0, 64
    %v615 = vld [vmem:[%s614] sm:$0xff]
    %v616 = vld [vmem:[%s614 + $0x8] sm:$0xff]
    %617 = vmatprep.subr.mxu0 0.0
    %618 = vmatpush1.msra.mxu0 %v70
    %619 = vmatprep.subr.mxu0 0.0
    %620 = vmatpush1.msra.mxu0 %v69
    %621 = vmatprep.subr.mxu0 0.0
    %622 = vmatpush1.msra.mxu0 %v68
    %623 = vmatprep.subr.mxu0 0.0
    %624 = vmatpush1.msra.mxu0 %v67
    %625 = vmatprep.subr.mxu0 0.0
    %626 = vmatpush1.msra.mxu0 %v66
    %627 = vmatprep.subr.mxu0 0.0
    %628 = vmatpush1.msra.mxu0 %v65
    %629 = vmatprep.subr.mxu0 0.0
    %630 = vmatpush1.msra.mxu0 %v64
    %631 = vmatprep.subr.mxu0 0.0
    %632 = vmatpush1.msra.mxu0 %v63
    %633 = vmatprep.subr.mxu0 0.0
    %634 = vmatpush1.msra.mxu0 %v62
    %635 = vmatprep.subr.mxu0 0.0
    %636 = vmatpush1.msra.mxu0 %v61
    %637 = vmatprep.subr.mxu0 0.0
    %638 = vmatpush1.msra.mxu0 %v60
    %639 = vmatprep.subr.mxu0 0.0
    %640 = vmatpush1.msra.mxu0 %v59
    %641 = vmatprep.subr.mxu0 0.0
    %642 = vmatpush1.msra.mxu0 %v58
    %643 = vmatprep.subr.mxu0 0.0
    %644 = vmatpush1.msra.mxu0 %v57
    %645 = vmatprep.subr.mxu0 0.0
    %646 = vmatpush1.msra.mxu0 %v56
    %647 = vmatprep.subr.mxu0 0.0
    %648 = vmatpush1.msra.mxu0 %v55
    %649 = vmatprep.subr.mxu0 0.0
    %650 = vmatpush2.msra.mxu0 0.0
    %651 = vmatprep.subr.mxu0 0.0
    %652 = vmatpush2.msra.mxu0 0.0
    %653 = vmatprep.subr.mxu0 0.0
    %654 = vmatpush2.msra.mxu0 0.0
    %655 = vmatprep.subr.mxu0 0.0
    %656 = vmatpush2.msra.mxu0 0.0
    %657 = vmatprep.subr.mxu0 0.0
    %658 = vmatpush2.msra.mxu0 0.0
    %659 = vmatprep.subr.mxu0 0.0
    %660 = vmatpush2.msra.mxu0 0.0
    %661 = vmatprep.subr.mxu0 0.0
    %662 = vmatpush2.msra.mxu0 0.0
    %663 = vmatprep.subr.mxu0 0.0
    %664 = vmatpush2.msra.mxu0 0.0
    %665 = vmatprep.subr.mxu0 0.0
    %666 = vmatpush2.msra.mxu0 0.0
    %667 = vmatprep.subr.mxu0 0.0
    %668 = vmatpush2.msra.mxu0 0.0
    %669 = vmatprep.subr.mxu0 0.0
    %670 = vmatpush2.msra.mxu0 0.0
    %671 = vmatprep.subr.mxu0 0.0
    %672 = vmatpush2.msra.mxu0 0.0
    %673 = vmatprep.subr.mxu0 0.0
    %674 = vmatpush2.msra.mxu0 0.0
    %675 = vmatprep.subr.mxu0 0.0
    %676 = vmatpush2.msra.mxu0 0.0
    %677 = vmatprep.subr.mxu0 0.0
    %678 = vmatpush2.msra.mxu0 0.0
    %679 = vmatprep.subr.mxu0 0.0
    %680 = vmatpush2.msra.mxu0 0.0
    %681 = vmatprep.mubr.f32.mxu0 0.0
    %682 = vmatmul.mubr.f32.gmra.mxu0 %v615
    %v683 = vpop.f32.mrf.mxu0
    %v684 = vadd.f32 0.0, %v683
    %v685 = vpop.f32.mrf.mxu0
    %686 = vmatprep.mubr.f32.mxu0 0.0
    %687 = vmatmul.mubr.f32.gmra.mxu0 %v616
    %v688 = vpop.f32.mrf.mxu0
    %v689 = vadd.f32 0.0, %v688
    %v690 = vpop.f32.mrf.mxu0
    %691 = vdwg.mxu0
    %692 = vmatprep.subr.mxu0 0.0
    %693 = vmatpush1.msra.mxu0 %v50
    %694 = vmatprep.subr.mxu0 0.0
    %695 = vmatpush1.msra.mxu0 %v49
    %696 = vmatprep.subr.mxu0 0.0
    %697 = vmatpush1.msra.mxu0 %v48
    %698 = vmatprep.subr.mxu0 0.0
    %699 = vmatpush1.msra.mxu0 %v47
    %700 = vmatprep.subr.mxu0 0.0
    %701 = vmatpush1.msra.mxu0 %v46
    %702 = vmatprep.subr.mxu0 0.0
    %703 = vmatpush1.msra.mxu0 %v45
    %704 = vmatprep.subr.mxu0 0.0
    %705 = vmatpush1.msra.mxu0 %v44
    %706 = vmatprep.subr.mxu0 0.0
    %707 = vmatpush1.msra.mxu0 %v43
    %708 = vmatprep.subr.mxu0 0.0
    %709 = vmatpush1.msra.mxu0 %v42
    %710 = vmatprep.subr.mxu0 0.0
    %711 = vmatpush1.msra.mxu0 %v41
    %712 = vmatprep.subr.mxu0 0.0
    %713 = vmatpush1.msra.mxu0 %v40
    %714 = vmatprep.subr.mxu0 0.0
    %715 = vmatpush1.msra.mxu0 %v39
    %716 = vmatprep.subr.mxu0 0.0
    %717 = vmatpush1.msra.mxu0 %v38
    %718 = vmatprep.subr.mxu0 0.0
    %719 = vmatpush1.msra.mxu0 %v37
    %720 = vmatprep.subr.mxu0 0.0
    %721 = vmatpush1.msra.mxu0 %v36
    %722 = vmatprep.subr.mxu0 0.0
    %723 = vmatpush1.msra.mxu0 %v35
    %724 = vmatprep.subr.mxu0 0.0
    %725 = vmatpush2.msra.mxu0 0.0
    %726 = vmatprep.subr.mxu0 0.0
    %727 = vmatpush2.msra.mxu0 0.0
    %728 = vmatprep.subr.mxu0 0.0
    %729 = vmatpush2.msra.mxu0 0.0
    %730 = vmatprep.subr.mxu0 0.0
    %731 = vmatpush2.msra.mxu0 0.0
    %732 = vmatprep.subr.mxu0 0.0
    %733 = vmatpush2.msra.mxu0 0.0
    %734 = vmatprep.subr.mxu0 0.0
    %735 = vmatpush2.msra.mxu0 0.0
    %736 = vmatprep.subr.mxu0 0.0
    %737 = vmatpush2.msra.mxu0 0.0
    %738 = vmatprep.subr.mxu0 0.0
    %739 = vmatpush2.msra.mxu0 0.0
    %740 = vmatprep.subr.mxu0 0.0
    %741 = vmatpush2.msra.mxu0 0.0
    %742 = vmatprep.subr.mxu0 0.0
    %743 = vmatpush2.msra.mxu0 0.0
    %744 = vmatprep.subr.mxu0 0.0
    %745 = vmatpush2.msra.mxu0 0.0
    %746 = vmatprep.subr.mxu0 0.0
    %747 = vmatpush2.msra.mxu0 0.0
    %748 = vmatprep.subr.mxu0 0.0
    %749 = vmatpush2.msra.mxu0 0.0
    %750 = vmatprep.subr.mxu0 0.0
    %751 = vmatpush2.msra.mxu0 0.0
    %752 = vmatprep.subr.mxu0 0.0
    %753 = vmatpush2.msra.mxu0 0.0
    %754 = vmatprep.subr.mxu0 0.0
    %755 = vmatpush2.msra.mxu0 0.0
    %756 = vmatprep.mubr.f32.mxu0 0.0
    %757 = vmatmul.mubr.f32.gmra.mxu0 %v612
    %v758 = vpop.f32.mrf.mxu0
    %v759 = vadd.f32 %v684, %v758
    %v760 = vpop.f32.mrf.mxu0
    %761 = vmatprep.mubr.f32.mxu0 0.0
    %762 = vmatmul.mubr.f32.gmra.mxu0 %v613
    %v763 = vpop.f32.mrf.mxu0
    %v764 = vadd.f32 %v689, %v763
    %v765 = vpop.f32.mrf.mxu0
    %766 = vdwg.mxu0
    %s767 = scalar_lea.vmem %s0, 80
    %v768 = vld [vmem:[%s767] sm:$0xff]
    %v769 = vld [vmem:[%s767 + $0x8] sm:$0xff]
    %770 = vmatprep.subr.mxu0 0.0
    %771 = vmatpush1.msra.mxu0 %v240
    %772 = vmatprep.subr.mxu0 0.0
    %773 = vmatpush1.msra.mxu0 %v239
    %774 = vmatprep.subr.mxu0 0.0
    %775 = vmatpush1.msra.mxu0 %v238
    %776 = vmatprep.subr.mxu0 0.0
    %777 = vmatpush1.msra.mxu0 %v237
    %778 = vmatprep.subr.mxu0 0.0
    %779 = vmatpush1.msra.mxu0 %v236
    %780 = vmatprep.subr.mxu0 0.0
    %781 = vmatpush1.msra.mxu0 %v235
    %782 = vmatprep.subr.mxu0 0.0
    %783 = vmatpush1.msra.mxu0 %v234
    %784 = vmatprep.subr.mxu0 0.0
    %785 = vmatpush1.msra.mxu0 %v233
    %786 = vmatprep.subr.mxu0 0.0
    %787 = vmatpush1.msra.mxu0 %v232
    %788 = vmatprep.subr.mxu0 0.0
    %789 = vmatpush1.msra.mxu0 %v231
    %790 = vmatprep.subr.mxu0 0.0
    %791 = vmatpush1.msra.mxu0 %v230
    %792 = vmatprep.subr.mxu0 0.0
    %793 = vmatpush1.msra.mxu0 %v229
    %794 = vmatprep.subr.mxu0 0.0
    %795 = vmatpush1.msra.mxu0 %v228
    %796 = vmatprep.subr.mxu0 0.0
    %797 = vmatpush1.msra.mxu0 %v227
    %798 = vmatprep.subr.mxu0 0.0
    %799 = vmatpush1.msra.mxu0 %v226
    %800 = vmatprep.subr.mxu0 0.0
    %801 = vmatpush1.msra.mxu0 %v225
    %802 = vmatprep.subr.mxu0 0.0
    %803 = vmatpush2.msra.mxu0 0.0
    %804 = vmatprep.subr.mxu0 0.0
    %805 = vmatpush2.msra.mxu0 0.0
    %806 = vmatprep.subr.mxu0 0.0
    %807 = vmatpush2.msra.mxu0 0.0
    %808 = vmatprep.subr.mxu0 0.0
    %809 = vmatpush2.msra.mxu0 0.0
    %810 = vmatprep.subr.mxu0 0.0
    %811 = vmatpush2.msra.mxu0 0.0
    %812 = vmatprep.subr.mxu0 0.0
    %813 = vmatpush2.msra.mxu0 0.0
    %814 = vmatprep.subr.mxu0 0.0
    %815 = vmatpush2.msra.mxu0 0.0
    %816 = vmatprep.subr.mxu0 0.0
    %817 = vmatpush2.msra.mxu0 0.0
    %818 = vmatprep.subr.mxu0 0.0
    %819 = vmatpush2.msra.mxu0 0.0
    %820 = vmatprep.subr.mxu0 0.0
    %821 = vmatpush2.msra.mxu0 0.0
    %822 = vmatprep.subr.mxu0 0.0
    %823 = vmatpush2.msra.mxu0 0.0
    %824 = vmatprep.subr.mxu0 0.0
    %825 = vmatpush2.msra.mxu0 0.0
    %826 = vmatprep.subr.mxu0 0.0
    %827 = vmatpush2.msra.mxu0 0.0
    %828 = vmatprep.subr.mxu0 0.0
    %829 = vmatpush2.msra.mxu0 0.0
    %830 = vmatprep.subr.mxu0 0.0
    %831 = vmatpush2.msra.mxu0 0.0
    %832 = vmatprep.subr.mxu0 0.0
    %833 = vmatpush2.msra.mxu0 0.0
    %834 = vmatprep.mubr.f32.mxu0 0.0
    %835 = vmatmul.mubr.f32.gmra.mxu0 %v768
    %v836 = vpop.f32.mrf.mxu0
    %v837 = vadd.f32 0.0, %v836
    %v838 = vpop.f32.mrf.mxu0
    %839 = vmatprep.mubr.f32.mxu0 0.0
    %840 = vmatmul.mubr.f32.gmra.mxu0 %v769
    %v841 = vpop.f32.mrf.mxu0
    %v842 = vadd.f32 0.0, %v841
    %v843 = vpop.f32.mrf.mxu0
    %844 = vdwg.mxu0
    %v845 = vadd.f32 %v759, %v837
    %v846 = vadd.f32 %v764, %v842
    %v847 = vadd.f32 %v845, %v323
    %v848 = vadd.f32 %v846, %v323
    %v849 = vmax.f32 %v847, 0.0
    %v850 = vmax.f32 %v848, 0.0
    %851 = vmatprep.subr.mxu0 0.0
    %852 = vmatpush1.msra.mxu0 %v362
    %853 = vmatprep.subr.mxu0 0.0
    %854 = vmatpush1.msra.mxu0 %v361
    %855 = vmatprep.subr.mxu0 0.0
    %856 = vmatpush1.msra.mxu0 %v360
    %857 = vmatprep.subr.mxu0 0.0
    %858 = vmatpush1.msra.mxu0 %v359
    %859 = vmatprep.subr.mxu0 0.0
    %860 = vmatpush1.msra.mxu0 %v358
    %861 = vmatprep.subr.mxu0 0.0
    %862 = vmatpush1.msra.mxu0 %v357
    %863 = vmatprep.subr.mxu0 0.0
    %864 = vmatpush1.msra.mxu0 %v356
    %865 = vmatprep.subr.mxu0 0.0
    %866 = vmatpush1.msra.mxu0 %v355
    %867 = vmatprep.subr.mxu0 0.0
    %868 = vmatpush1.msra.mxu0 %v354
    %869 = vmatprep.subr.mxu0 0.0
    %870 = vmatpush1.msra.mxu0 %v353
    %871 = vmatprep.subr.mxu0 0.0
    %872 = vmatpush1.msra.mxu0 %v352
    %873 = vmatprep.subr.mxu0 0.0
    %874 = vmatpush1.msra.mxu0 %v351
    %875 = vmatprep.subr.mxu0 0.0
    %876 = vmatpush1.msra.mxu0 %v350
    %877 = vmatprep.subr.mxu0 0.0
    %878 = vmatpush1.msra.mxu0 %v349
    %879 = vmatprep.subr.mxu0 0.0
    %880 = vmatpush1.msra.mxu0 %v348
    %881 = vmatprep.subr.mxu0 0.0
    %882 = vmatpush1.msra.mxu0 %v347
    %883 = vmatprep.subr.mxu0 0.0
    %884 = vmatpush2.msra.mxu0 0.0
    %885 = vmatprep.subr.mxu0 0.0
    %886 = vmatpush2.msra.mxu0 0.0
    %887 = vmatprep.subr.mxu0 0.0
    %888 = vmatpush2.msra.mxu0 0.0
    %889 = vmatprep.subr.mxu0 0.0
    %890 = vmatpush2.msra.mxu0 0.0
    %891 = vmatprep.subr.mxu0 0.0
    %892 = vmatpush2.msra.mxu0 0.0
    %893 = vmatprep.subr.mxu0 0.0
    %894 = vmatpush2.msra.mxu0 0.0
    %895 = vmatprep.subr.mxu0 0.0
    %896 = vmatpush2.msra.mxu0 0.0
    %897 = vmatprep.subr.mxu0 0.0
    %898 = vmatpush2.msra.mxu0 0.0
    %899 = vmatprep.subr.mxu0 0.0
    %900 = vmatpush2.msra.mxu0 0.0
    %901 = vmatprep.subr.mxu0 0.0
    %902 = vmatpush2.msra.mxu0 0.0
    %903 = vmatprep.subr.mxu0 0.0
    %904 = vmatpush2.msra.mxu0 0.0
    %905 = vmatprep.subr.mxu0 0.0
    %906 = vmatpush2.msra.mxu0 0.0
    %907 = vmatprep.subr.mxu0 0.0
    %908 = vmatpush2.msra.mxu0 0.0
    %909 = vmatprep.subr.mxu0 0.0
    %910 = vmatpush2.msra.mxu0 0.0
    %911 = vmatprep.subr.mxu0 0.0
    %912 = vmatpush2.msra.mxu0 0.0
    %913 = vmatprep.subr.mxu0 0.0
    %914 = vmatpush2.msra.mxu0 0.0
    %915 = vmatprep.mubr.f32.mxu0 0.0
    %916 = vmatmul.mubr.f32.gmra.mxu0 %v615
    %v917 = vpop.f32.mrf.mxu0
    %v918 = vadd.f32 0.0, %v917
    %v919 = vpop.f32.mrf.mxu0
    %920 = vmatprep.mubr.f32.mxu0 0.0
    %921 = vmatmul.mubr.f32.gmra.mxu0 %v616
    %v922 = vpop.f32.mrf.mxu0
    %v923 = vadd.f32 0.0, %v922
    %v924 = vpop.f32.mrf.mxu0
    %925 = vdwg.mxu0
    %926 = vmatprep.subr.mxu0 0.0
    %927 = vmatpush1.msra.mxu0 %v345
    %928 = vmatprep.subr.mxu0 0.0
    %929 = vmatpush1.msra.mxu0 %v344
    %930 = vmatprep.subr.mxu0 0.0
    %931 = vmatpush1.msra.mxu0 %v343
    %932 = vmatprep.subr.mxu0 0.0
    %933 = vmatpush1.msra.mxu0 %v342
    %934 = vmatprep.subr.mxu0 0.0
    %935 = vmatpush1.msra.mxu0 %v341
    %936 = vmatprep.subr.mxu0 0.0
    %937 = vmatpush1.msra.mxu0 %v340
    %938 = vmatprep.subr.mxu0 0.0
    %939 = vmatpush1.msra.mxu0 %v339
    %940 = vmatprep.subr.mxu0 0.0
    %941 = vmatpush1.msra.mxu0 %v338
    %942 = vmatprep.subr.mxu0 0.0
    %943 = vmatpush1.msra.mxu0 %v337
    %944 = vmatprep.subr.mxu0 0.0
    %945 = vmatpush1.msra.mxu0 %v336
    %946 = vmatprep.subr.mxu0 0.0
    %947 = vmatpush1.msra.mxu0 %v335
    %948 = vmatprep.subr.mxu0 0.0
    %949 = vmatpush1.msra.mxu0 %v334
    %950 = vmatprep.subr.mxu0 0.0
    %951 = vmatpush1.msra.mxu0 %v333
    %952 = vmatprep.subr.mxu0 0.0
    %953 = vmatpush1.msra.mxu0 %v332
    %954 = vmatprep.subr.mxu0 0.0
    %955 = vmatpush1.msra.mxu0 %v331
    %956 = vmatprep.subr.mxu0 0.0
    %957 = vmatpush1.msra.mxu0 %v330
    %958 = vmatprep.subr.mxu0 0.0
    %959 = vmatpush2.msra.mxu0 0.0
    %960 = vmatprep.subr.mxu0 0.0
    %961 = vmatpush2.msra.mxu0 0.0
    %962 = vmatprep.subr.mxu0 0.0
    %963 = vmatpush2.msra.mxu0 0.0
    %964 = vmatprep.subr.mxu0 0.0
    %965 = vmatpush2.msra.mxu0 0.0
    %966 = vmatprep.subr.mxu0 0.0
    %967 = vmatpush2.msra.mxu0 0.0
    %968 = vmatprep.subr.mxu0 0.0
    %969 = vmatpush2.msra.mxu0 0.0
    %970 = vmatprep.subr.mxu0 0.0
    %971 = vmatpush2.msra.mxu0 0.0
    %972 = vmatprep.subr.mxu0 0.0
    %973 = vmatpush2.msra.mxu0 0.0
    %974 = vmatprep.subr.mxu0 0.0
    %975 = vmatpush2.msra.mxu0 0.0
    %976 = vmatprep.subr.mxu0 0.0
    %977 = vmatpush2.msra.mxu0 0.0
    %978 = vmatprep.subr.mxu0 0.0
    %979 = vmatpush2.msra.mxu0 0.0
    %980 = vmatprep.subr.mxu0 0.0
    %981 = vmatpush2.msra.mxu0 0.0
    %982 = vmatprep.subr.mxu0 0.0
    %983 = vmatpush2.msra.mxu0 0.0
    %984 = vmatprep.subr.mxu0 0.0
    %985 = vmatpush2.msra.mxu0 0.0
    %986 = vmatprep.subr.mxu0 0.0
    %987 = vmatpush2.msra.mxu0 0.0
    %988 = vmatprep.subr.mxu0 0.0
    %989 = vmatpush2.msra.mxu0 0.0
    %990 = vmatprep.mubr.f32.mxu0 0.0
    %991 = vmatmul.mubr.f32.gmra.mxu0 %v612
    %v992 = vpop.f32.mrf.mxu0
    %v993 = vadd.f32 %v918, %v992
    %v994 = vpop.f32.mrf.mxu0
    %995 = vmatprep.mubr.f32.mxu0 0.0
    %996 = vmatmul.mubr.f32.gmra.mxu0 %v613
    %v997 = vpop.f32.mrf.mxu0
    %v998 = vadd.f32 %v923, %v997
    %v999 = vpop.f32.mrf.mxu0
    %1000 = vdwg.mxu0
    %1001 = vmatprep.subr.mxu0 0.0
    %1002 = vmatpush1.msra.mxu0 %v529
    %1003 = vmatprep.subr.mxu0 0.0
    %1004 = vmatpush1.msra.mxu0 %v528
    %1005 = vmatprep.subr.mxu0 0.0
    %1006 = vmatpush1.msra.mxu0 %v527
    %1007 = vmatprep.subr.mxu0 0.0
    %1008 = vmatpush1.msra.mxu0 %v526
    %1009 = vmatprep.subr.mxu0 0.0
    %1010 = vmatpush1.msra.mxu0 %v525
    %1011 = vmatprep.subr.mxu0 0.0
    %1012 = vmatpush1.msra.mxu0 %v524
    %1013 = vmatprep.subr.mxu0 0.0
    %1014 = vmatpush1.msra.mxu0 %v523
    %1015 = vmatprep.subr.mxu0 0.0
    %1016 = vmatpush1.msra.mxu0 %v522
    %1017 = vmatprep.subr.mxu0 0.0
    %1018 = vmatpush1.msra.mxu0 %v521
    %1019 = vmatprep.subr.mxu0 0.0
    %1020 = vmatpush1.msra.mxu0 %v520
    %1021 = vmatprep.subr.mxu0 0.0
    %1022 = vmatpush1.msra.mxu0 %v519
    %1023 = vmatprep.subr.mxu0 0.0
    %1024 = vmatpush1.msra.mxu0 %v518
    %1025 = vmatprep.subr.mxu0 0.0
    %1026 = vmatpush1.msra.mxu0 %v517
    %1027 = vmatprep.subr.mxu0 0.0
    %1028 = vmatpush1.msra.mxu0 %v516
    %1029 = vmatprep.subr.mxu0 0.0
    %1030 = vmatpush1.msra.mxu0 %v515
    %1031 = vmatprep.subr.mxu0 0.0
    %1032 = vmatpush1.msra.mxu0 %v514
    %1033 = vmatprep.subr.mxu0 0.0
    %1034 = vmatpush2.msra.mxu0 0.0
    %1035 = vmatprep.subr.mxu0 0.0
    %1036 = vmatpush2.msra.mxu0 0.0
    %1037 = vmatprep.subr.mxu0 0.0
    %1038 = vmatpush2.msra.mxu0 0.0
    %1039 = vmatprep.subr.mxu0 0.0
    %1040 = vmatpush2.msra.mxu0 0.0
    %1041 = vmatprep.subr.mxu0 0.0
    %1042 = vmatpush2.msra.mxu0 0.0
    %1043 = vmatprep.subr.mxu0 0.0
    %1044 = vmatpush2.msra.mxu0 0.0
    %1045 = vmatprep.subr.mxu0 0.0
    %1046 = vmatpush2.msra.mxu0 0.0
    %1047 = vmatprep.subr.mxu0 0.0
    %1048 = vmatpush2.msra.mxu0 0.0
    %1049 = vmatprep.subr.mxu0 0.0
    %1050 = vmatpush2.msra.mxu0 0.0
    %1051 = vmatprep.subr.mxu0 0.0
    %1052 = vmatpush2.msra.mxu0 0.0
    %1053 = vmatprep.subr.mxu0 0.0
    %1054 = vmatpush2.msra.mxu0 0.0
    %1055 = vmatprep.subr.mxu0 0.0
    %1056 = vmatpush2.msra.mxu0 0.0
    %1057 = vmatprep.subr.mxu0 0.0
    %1058 = vmatpush2.msra.mxu0 0.0
    %1059 = vmatprep.subr.mxu0 0.0
    %1060 = vmatpush2.msra.mxu0 0.0
    %1061 = vmatprep.subr.mxu0 0.0
    %1062 = vmatpush2.msra.mxu0 0.0
    %1063 = vmatprep.subr.mxu0 0.0
    %1064 = vmatpush2.msra.mxu0 0.0
    %1065 = vmatprep.mubr.f32.mxu0 0.0
    %1066 = vmatmul.mubr.f32.gmra.mxu0 %v768
    %v1067 = vpop.f32.mrf.mxu0
    %v1068 = vadd.f32 0.0, %v1067
    %v1069 = vpop.f32.mrf.mxu0
    %1070 = vmatprep.mubr.f32.mxu0 0.0
    %1071 = vmatmul.mubr.f32.gmra.mxu0 %v769
    %v1072 = vpop.f32.mrf.mxu0
    %v1073 = vadd.f32 0.0, %v1072
    %v1074 = vpop.f32.mrf.mxu0
    %1075 = vdwg.mxu0
    %v1076 = vadd.f32 %v993, %v1068
    %v1077 = vadd.f32 %v998, %v1073
    %v1078 = vadd.f32 %v1076, %v323
    %v1079 = vadd.f32 %v1077, %v323
    %v1080 = vmax.f32 %v1078, 0.0
    %v1081 = vmax.f32 %v1079, 0.0
    %v1082 = vmax.f32 %v327, %v609
    %v1083 = vmax.f32 %v328, %v610
    %v1084 = vmax.f32 %v849, %v1080
    %v1085 = vmax.f32 %v850, %v1081
    %v1086 = vmax.f32 %v1082, %v1084
    %v1087 = vmax.f32 %v1083, %v1085
    %v1088 = vld [vmem:[%s3] sm:$0xf]
    %vm1089 = vcmask 130048
    %v1091 = vsel %vm1089, %v1088, 0
    %1093 = vmatprep.subr.mxu0 0.0
    %1094 = vmatpush1.msra.mxu0 0.0
    %1095 = vmatprep.subr.mxu0 0.0
    %1096 = vmatpush1.msra.mxu0 0.0
    %1097 = vmatprep.subr.mxu0 0.0
    %1098 = vmatpush1.msra.mxu0 0.0
    %1099 = vmatprep.subr.mxu0 0.0
    %1100 = vmatpush1.msra.mxu0 0.0
    %1101 = vmatprep.subr.mxu0 0.0
    %1102 = vmatpush1.msra.mxu0 0.0
    %1103 = vmatprep.subr.mxu0 0.0
    %1104 = vmatpush1.msra.mxu0 0.0
    %1105 = vmatprep.subr.mxu0 0.0
    %1106 = vmatpush1.msra.mxu0 0.0
    %1107 = vmatprep.subr.mxu0 0.0
    %1108 = vmatpush1.msra.mxu0 0.0
    %1109 = vmatprep.subr.mxu0 0.0
    %1110 = vmatpush1.msra.mxu0 0.0
    %1111 = vmatprep.subr.mxu0 0.0
    %1112 = vmatpush1.msra.mxu0 0.0
    %1113 = vmatprep.subr.mxu0 0.0
    %1114 = vmatpush1.msra.mxu0 0.0
    %1115 = vmatprep.subr.mxu0 0.0
    %1116 = vmatpush1.msra.mxu0 0.0
    %1117 = vmatprep.subr.mxu0 0.0
    %1118 = vmatpush1.msra.mxu0 0.0
    %1119 = vmatprep.subr.mxu0 0.0
    %1120 = vmatpush1.msra.mxu0 0.0
    %1121 = vmatprep.subr.mxu0 0.0
    %1122 = vmatpush1.msra.mxu0 %v1087
    %1123 = vmatprep.subr.mxu0 0.0
    %1124 = vmatpush1.msra.mxu0 %v1086
    %1125 = vmatprep.subr.mxu0 0.0
    %1126 = vmatpush2.msra.mxu0 0.0
    %1127 = vmatprep.subr.mxu0 0.0
    %1128 = vmatpush2.msra.mxu0 0.0
    %1129 = vmatprep.subr.mxu0 0.0
    %1130 = vmatpush2.msra.mxu0 0.0
    %1131 = vmatprep.subr.mxu0 0.0
    %1132 = vmatpush2.msra.mxu0 0.0
    %1133 = vmatprep.subr.mxu0 0.0
    %1134 = vmatpush2.msra.mxu0 0.0
    %1135 = vmatprep.subr.mxu0 0.0
    %1136 = vmatpush2.msra.mxu0 0.0
    %1137 = vmatprep.subr.mxu0 0.0
    %1138 = vmatpush2.msra.mxu0 0.0
    %1139 = vmatprep.subr.mxu0 0.0
    %1140 = vmatpush2.msra.mxu0 0.0
    %1141 = vmatprep.subr.mxu0 0.0
    %1142 = vmatpush2.msra.mxu0 0.0
    %1143 = vmatprep.subr.mxu0 0.0
    %1144 = vmatpush2.msra.mxu0 0.0
    %1145 = vmatprep.subr.mxu0 0.0
    %1146 = vmatpush2.msra.mxu0 0.0
    %1147 = vmatprep.subr.mxu0 0.0
    %1148 = vmatpush2.msra.mxu0 0.0
    %1149 = vmatprep.subr.mxu0 0.0
    %1150 = vmatpush2.msra.mxu0 0.0
    %1151 = vmatprep.subr.mxu0 0.0
    %1152 = vmatpush2.msra.mxu0 0.0
    %1153 = vmatprep.subr.mxu0 0.0
    %1154 = vmatpush2.msra.mxu0 0.0
    %1155 = vmatprep.subr.mxu0 0.0
    %1156 = vmatpush2.msra.mxu0 0.0
    %1157 = vmatprep.mubr.f32.mxu0 0.0
    %1158 = vmatmul.mubr.f32.gmra.mxu0 %v1091
    %v1159 = vpop.f32.mrf.mxu0
    %v1160 = vadd.f32 0.0, %v1159
    %v1161 = vpop.f32.mrf.mxu0
    %1162 = vdwg.mxu0
    %s1163 = scalar_lea.vmem %s3, 4
    %v1164 = vld [vmem:[%s1163] sm:$0xf]
    %v1166 = vsel %vm1089, %v1164, 0
    %1168 = vmatprep.subr.mxu0 0.0
    %1169 = vmatpush1.msra.mxu0 0.0
    %1170 = vmatprep.subr.mxu0 0.0
    %1171 = vmatpush1.msra.mxu0 0.0
    %1172 = vmatprep.subr.mxu0 0.0
    %1173 = vmatpush1.msra.mxu0 0.0
    %1174 = vmatprep.subr.mxu0 0.0
    %1175 = vmatpush1.msra.mxu0 0.0
    %1176 = vmatprep.subr.mxu0 0.0
    %1177 = vmatpush1.msra.mxu0 0.0
    %1178 = vmatprep.subr.mxu0 0.0
    %1179 = vmatpush1.msra.mxu0 0.0
    %1180 = vmatprep.subr.mxu0 0.0
    %1181 = vmatpush1.msra.mxu0 0.0
    %1182 = vmatprep.subr.mxu0 0.0
    %1183 = vmatpush1.msra.mxu0 0.0
    %1184 = vmatprep.subr.mxu0 0.0
    %1185 = vmatpush1.msra.mxu0 0.0
    %1186 = vmatprep.subr.mxu0 0.0
    %1187 = vmatpush1.msra.mxu0 0.0
    %1188 = vmatprep.subr.mxu0 0.0
    %1189 = vmatpush1.msra.mxu0 0.0
    %1190 = vmatprep.subr.mxu0 0.0
    %1191 = vmatpush1.msra.mxu0 0.0
    %1192 = vmatprep.subr.mxu0 0.0
    %1193 = vmatpush1.msra.mxu0 0.0
    %1194 = vmatprep.subr.mxu0 0.0
    %1195 = vmatpush1.msra.mxu0 0.0
    %1196 = vmatprep.subr.mxu0 0.0
    %1197 = vmatpush1.msra.mxu0 %v1087
    %1198 = vmatprep.subr.mxu0 0.0
    %1199 = vmatpush1.msra.mxu0 %v1086
    %1200 = vmatprep.subr.mxu0 0.0
    %1201 = vmatpush2.msra.mxu0 0.0
    %1202 = vmatprep.subr.mxu0 0.0
    %1203 = vmatpush2.msra.mxu0 0.0
    %1204 = vmatprep.subr.mxu0 0.0
    %1205 = vmatpush2.msra.mxu0 0.0
    %1206 = vmatprep.subr.mxu0 0.0
    %1207 = vmatpush2.msra.mxu0 0.0
    %1208 = vmatprep.subr.mxu0 0.0
    %1209 = vmatpush2.msra.mxu0 0.0
    %1210 = vmatprep.subr.mxu0 0.0
    %1211 = vmatpush2.msra.mxu0 0.0
    %1212 = vmatprep.subr.mxu0 0.0
    %1213 = vmatpush2.msra.mxu0 0.0
    %1214 = vmatprep.subr.mxu0 0.0
    %1215 = vmatpush2.msra.mxu0 0.0
    %1216 = vmatprep.subr.mxu0 0.0
    %1217 = vmatpush2.msra.mxu0 0.0
    %1218 = vmatprep.subr.mxu0 0.0
    %1219 = vmatpush2.msra.mxu0 0.0
    %1220 = vmatprep.subr.mxu0 0.0
    %1221 = vmatpush2.msra.mxu0 0.0
    %1222 = vmatprep.subr.mxu0 0.0
    %1223 = vmatpush2.msra.mxu0 0.0
    %1224 = vmatprep.subr.mxu0 0.0
    %1225 = vmatpush2.msra.mxu0 0.0
    %1226 = vmatprep.subr.mxu0 0.0
    %1227 = vmatpush2.msra.mxu0 0.0
    %1228 = vmatprep.subr.mxu0 0.0
    %1229 = vmatpush2.msra.mxu0 0.0
    %1230 = vmatprep.subr.mxu0 0.0
    %1231 = vmatpush2.msra.mxu0 0.0
    %1232 = vmatprep.mubr.f32.mxu0 0.0
    %1233 = vmatmul.mubr.f32.gmra.mxu0 %v1166
    %v1234 = vpop.f32.mrf.mxu0
    %v1235 = vadd.f32 0.0, %v1234
    %v1236 = vpop.f32.mrf.mxu0
    %1237 = vdwg.mxu0
    %s1238 = scalar_lea.vmem %s3, 8
    %v1239 = vld [vmem:[%s1238] sm:$0xf]
    %v1241 = vsel %vm1089, %v1239, 0
    %1243 = vmatprep.subr.mxu0 0.0
    %1244 = vmatpush1.msra.mxu0 0.0
    %1245 = vmatprep.subr.mxu0 0.0
    %1246 = vmatpush1.msra.mxu0 0.0
    %1247 = vmatprep.subr.mxu0 0.0
    %1248 = vmatpush1.msra.mxu0 0.0
    %1249 = vmatprep.subr.mxu0 0.0
    %1250 = vmatpush1.msra.mxu0 0.0
    %1251 = vmatprep.subr.mxu0 0.0
    %1252 = vmatpush1.msra.mxu0 0.0
    %1253 = vmatprep.subr.mxu0 0.0
    %1254 = vmatpush1.msra.mxu0 0.0
    %1255 = vmatprep.subr.mxu0 0.0
    %1256 = vmatpush1.msra.mxu0 0.0
    %1257 = vmatprep.subr.mxu0 0.0
    %1258 = vmatpush1.msra.mxu0 0.0
    %1259 = vmatprep.subr.mxu0 0.0
    %1260 = vmatpush1.msra.mxu0 0.0
    %1261 = vmatprep.subr.mxu0 0.0
    %1262 = vmatpush1.msra.mxu0 0.0
    %1263 = vmatprep.subr.mxu0 0.0
    %1264 = vmatpush1.msra.mxu0 0.0
    %1265 = vmatprep.subr.mxu0 0.0
    %1266 = vmatpush1.msra.mxu0 0.0
    %1267 = vmatprep.subr.mxu0 0.0
    %1268 = vmatpush1.msra.mxu0 0.0
    %1269 = vmatprep.subr.mxu0 0.0
    %1270 = vmatpush1.msra.mxu0 0.0
    %1271 = vmatprep.subr.mxu0 0.0
    %1272 = vmatpush1.msra.mxu0 %v1087
    %1273 = vmatprep.subr.mxu0 0.0
    %1274 = vmatpush1.msra.mxu0 %v1086
    %1275 = vmatprep.subr.mxu0 0.0
    %1276 = vmatpush2.msra.mxu0 0.0
    %1277 = vmatprep.subr.mxu0 0.0
    %1278 = vmatpush2.msra.mxu0 0.0
    %1279 = vmatprep.subr.mxu0 0.0
    %1280 = vmatpush2.msra.mxu0 0.0
    %1281 = vmatprep.subr.mxu0 0.0
    %1282 = vmatpush2.msra.mxu0 0.0
    %1283 = vmatprep.subr.mxu0 0.0
    %1284 = vmatpush2.msra.mxu0 0.0
    %1285 = vmatprep.subr.mxu0 0.0
    %1286 = vmatpush2.msra.mxu0 0.0
    %1287 = vmatprep.subr.mxu0 0.0
    %1288 = vmatpush2.msra.mxu0 0.0
    %1289 = vmatprep.subr.mxu0 0.0
    %1290 = vmatpush2.msra.mxu0 0.0
    %1291 = vmatprep.subr.mxu0 0.0
    %1292 = vmatpush2.msra.mxu0 0.0
    %1293 = vmatprep.subr.mxu0 0.0
    %1294 = vmatpush2.msra.mxu0 0.0
    %1295 = vmatprep.subr.mxu0 0.0
    %1296 = vmatpush2.msra.mxu0 0.0
    %1297 = vmatprep.subr.mxu0 0.0
    %1298 = vmatpush2.msra.mxu0 0.0
    %1299 = vmatprep.subr.mxu0 0.0
    %1300 = vmatpush2.msra.mxu0 0.0
    %1301 = vmatprep.subr.mxu0 0.0
    %1302 = vmatpush2.msra.mxu0 0.0
    %1303 = vmatprep.subr.mxu0 0.0
    %1304 = vmatpush2.msra.mxu0 0.0
    %1305 = vmatprep.subr.mxu0 0.0
    %1306 = vmatpush2.msra.mxu0 0.0
    %1307 = vmatprep.mubr.f32.mxu0 0.0
    %1308 = vmatmul.mubr.f32.gmra.mxu0 %v1241
    %v1309 = vpop.f32.mrf.mxu0
    %v1310 = vadd.f32 0.0, %v1309
    %v1311 = vpop.f32.mrf.mxu0
    %1312 = vdwg.mxu0
    %v1313 = vld [vmem:[%s4] sm:$0xff]
    %v1314 = vld [vmem:[%s4 + $0x8] sm:$0xff]
    %v1315 = vld [vmem:[%s4 + $0x10] sm:$0xff]
    %v1316 = vld [vmem:[%s4 + $0x18] sm:$0xff]
    %v1317 = vld [vmem:[%s4 + $0x20] sm:$0xff]
    %v1318 = vld [vmem:[%s4 + $0x28] sm:$0xff]
    %v1319 = vld [vmem:[%s4 + $0x30] sm:$0xff]
    %v1320 = vld [vmem:[%s4 + $0x38] sm:$0xff]
    %s1321 = scalar_lea.vmem %s4, 128
    %v1322 = vld [vmem:[%s1321] sm:$0xff]
    %v1323 = vld [vmem:[%s1321 + $0x8] sm:$0xff]
    %v1324 = vld [vmem:[%s1321 + $0x10] sm:$0xff]
    %v1325 = vld [vmem:[%s1321 + $0x18] sm:$0xff]
    %v1326 = vld [vmem:[%s1321 + $0x20] sm:$0xff]
    %v1327 = vld [vmem:[%s1321 + $0x28] sm:$0xff]
    %v1328 = vld [vmem:[%s1321 + $0x30] sm:$0xff]
    %v1329 = vld [vmem:[%s1321 + $0x38] sm:$0xff]
    %vm1330 = vcmask 523264
    %v1332 = vsel %vm1330, %v1235, 0
    %1334 = vmatprep.subr.mxu0 0.0
    %1335 = vmatpush1.msra.mxu0 0.0
    %1336 = vmatprep.subr.mxu0 0.0
    %1337 = vmatpush1.msra.mxu0 0.0
    %1338 = vmatprep.subr.mxu0 0.0
    %1339 = vmatpush1.msra.mxu0 0.0
    %1340 = vmatprep.subr.mxu0 0.0
    %1341 = vmatpush1.msra.mxu0 0.0
    %1342 = vmatprep.subr.mxu0 0.0
    %1343 = vmatpush1.msra.mxu0 0.0
    %1344 = vmatprep.subr.mxu0 0.0
    %1345 = vmatpush1.msra.mxu0 0.0
    %1346 = vmatprep.subr.mxu0 0.0
    %1347 = vmatpush1.msra.mxu0 0.0
    %1348 = vmatprep.subr.mxu0 0.0
    %1349 = vmatpush1.msra.mxu0 0.0
    %1350 = vmatprep.subr.mxu0 0.0
    %1351 = vmatpush1.msra.mxu0 %v1329
    %1352 = vmatprep.subr.mxu0 0.0
    %1353 = vmatpush1.msra.mxu0 %v1328
    %1354 = vmatprep.subr.mxu0 0.0
    %1355 = vmatpush1.msra.mxu0 %v1327
    %1356 = vmatprep.subr.mxu0 0.0
    %1357 = vmatpush1.msra.mxu0 %v1326
    %1358 = vmatprep.subr.mxu0 0.0
    %1359 = vmatpush1.msra.mxu0 %v1325
    %1360 = vmatprep.subr.mxu0 0.0
    %1361 = vmatpush1.msra.mxu0 %v1324
    %1362 = vmatprep.subr.mxu0 0.0
    %1363 = vmatpush1.msra.mxu0 %v1323
    %1364 = vmatprep.subr.mxu0 0.0
    %1365 = vmatpush1.msra.mxu0 %v1322
    %1366 = vmatprep.subr.mxu0 0.0
    %1367 = vmatpush2.msra.mxu0 0.0
    %1368 = vmatprep.subr.mxu0 0.0
    %1369 = vmatpush2.msra.mxu0 0.0
    %1370 = vmatprep.subr.mxu0 0.0
    %1371 = vmatpush2.msra.mxu0 0.0
    %1372 = vmatprep.subr.mxu0 0.0
    %1373 = vmatpush2.msra.mxu0 0.0
    %1374 = vmatprep.subr.mxu0 0.0
    %1375 = vmatpush2.msra.mxu0 0.0
    %1376 = vmatprep.subr.mxu0 0.0
    %1377 = vmatpush2.msra.mxu0 0.0
    %1378 = vmatprep.subr.mxu0 0.0
    %1379 = vmatpush2.msra.mxu0 0.0
    %1380 = vmatprep.subr.mxu0 0.0
    %1381 = vmatpush2.msra.mxu0 0.0
    %1382 = vmatprep.subr.mxu0 0.0
    %1383 = vmatpush2.msra.mxu0 0.0
    %1384 = vmatprep.subr.mxu0 0.0
    %1385 = vmatpush2.msra.mxu0 0.0
    %1386 = vmatprep.subr.mxu0 0.0
    %1387 = vmatpush2.msra.mxu0 0.0
    %1388 = vmatprep.subr.mxu0 0.0
    %1389 = vmatpush2.msra.mxu0 0.0
    %1390 = vmatprep.subr.mxu0 0.0
    %1391 = vmatpush2.msra.mxu0 0.0
    %1392 = vmatprep.subr.mxu0 0.0
    %1393 = vmatpush2.msra.mxu0 0.0
    %1394 = vmatprep.subr.mxu0 0.0
    %1395 = vmatpush2.msra.mxu0 0.0
    %1396 = vmatprep.subr.mxu0 0.0
    %1397 = vmatpush2.msra.mxu0 0.0
    %1398 = vmatprep.mubr.f32.mxu0 0.0
    %1399 = vmatmul.mubr.f32.gmra.mxu0 %v1332
    %v1400 = vpop.f32.mrf.mxu0
    %v1401 = vadd.f32 0.0, %v1400
    %v1402 = vpop.f32.mrf.mxu0
    %1403 = vdwg.mxu0
    %v1405 = vsel %vm1330, %v1160, 0
    %1407 = vmatprep.subr.mxu0 0.0
    %1408 = vmatpush1.msra.mxu0 0.0
    %1409 = vmatprep.subr.mxu0 0.0
    %1410 = vmatpush1.msra.mxu0 0.0
    %1411 = vmatprep.subr.mxu0 0.0
    %1412 = vmatpush1.msra.mxu0 0.0
    %1413 = vmatprep.subr.mxu0 0.0
    %1414 = vmatpush1.msra.mxu0 0.0
    %1415 = vmatprep.subr.mxu0 0.0
    %1416 = vmatpush1.msra.mxu0 0.0
    %1417 = vmatprep.subr.mxu0 0.0
    %1418 = vmatpush1.msra.mxu0 0.0
    %1419 = vmatprep.subr.mxu0 0.0
    %1420 = vmatpush1.msra.mxu0 0.0
    %1421 = vmatprep.subr.mxu0 0.0
    %1422 = vmatpush1.msra.mxu0 0.0
    %1423 = vmatprep.subr.mxu0 0.0
    %1424 = vmatpush1.msra.mxu0 %v1320
    %1425 = vmatprep.subr.mxu0 0.0
    %1426 = vmatpush1.msra.mxu0 %v1319
    %1427 = vmatprep.subr.mxu0 0.0
    %1428 = vmatpush1.msra.mxu0 %v1318
    %1429 = vmatprep.subr.mxu0 0.0
    %1430 = vmatpush1.msra.mxu0 %v1317
    %1431 = vmatprep.subr.mxu0 0.0
    %1432 = vmatpush1.msra.mxu0 %v1316
    %1433 = vmatprep.subr.mxu0 0.0
    %1434 = vmatpush1.msra.mxu0 %v1315
    %1435 = vmatprep.subr.mxu0 0.0
    %1436 = vmatpush1.msra.mxu0 %v1314
    %1437 = vmatprep.subr.mxu0 0.0
    %1438 = vmatpush1.msra.mxu0 %v1313
    %1439 = vmatprep.subr.mxu0 0.0
    %1440 = vmatpush2.msra.mxu0 0.0
    %1441 = vmatprep.subr.mxu0 0.0
    %1442 = vmatpush2.msra.mxu0 0.0
    %1443 = vmatprep.subr.mxu0 0.0
    %1444 = vmatpush2.msra.mxu0 0.0
    %1445 = vmatprep.subr.mxu0 0.0
    %1446 = vmatpush2.msra.mxu0 0.0
    %1447 = vmatprep.subr.mxu0 0.0
    %1448 = vmatpush2.msra.mxu0 0.0
    %1449 = vmatprep.subr.mxu0 0.0
    %1450 = vmatpush2.msra.mxu0 0.0
    %1451 = vmatprep.subr.mxu0 0.0
    %1452 = vmatpush2.msra.mxu0 0.0
    %1453 = vmatprep.subr.mxu0 0.0
    %1454 = vmatpush2.msra.mxu0 0.0
    %1455 = vmatprep.subr.mxu0 0.0
    %1456 = vmatpush2.msra.mxu0 0.0
    %1457 = vmatprep.subr.mxu0 0.0
    %1458 = vmatpush2.msra.mxu0 0.0
    %1459 = vmatprep.subr.mxu0 0.0
    %1460 = vmatpush2.msra.mxu0 0.0
    %1461 = vmatprep.subr.mxu0 0.0
    %1462 = vmatpush2.msra.mxu0 0.0
    %1463 = vmatprep.subr.mxu0 0.0
    %1464 = vmatpush2.msra.mxu0 0.0
    %1465 = vmatprep.subr.mxu0 0.0
    %1466 = vmatpush2.msra.mxu0 0.0
    %1467 = vmatprep.subr.mxu0 0.0
    %1468 = vmatpush2.msra.mxu0 0.0
    %1469 = vmatprep.subr.mxu0 0.0
    %1470 = vmatpush2.msra.mxu0 0.0
    %1471 = vmatprep.mubr.f32.mxu0 0.0
    %1472 = vmatmul.mubr.f32.gmra.mxu0 %v1405
    %v1473 = vpop.f32.mrf.mxu0
    %v1474 = vadd.f32 %v1401, %v1473
    %v1475 = vpop.f32.mrf.mxu0
    %1476 = vdwg.mxu0
    %s1477 = scalar_lea.vmem %s4, 256
    %v1478 = vld [vmem:[%s1477] sm:$0xff]
    %v1479 = vld [vmem:[%s1477 + $0x8] sm:$0xff]
    %v1480 = vld [vmem:[%s1477 + $0x10] sm:$0xff]
    %v1481 = vld [vmem:[%s1477 + $0x18] sm:$0xff]
    %v1482 = vld [vmem:[%s1477 + $0x20] sm:$0xff]
    %v1483 = vld [vmem:[%s1477 + $0x28] sm:$0xff]
    %v1484 = vld [vmem:[%s1477 + $0x30] sm:$0xff]
    %v1485 = vld [vmem:[%s1477 + $0x38] sm:$0xff]
    %v1487 = vsel %vm1330, %v1310, 0
    %1489 = vmatprep.subr.mxu0 0.0
    %1490 = vmatpush1.msra.mxu0 0.0
    %1491 = vmatprep.subr.mxu0 0.0
    %1492 = vmatpush1.msra.mxu0 0.0
    %1493 = vmatprep.subr.mxu0 0.0
    %1494 = vmatpush1.msra.mxu0 0.0
    %1495 = vmatprep.subr.mxu0 0.0
    %1496 = vmatpush1.msra.mxu0 0.0
    %1497 = vmatprep.subr.mxu0 0.0
    %1498 = vmatpush1.msra.mxu0 0.0
    %1499 = vmatprep.subr.mxu0 0.0
    %1500 = vmatpush1.msra.mxu0 0.0
    %1501 = vmatprep.subr.mxu0 0.0
    %1502 = vmatpush1.msra.mxu0 0.0
    %1503 = vmatprep.subr.mxu0 0.0
    %1504 = vmatpush1.msra.mxu0 0.0
    %1505 = vmatprep.subr.mxu0 0.0
    %1506 = vmatpush1.msra.mxu0 %v1485
    %1507 = vmatprep.subr.mxu0 0.0
    %1508 = vmatpush1.msra.mxu0 %v1484
    %1509 = vmatprep.subr.mxu0 0.0
    %1510 = vmatpush1.msra.mxu0 %v1483
    %1511 = vmatprep.subr.mxu0 0.0
    %1512 = vmatpush1.msra.mxu0 %v1482
    %1513 = vmatprep.subr.mxu0 0.0
    %1514 = vmatpush1.msra.mxu0 %v1481
    %1515 = vmatprep.subr.mxu0 0.0
    %1516 = vmatpush1.msra.mxu0 %v1480
    %1517 = vmatprep.subr.mxu0 0.0
    %1518 = vmatpush1.msra.mxu0 %v1479
    %1519 = vmatprep.subr.mxu0 0.0
    %1520 = vmatpush1.msra.mxu0 %v1478
    %1521 = vmatprep.subr.mxu0 0.0
    %1522 = vmatpush2.msra.mxu0 0.0
    %1523 = vmatprep.subr.mxu0 0.0
    %1524 = vmatpush2.msra.mxu0 0.0
    %1525 = vmatprep.subr.mxu0 0.0
    %1526 = vmatpush2.msra.mxu0 0.0
    %1527 = vmatprep.subr.mxu0 0.0
    %1528 = vmatpush2.msra.mxu0 0.0
    %1529 = vmatprep.subr.mxu0 0.0
    %1530 = vmatpush2.msra.mxu0 0.0
    %1531 = vmatprep.subr.mxu0 0.0
    %1532 = vmatpush2.msra.mxu0 0.0
    %1533 = vmatprep.subr.mxu0 0.0
    %1534 = vmatpush2.msra.mxu0 0.0
    %1535 = vmatprep.subr.mxu0 0.0
    %1536 = vmatpush2.msra.mxu0 0.0
    %1537 = vmatprep.subr.mxu0 0.0
    %1538 = vmatpush2.msra.mxu0 0.0
    %1539 = vmatprep.subr.mxu0 0.0
    %1540 = vmatpush2.msra.mxu0 0.0
    %1541 = vmatprep.subr.mxu0 0.0
    %1542 = vmatpush2.msra.mxu0 0.0
    %1543 = vmatprep.subr.mxu0 0.0
    %1544 = vmatpush2.msra.mxu0 0.0
    %1545 = vmatprep.subr.mxu0 0.0
    %1546 = vmatpush2.msra.mxu0 0.0
    %1547 = vmatprep.subr.mxu0 0.0
    %1548 = vmatpush2.msra.mxu0 0.0
    %1549 = vmatprep.subr.mxu0 0.0
    %1550 = vmatpush2.msra.mxu0 0.0
    %1551 = vmatprep.subr.mxu0 0.0
    %1552 = vmatpush2.msra.mxu0 0.0
    %1553 = vmatprep.mubr.f32.mxu0 0.0
    %1554 = vmatmul.mubr.f32.gmra.mxu0 %v1487
    %v1555 = vpop.f32.mrf.mxu0
    %v1556 = vadd.f32 0.0, %v1555
    %v1557 = vpop.f32.mrf.mxu0
    %1558 = vdwg.mxu0
    %v1559 = vadd.f32 %v1474, %v1556
    %v1560 = vld [vmem:[%s5] sm:$0x1]
    %v1562 = vlaneseq
    %v1563 = vshrl.u32 %v1562, 7
    %v1564 = vsub.s32 0, %v1563
    %v1565 = vrot.slane %v1560, %v1564
    %v1567 = vadd.f32 %v1559, %v1565
    %v1568 = vmax.f32 %v1567, 0.0
    %s1569 = scalar_lea.vmem %s4, 64
    %v1570 = vld [vmem:[%s1569] sm:$0xff]
    %v1571 = vld [vmem:[%s1569 + $0x8] sm:$0xff]
    %v1572 = vld [vmem:[%s1569 + $0x10] sm:$0xff]
    %v1573 = vld [vmem:[%s1569 + $0x18] sm:$0xff]
    %v1574 = vld [vmem:[%s1569 + $0x20] sm:$0xff]
    %v1575 = vld [vmem:[%s1569 + $0x28] sm:$0xff]
    %v1576 = vld [vmem:[%s1569 + $0x30] sm:$0xff]
    %v1577 = vld [vmem:[%s1569 + $0x38] sm:$0xff]
    %s1578 = scalar_lea.vmem %s4, 192
    %v1579 = vld [vmem:[%s1578] sm:$0xff]
    %v1580 = vld [vmem:[%s1578 + $0x8] sm:$0xff]
    %v1581 = vld [vmem:[%s1578 + $0x10] sm:$0xff]
    %v1582 = vld [vmem:[%s1578 + $0x18] sm:$0xff]
    %v1583 = vld [vmem:[%s1578 + $0x20] sm:$0xff]
    %v1584 = vld [vmem:[%s1578 + $0x28] sm:$0xff]
    %v1585 = vld [vmem:[%s1578 + $0x30] sm:$0xff]
    %v1586 = vld [vmem:[%s1578 + $0x38] sm:$0xff]
    %1587 = vmatprep.subr.mxu0 0.0
    %1588 = vmatpush1.msra.mxu0 0.0
    %1589 = vmatprep.subr.mxu0 0.0
    %1590 = vmatpush1.msra.mxu0 0.0
    %1591 = vmatprep.subr.mxu0 0.0
    %1592 = vmatpush1.msra.mxu0 0.0
    %1593 = vmatprep.subr.mxu0 0.0
    %1594 = vmatpush1.msra.mxu0 0.0
    %1595 = vmatprep.subr.mxu0 0.0
    %1596 = vmatpush1.msra.mxu0 0.0
    %1597 = vmatprep.subr.mxu0 0.0
    %1598 = vmatpush1.msra.mxu0 0.0
    %1599 = vmatprep.subr.mxu0 0.0
    %1600 = vmatpush1.msra.mxu0 0.0
    %1601 = vmatprep.subr.mxu0 0.0
    %1602 = vmatpush1.msra.mxu0 0.0
    %1603 = vmatprep.subr.mxu0 0.0
    %1604 = vmatpush1.msra.mxu0 %v1586
    %1605 = vmatprep.subr.mxu0 0.0
    %1606 = vmatpush1.msra.mxu0 %v1585
    %1607 = vmatprep.subr.mxu0 0.0
    %1608 = vmatpush1.msra.mxu0 %v1584
    %1609 = vmatprep.subr.mxu0 0.0
    %1610 = vmatpush1.msra.mxu0 %v1583
    %1611 = vmatprep.subr.mxu0 0.0
    %1612 = vmatpush1.msra.mxu0 %v1582
    %1613 = vmatprep.subr.mxu0 0.0
    %1614 = vmatpush1.msra.mxu0 %v1581
    %1615 = vmatprep.subr.mxu0 0.0
    %1616 = vmatpush1.msra.mxu0 %v1580
    %1617 = vmatprep.subr.mxu0 0.0
    %1618 = vmatpush1.msra.mxu0 %v1579
    %1619 = vmatprep.subr.mxu0 0.0
    %1620 = vmatpush2.msra.mxu0 0.0
    %1621 = vmatprep.subr.mxu0 0.0
    %1622 = vmatpush2.msra.mxu0 0.0
    %1623 = vmatprep.subr.mxu0 0.0
    %1624 = vmatpush2.msra.mxu0 0.0
    %1625 = vmatprep.subr.mxu0 0.0
    %1626 = vmatpush2.msra.mxu0 0.0
    %1627 = vmatprep.subr.mxu0 0.0
    %1628 = vmatpush2.msra.mxu0 0.0
    %1629 = vmatprep.subr.mxu0 0.0
    %1630 = vmatpush2.msra.mxu0 0.0
    %1631 = vmatprep.subr.mxu0 0.0
    %1632 = vmatpush2.msra.mxu0 0.0
    %1633 = vmatprep.subr.mxu0 0.0
    %1634 = vmatpush2.msra.mxu0 0.0
    %1635 = vmatprep.subr.mxu0 0.0
    %1636 = vmatpush2.msra.mxu0 0.0
    %1637 = vmatprep.subr.mxu0 0.0
    %1638 = vmatpush2.msra.mxu0 0.0
    %1639 = vmatprep.subr.mxu0 0.0
    %1640 = vmatpush2.msra.mxu0 0.0
    %1641 = vmatprep.subr.mxu0 0.0
    %1642 = vmatpush2.msra.mxu0 0.0
    %1643 = vmatprep.subr.mxu0 0.0
    %1644 = vmatpush2.msra.mxu0 0.0
    %1645 = vmatprep.subr.mxu0 0.0
    %1646 = vmatpush2.msra.mxu0 0.0
    %1647 = vmatprep.subr.mxu0 0.0
    %1648 = vmatpush2.msra.mxu0 0.0
    %1649 = vmatprep.subr.mxu0 0.0
    %1650 = vmatpush2.msra.mxu0 0.0
    %1651 = vmatprep.mubr.f32.mxu0 0.0
    %1652 = vmatmul.mubr.f32.gmra.mxu0 %v1332
    %v1653 = vpop.f32.mrf.mxu0
    %v1654 = vadd.f32 0.0, %v1653
    %v1655 = vpop.f32.mrf.mxu0
    %1656 = vdwg.mxu0
    %1657 = vmatprep.subr.mxu0 0.0
    %1658 = vmatpush1.msra.mxu0 0.0
    %1659 = vmatprep.subr.mxu0 0.0
    %1660 = vmatpush1.msra.mxu0 0.0
    %1661 = vmatprep.subr.mxu0 0.0
    %1662 = vmatpush1.msra.mxu0 0.0
    %1663 = vmatprep.subr.mxu0 0.0
    %1664 = vmatpush1.msra.mxu0 0.0
    %1665 = vmatprep.subr.mxu0 0.0
    %1666 = vmatpush1.msra.mxu0 0.0
    %1667 = vmatprep.subr.mxu0 0.0
    %1668 = vmatpush1.msra.mxu0 0.0
    %1669 = vmatprep.subr.mxu0 0.0
    %1670 = vmatpush1.msra.mxu0 0.0
    %1671 = vmatprep.subr.mxu0 0.0
    %1672 = vmatpush1.msra.mxu0 0.0
    %1673 = vmatprep.subr.mxu0 0.0
    %1674 = vmatpush1.msra.mxu0 %v1577
    %1675 = vmatprep.subr.mxu0 0.0
    %1676 = vmatpush1.msra.mxu0 %v1576
    %1677 = vmatprep.subr.mxu0 0.0
    %1678 = vmatpush1.msra.mxu0 %v1575
    %1679 = vmatprep.subr.mxu0 0.0
    %1680 = vmatpush1.msra.mxu0 %v1574
    %1681 = vmatprep.subr.mxu0 0.0
    %1682 = vmatpush1.msra.mxu0 %v1573
    %1683 = vmatprep.subr.mxu0 0.0
    %1684 = vmatpush1.msra.mxu0 %v1572
    %1685 = vmatprep.subr.mxu0 0.0
    %1686 = vmatpush1.msra.mxu0 %v1571
    %1687 = vmatprep.subr.mxu0 0.0
    %1688 = vmatpush1.msra.mxu0 %v1570
    %1689 = vmatprep.subr.mxu0 0.0
    %1690 = vmatpush2.msra.mxu0 0.0
    %1691 = vmatprep.subr.mxu0 0.0
    %1692 = vmatpush2.msra.mxu0 0.0
    %1693 = vmatprep.subr.mxu0 0.0
    %1694 = vmatpush2.msra.mxu0 0.0
    %1695 = vmatprep.subr.mxu0 0.0
    %1696 = vmatpush2.msra.mxu0 0.0
    %1697 = vmatprep.subr.mxu0 0.0
    %1698 = vmatpush2.msra.mxu0 0.0
    %1699 = vmatprep.subr.mxu0 0.0
    %1700 = vmatpush2.msra.mxu0 0.0
    %1701 = vmatprep.subr.mxu0 0.0
    %1702 = vmatpush2.msra.mxu0 0.0
    %1703 = vmatprep.subr.mxu0 0.0
    %1704 = vmatpush2.msra.mxu0 0.0
    %1705 = vmatprep.subr.mxu0 0.0
    %1706 = vmatpush2.msra.mxu0 0.0
    %1707 = vmatprep.subr.mxu0 0.0
    %1708 = vmatpush2.msra.mxu0 0.0
    %1709 = vmatprep.subr.mxu0 0.0
    %1710 = vmatpush2.msra.mxu0 0.0
    %1711 = vmatprep.subr.mxu0 0.0
    %1712 = vmatpush2.msra.mxu0 0.0
    %1713 = vmatprep.subr.mxu0 0.0
    %1714 = vmatpush2.msra.mxu0 0.0
    %1715 = vmatprep.subr.mxu0 0.0
    %1716 = vmatpush2.msra.mxu0 0.0
    %1717 = vmatprep.subr.mxu0 0.0
    %1718 = vmatpush2.msra.mxu0 0.0
    %1719 = vmatprep.subr.mxu0 0.0
    %1720 = vmatpush2.msra.mxu0 0.0
    %1721 = vmatprep.mubr.f32.mxu0 0.0
    %1722 = vmatmul.mubr.f32.gmra.mxu0 %v1405
    %v1723 = vpop.f32.mrf.mxu0
    %v1724 = vadd.f32 %v1654, %v1723
    %v1725 = vpop.f32.mrf.mxu0
    %1726 = vdwg.mxu0
    %s1727 = scalar_lea.vmem %s4, 320
    %v1728 = vld [vmem:[%s1727] sm:$0xff]
    %v1729 = vld [vmem:[%s1727 + $0x8] sm:$0xff]
    %v1730 = vld [vmem:[%s1727 + $0x10] sm:$0xff]
    %v1731 = vld [vmem:[%s1727 + $0x18] sm:$0xff]
    %v1732 = vld [vmem:[%s1727 + $0x20] sm:$0xff]
    %v1733 = vld [vmem:[%s1727 + $0x28] sm:$0xff]
    %v1734 = vld [vmem:[%s1727 + $0x30] sm:$0xff]
    %v1735 = vld [vmem:[%s1727 + $0x38] sm:$0xff]
    %1736 = vmatprep.subr.mxu0 0.0
    %1737 = vmatpush1.msra.mxu0 0.0
    %1738 = vmatprep.subr.mxu0 0.0
    %1739 = vmatpush1.msra.mxu0 0.0
    %1740 = vmatprep.subr.mxu0 0.0
    %1741 = vmatpush1.msra.mxu0 0.0
    %1742 = vmatprep.subr.mxu0 0.0
    %1743 = vmatpush1.msra.mxu0 0.0
    %1744 = vmatprep.subr.mxu0 0.0
    %1745 = vmatpush1.msra.mxu0 0.0
    %1746 = vmatprep.subr.mxu0 0.0
    %1747 = vmatpush1.msra.mxu0 0.0
    %1748 = vmatprep.subr.mxu0 0.0
    %1749 = vmatpush1.msra.mxu0 0.0
    %1750 = vmatprep.subr.mxu0 0.0
    %1751 = vmatpush1.msra.mxu0 0.0
    %1752 = vmatprep.subr.mxu0 0.0
    %1753 = vmatpush1.msra.mxu0 %v1735
    %1754 = vmatprep.subr.mxu0 0.0
    %1755 = vmatpush1.msra.mxu0 %v1734
    %1756 = vmatprep.subr.mxu0 0.0
    %1757 = vmatpush1.msra.mxu0 %v1733
    %1758 = vmatprep.subr.mxu0 0.0
    %1759 = vmatpush1.msra.mxu0 %v1732
    %1760 = vmatprep.subr.mxu0 0.0
    %1761 = vmatpush1.msra.mxu0 %v1731
    %1762 = vmatprep.subr.mxu0 0.0
    %1763 = vmatpush1.msra.mxu0 %v1730
    %1764 = vmatprep.subr.mxu0 0.0
    %1765 = vmatpush1.msra.mxu0 %v1729
    %1766 = vmatprep.subr.mxu0 0.0
    %1767 = vmatpush1.msra.mxu0 %v1728
    %1768 = vmatprep.subr.mxu0 0.0
    %1769 = vmatpush2.msra.mxu0 0.0
    %1770 = vmatprep.subr.mxu0 0.0
    %1771 = vmatpush2.msra.mxu0 0.0
    %1772 = vmatprep.subr.mxu0 0.0
    %1773 = vmatpush2.msra.mxu0 0.0
    %1774 = vmatprep.subr.mxu0 0.0
    %1775 = vmatpush2.msra.mxu0 0.0
    %1776 = vmatprep.subr.mxu0 0.0
    %1777 = vmatpush2.msra.mxu0 0.0
    %1778 = vmatprep.subr.mxu0 0.0
    %1779 = vmatpush2.msra.mxu0 0.0
    %1780 = vmatprep.subr.mxu0 0.0
    %1781 = vmatpush2.msra.mxu0 0.0
    %1782 = vmatprep.subr.mxu0 0.0
    %1783 = vmatpush2.msra.mxu0 0.0
    %1784 = vmatprep.subr.mxu0 0.0
    %1785 = vmatpush2.msra.mxu0 0.0
    %1786 = vmatprep.subr.mxu0 0.0
    %1787 = vmatpush2.msra.mxu0 0.0
    %1788 = vmatprep.subr.mxu0 0.0
    %1789 = vmatpush2.msra.mxu0 0.0
    %1790 = vmatprep.subr.mxu0 0.0
    %1791 = vmatpush2.msra.mxu0 0.0
    %1792 = vmatprep.subr.mxu0 0.0
    %1793 = vmatpush2.msra.mxu0 0.0
    %1794 = vmatprep.subr.mxu0 0.0
    %1795 = vmatpush2.msra.mxu0 0.0
    %1796 = vmatprep.subr.mxu0 0.0
    %1797 = vmatpush2.msra.mxu0 0.0
    %1798 = vmatprep.subr.mxu0 0.0
    %1799 = vmatpush2.msra.mxu0 0.0
    %1800 = vmatprep.mubr.f32.mxu0 0.0
    %1801 = vmatmul.mubr.f32.gmra.mxu0 %v1487
    %v1802 = vpop.f32.mrf.mxu0
    %v1803 = vadd.f32 0.0, %v1802
    %v1804 = vpop.f32.mrf.mxu0
    %1805 = vdwg.mxu0
    %v1806 = vadd.f32 %v1724, %v1803
    %v1807 = vadd.f32 %v1806, %v1565
    %v1808 = vmax.f32 %v1807, 0.0
    %s1809 = scalar_lea.vmem %s3, 12
    %v1810 = vld [vmem:[%s1809] sm:$0xf]
    %v1812 = vsel %vm1089, %v1810, 0
    %1814 = vmatprep.subr.mxu0 0.0
    %1815 = vmatpush1.msra.mxu0 0.0
    %1816 = vmatprep.subr.mxu0 0.0
    %1817 = vmatpush1.msra.mxu0 0.0
    %1818 = vmatprep.subr.mxu0 0.0
    %1819 = vmatpush1.msra.mxu0 0.0
    %1820 = vmatprep.subr.mxu0 0.0
    %1821 = vmatpush1.msra.mxu0 0.0
    %1822 = vmatprep.subr.mxu0 0.0
    %1823 = vmatpush1.msra.mxu0 0.0
    %1824 = vmatprep.subr.mxu0 0.0
    %1825 = vmatpush1.msra.mxu0 0.0
    %1826 = vmatprep.subr.mxu0 0.0
    %1827 = vmatpush1.msra.mxu0 0.0
    %1828 = vmatprep.subr.mxu0 0.0
    %1829 = vmatpush1.msra.mxu0 0.0
    %1830 = vmatprep.subr.mxu0 0.0
    %1831 = vmatpush1.msra.mxu0 0.0
    %1832 = vmatprep.subr.mxu0 0.0
    %1833 = vmatpush1.msra.mxu0 0.0
    %1834 = vmatprep.subr.mxu0 0.0
    %1835 = vmatpush1.msra.mxu0 0.0
    %1836 = vmatprep.subr.mxu0 0.0
    %1837 = vmatpush1.msra.mxu0 0.0
    %1838 = vmatprep.subr.mxu0 0.0
    %1839 = vmatpush1.msra.mxu0 0.0
    %1840 = vmatprep.subr.mxu0 0.0
    %1841 = vmatpush1.msra.mxu0 0.0
    %1842 = vmatprep.subr.mxu0 0.0
    %1843 = vmatpush1.msra.mxu0 %v1087
    %1844 = vmatprep.subr.mxu0 0.0
    %1845 = vmatpush1.msra.mxu0 %v1086
    %1846 = vmatprep.subr.mxu0 0.0
    %1847 = vmatpush2.msra.mxu0 0.0
    %1848 = vmatprep.subr.mxu0 0.0
    %1849 = vmatpush2.msra.mxu0 0.0
    %1850 = vmatprep.subr.mxu0 0.0
    %1851 = vmatpush2.msra.mxu0 0.0
    %1852 = vmatprep.subr.mxu0 0.0
    %1853 = vmatpush2.msra.mxu0 0.0
    %1854 = vmatprep.subr.mxu0 0.0
    %1855 = vmatpush2.msra.mxu0 0.0
    %1856 = vmatprep.subr.mxu0 0.0
    %1857 = vmatpush2.msra.mxu0 0.0
    %1858 = vmatprep.subr.mxu0 0.0
    %1859 = vmatpush2.msra.mxu0 0.0
    %1860 = vmatprep.subr.mxu0 0.0
    %1861 = vmatpush2.msra.mxu0 0.0
    %1862 = vmatprep.subr.mxu0 0.0
    %1863 = vmatpush2.msra.mxu0 0.0
    %1864 = vmatprep.subr.mxu0 0.0
    %1865 = vmatpush2.msra.mxu0 0.0
    %1866 = vmatprep.subr.mxu0 0.0
    %1867 = vmatpush2.msra.mxu0 0.0
    %1868 = vmatprep.subr.mxu0 0.0
    %1869 = vmatpush2.msra.mxu0 0.0
    %1870 = vmatprep.subr.mxu0 0.0
    %1871 = vmatpush2.msra.mxu0 0.0
    %1872 = vmatprep.subr.mxu0 0.0
    %1873 = vmatpush2.msra.mxu0 0.0
    %1874 = vmatprep.subr.mxu0 0.0
    %1875 = vmatpush2.msra.mxu0 0.0
    %1876 = vmatprep.subr.mxu0 0.0
    %1877 = vmatpush2.msra.mxu0 0.0
    %1878 = vmatprep.mubr.f32.mxu0 0.0
    %1879 = vmatmul.mubr.f32.gmra.mxu0 %v1812
    %v1880 = vpop.f32.mrf.mxu0
    %v1881 = vadd.f32 0.0, %v1880
    %v1882 = vpop.f32.mrf.mxu0
    %1883 = vdwg.mxu0
    %s1884 = scalar_lea.vmem %s3, 16
    %v1885 = vld [vmem:[%s1884] sm:$0xf]
    %v1887 = vsel %vm1089, %v1885, 0
    %1889 = vmatprep.subr.mxu0 0.0
    %1890 = vmatpush1.msra.mxu0 0.0
    %1891 = vmatprep.subr.mxu0 0.0
    %1892 = vmatpush1.msra.mxu0 0.0
    %1893 = vmatprep.subr.mxu0 0.0
    %1894 = vmatpush1.msra.mxu0 0.0
    %1895 = vmatprep.subr.mxu0 0.0
    %1896 = vmatpush1.msra.mxu0 0.0
    %1897 = vmatprep.subr.mxu0 0.0
    %1898 = vmatpush1.msra.mxu0 0.0
    %1899 = vmatprep.subr.mxu0 0.0
    %1900 = vmatpush1.msra.mxu0 0.0
    %1901 = vmatprep.subr.mxu0 0.0
    %1902 = vmatpush1.msra.mxu0 0.0
    %1903 = vmatprep.subr.mxu0 0.0
    %1904 = vmatpush1.msra.mxu0 0.0
    %1905 = vmatprep.subr.mxu0 0.0
    %1906 = vmatpush1.msra.mxu0 0.0
    %1907 = vmatprep.subr.mxu0 0.0
    %1908 = vmatpush1.msra.mxu0 0.0
    %1909 = vmatprep.subr.mxu0 0.0
    %1910 = vmatpush1.msra.mxu0 0.0
    %1911 = vmatprep.subr.mxu0 0.0
    %1912 = vmatpush1.msra.mxu0 0.0
    %1913 = vmatprep.subr.mxu0 0.0
    %1914 = vmatpush1.msra.mxu0 0.0
    %1915 = vmatprep.subr.mxu0 0.0
    %1916 = vmatpush1.msra.mxu0 0.0
    %1917 = vmatprep.subr.mxu0 0.0
    %1918 = vmatpush1.msra.mxu0 %v1087
    %1919 = vmatprep.subr.mxu0 0.0
    %1920 = vmatpush1.msra.mxu0 %v1086
    %1921 = vmatprep.subr.mxu0 0.0
    %1922 = vmatpush2.msra.mxu0 0.0
    %1923 = vmatprep.subr.mxu0 0.0
    %1924 = vmatpush2.msra.mxu0 0.0
    %1925 = vmatprep.subr.mxu0 0.0
    %1926 = vmatpush2.msra.mxu0 0.0
    %1927 = vmatprep.subr.mxu0 0.0
    %1928 = vmatpush2.msra.mxu0 0.0
    %1929 = vmatprep.subr.mxu0 0.0
    %1930 = vmatpush2.msra.mxu0 0.0
    %1931 = vmatprep.subr.mxu0 0.0
    %1932 = vmatpush2.msra.mxu0 0.0
    %1933 = vmatprep.subr.mxu0 0.0
    %1934 = vmatpush2.msra.mxu0 0.0
    %1935 = vmatprep.subr.mxu0 0.0
    %1936 = vmatpush2.msra.mxu0 0.0
    %1937 = vmatprep.subr.mxu0 0.0
    %1938 = vmatpush2.msra.mxu0 0.0
    %1939 = vmatprep.subr.mxu0 0.0
    %1940 = vmatpush2.msra.mxu0 0.0
    %1941 = vmatprep.subr.mxu0 0.0
    %1942 = vmatpush2.msra.mxu0 0.0
    %1943 = vmatprep.subr.mxu0 0.0
    %1944 = vmatpush2.msra.mxu0 0.0
    %1945 = vmatprep.subr.mxu0 0.0
    %1946 = vmatpush2.msra.mxu0 0.0
    %1947 = vmatprep.subr.mxu0 0.0
    %1948 = vmatpush2.msra.mxu0 0.0
    %1949 = vmatprep.subr.mxu0 0.0
    %1950 = vmatpush2.msra.mxu0 0.0
    %1951 = vmatprep.subr.mxu0 0.0
    %1952 = vmatpush2.msra.mxu0 0.0
    %1953 = vmatprep.mubr.f32.mxu0 0.0
    %1954 = vmatmul.mubr.f32.gmra.mxu0 %v1887
    %v1955 = vpop.f32.mrf.mxu0
    %v1956 = vadd.f32 0.0, %v1955
    %v1957 = vpop.f32.mrf.mxu0
    %1958 = vdwg.mxu0
    %s1959 = scalar_lea.vmem %s3, 20
    %v1960 = vld [vmem:[%s1959] sm:$0xf]
    %v1962 = vsel %vm1089, %v1960, 0
    %1964 = vmatprep.subr.mxu0 0.0
    %1965 = vmatpush1.msra.mxu0 0.0
    %1966 = vmatprep.subr.mxu0 0.0
    %1967 = vmatpush1.msra.mxu0 0.0
    %1968 = vmatprep.subr.mxu0 0.0
    %1969 = vmatpush1.msra.mxu0 0.0
    %1970 = vmatprep.subr.mxu0 0.0
    %1971 = vmatpush1.msra.mxu0 0.0
    %1972 = vmatprep.subr.mxu0 0.0
    %1973 = vmatpush1.msra.mxu0 0.0
    %1974 = vmatprep.subr.mxu0 0.0
    %1975 = vmatpush1.msra.mxu0 0.0
    %1976 = vmatprep.subr.mxu0 0.0
    %1977 = vmatpush1.msra.mxu0 0.0
    %1978 = vmatprep.subr.mxu0 0.0
    %1979 = vmatpush1.msra.mxu0 0.0
    %1980 = vmatprep.subr.mxu0 0.0
    %1981 = vmatpush1.msra.mxu0 0.0
    %1982 = vmatprep.subr.mxu0 0.0
    %1983 = vmatpush1.msra.mxu0 0.0
    %1984 = vmatprep.subr.mxu0 0.0
    %1985 = vmatpush1.msra.mxu0 0.0
    %1986 = vmatprep.subr.mxu0 0.0
    %1987 = vmatpush1.msra.mxu0 0.0
    %1988 = vmatprep.subr.mxu0 0.0
    %1989 = vmatpush1.msra.mxu0 0.0
    %1990 = vmatprep.subr.mxu0 0.0
    %1991 = vmatpush1.msra.mxu0 0.0
    %1992 = vmatprep.subr.mxu0 0.0
    %1993 = vmatpush1.msra.mxu0 %v1087
    %1994 = vmatprep.subr.mxu0 0.0
    %1995 = vmatpush1.msra.mxu0 %v1086
    %1996 = vmatprep.subr.mxu0 0.0
    %1997 = vmatpush2.msra.mxu0 0.0
    %1998 = vmatprep.subr.mxu0 0.0
    %1999 = vmatpush2.msra.mxu0 0.0
    %2000 = vmatprep.subr.mxu0 0.0
    %2001 = vmatpush2.msra.mxu0 0.0
    %2002 = vmatprep.subr.mxu0 0.0
    %2003 = vmatpush2.msra.mxu0 0.0
    %2004 = vmatprep.subr.mxu0 0.0
    %2005 = vmatpush2.msra.mxu0 0.0
    %2006 = vmatprep.subr.mxu0 0.0
    %2007 = vmatpush2.msra.mxu0 0.0
    %2008 = vmatprep.subr.mxu0 0.0
    %2009 = vmatpush2.msra.mxu0 0.0
    %2010 = vmatprep.subr.mxu0 0.0
    %2011 = vmatpush2.msra.mxu0 0.0
    %2012 = vmatprep.subr.mxu0 0.0
    %2013 = vmatpush2.msra.mxu0 0.0
    %2014 = vmatprep.subr.mxu0 0.0
    %2015 = vmatpush2.msra.mxu0 0.0
    %2016 = vmatprep.subr.mxu0 0.0
    %2017 = vmatpush2.msra.mxu0 0.0
    %2018 = vmatprep.subr.mxu0 0.0
    %2019 = vmatpush2.msra.mxu0 0.0
    %2020 = vmatprep.subr.mxu0 0.0
    %2021 = vmatpush2.msra.mxu0 0.0
    %2022 = vmatprep.subr.mxu0 0.0
    %2023 = vmatpush2.msra.mxu0 0.0
    %2024 = vmatprep.subr.mxu0 0.0
    %2025 = vmatpush2.msra.mxu0 0.0
    %2026 = vmatprep.subr.mxu0 0.0
    %2027 = vmatpush2.msra.mxu0 0.0
    %2028 = vmatprep.mubr.f32.mxu0 0.0
    %2029 = vmatmul.mubr.f32.gmra.mxu0 %v1962
    %v2030 = vpop.f32.mrf.mxu0
    %v2031 = vadd.f32 0.0, %v2030
    %v2032 = vpop.f32.mrf.mxu0
    %2033 = vdwg.mxu0
    %v2035 = vsel %vm1330, %v1956, 0
    %2037 = vmatprep.subr.mxu0 0.0
    %2038 = vmatpush1.msra.mxu0 0.0
    %2039 = vmatprep.subr.mxu0 0.0
    %2040 = vmatpush1.msra.mxu0 0.0
    %2041 = vmatprep.subr.mxu0 0.0
    %2042 = vmatpush1.msra.mxu0 0.0
    %2043 = vmatprep.subr.mxu0 0.0
    %2044 = vmatpush1.msra.mxu0 0.0
    %2045 = vmatprep.subr.mxu0 0.0
    %2046 = vmatpush1.msra.mxu0 0.0
    %2047 = vmatprep.subr.mxu0 0.0
    %2048 = vmatpush1.msra.mxu0 0.0
    %2049 = vmatprep.subr.mxu0 0.0
    %2050 = vmatpush1.msra.mxu0 0.0
    %2051 = vmatprep.subr.mxu0 0.0
    %2052 = vmatpush1.msra.mxu0 0.0
    %2053 = vmatprep.subr.mxu0 0.0
    %2054 = vmatpush1.msra.mxu0 %v1329
    %2055 = vmatprep.subr.mxu0 0.0
    %2056 = vmatpush1.msra.mxu0 %v1328
    %2057 = vmatprep.subr.mxu0 0.0
    %2058 = vmatpush1.msra.mxu0 %v1327
    %2059 = vmatprep.subr.mxu0 0.0
    %2060 = vmatpush1.msra.mxu0 %v1326
    %2061 = vmatprep.subr.mxu0 0.0
    %2062 = vmatpush1.msra.mxu0 %v1325
    %2063 = vmatprep.subr.mxu0 0.0
    %2064 = vmatpush1.msra.mxu0 %v1324
    %2065 = vmatprep.subr.mxu0 0.0
    %2066 = vmatpush1.msra.mxu0 %v1323
    %2067 = vmatprep.subr.mxu0 0.0
    %2068 = vmatpush1.msra.mxu0 %v1322
    %2069 = vmatprep.subr.mxu0 0.0
    %2070 = vmatpush2.msra.mxu0 0.0
    %2071 = vmatprep.subr.mxu0 0.0
    %2072 = vmatpush2.msra.mxu0 0.0
    %2073 = vmatprep.subr.mxu0 0.0
    %2074 = vmatpush2.msra.mxu0 0.0
    %2075 = vmatprep.subr.mxu0 0.0
    %2076 = vmatpush2.msra.mxu0 0.0
    %2077 = vmatprep.subr.mxu0 0.0
    %2078 = vmatpush2.msra.mxu0 0.0
    %2079 = vmatprep.subr.mxu0 0.0
    %2080 = vmatpush2.msra.mxu0 0.0
    %2081 = vmatprep.subr.mxu0 0.0
    %2082 = vmatpush2.msra.mxu0 0.0
    %2083 = vmatprep.subr.mxu0 0.0
    %2084 = vmatpush2.msra.mxu0 0.0
    %2085 = vmatprep.subr.mxu0 0.0
    %2086 = vmatpush2.msra.mxu0 0.0
    %2087 = vmatprep.subr.mxu0 0.0
    %2088 = vmatpush2.msra.mxu0 0.0
    %2089 = vmatprep.subr.mxu0 0.0
    %2090 = vmatpush2.msra.mxu0 0.0
    %2091 = vmatprep.subr.mxu0 0.0
    %2092 = vmatpush2.msra.mxu0 0.0
    %2093 = vmatprep.subr.mxu0 0.0
    %2094 = vmatpush2.msra.mxu0 0.0
    %2095 = vmatprep.subr.mxu0 0.0
    %2096 = vmatpush2.msra.mxu0 0.0
    %2097 = vmatprep.subr.mxu0 0.0
    %2098 = vmatpush2.msra.mxu0 0.0
    %2099 = vmatprep.subr.mxu0 0.0
    %2100 = vmatpush2.msra.mxu0 0.0
    %2101 = vmatprep.mubr.f32.mxu0 0.0
    %2102 = vmatmul.mubr.f32.gmra.mxu0 %v2035
    %v2103 = vpop.f32.mrf.mxu0
    %v2104 = vadd.f32 0.0, %v2103
    %v2105 = vpop.f32.mrf.mxu0
    %2106 = vdwg.mxu0
    %v2108 = vsel %vm1330, %v1881, 0
    %2110 = vmatprep.subr.mxu0 0.0
    %2111 = vmatpush1.msra.mxu0 0.0
    %2112 = vmatprep.subr.mxu0 0.0
    %2113 = vmatpush1.msra.mxu0 0.0
    %2114 = vmatprep.subr.mxu0 0.0
    %2115 = vmatpush1.msra.mxu0 0.0
    %2116 = vmatprep.subr.mxu0 0.0
    %2117 = vmatpush1.msra.mxu0 0.0
    %2118 = vmatprep.subr.mxu0 0.0
    %2119 = vmatpush1.msra.mxu0 0.0
    %2120 = vmatprep.subr.mxu0 0.0
    %2121 = vmatpush1.msra.mxu0 0.0
    %2122 = vmatprep.subr.mxu0 0.0
    %2123 = vmatpush1.msra.mxu0 0.0
    %2124 = vmatprep.subr.mxu0 0.0
    %2125 = vmatpush1.msra.mxu0 0.0
    %2126 = vmatprep.subr.mxu0 0.0
    %2127 = vmatpush1.msra.mxu0 %v1320
    %2128 = vmatprep.subr.mxu0 0.0
    %2129 = vmatpush1.msra.mxu0 %v1319
    %2130 = vmatprep.subr.mxu0 0.0
    %2131 = vmatpush1.msra.mxu0 %v1318
    %2132 = vmatprep.subr.mxu0 0.0
    %2133 = vmatpush1.msra.mxu0 %v1317
    %2134 = vmatprep.subr.mxu0 0.0
    %2135 = vmatpush1.msra.mxu0 %v1316
    %2136 = vmatprep.subr.mxu0 0.0
    %2137 = vmatpush1.msra.mxu0 %v1315
    %2138 = vmatprep.subr.mxu0 0.0
    %2139 = vmatpush1.msra.mxu0 %v1314
    %2140 = vmatprep.subr.mxu0 0.0
    %2141 = vmatpush1.msra.mxu0 %v1313
    %2142 = vmatprep.subr.mxu0 0.0
    %2143 = vmatpush2.msra.mxu0 0.0
    %2144 = vmatprep.subr.mxu0 0.0
    %2145 = vmatpush2.msra.mxu0 0.0
    %2146 = vmatprep.subr.mxu0 0.0
    %2147 = vmatpush2.msra.mxu0 0.0
    %2148 = vmatprep.subr.mxu0 0.0
    %2149 = vmatpush2.msra.mxu0 0.0
    %2150 = vmatprep.subr.mxu0 0.0
    %2151 = vmatpush2.msra.mxu0 0.0
    %2152 = vmatprep.subr.mxu0 0.0
    %2153 = vmatpush2.msra.mxu0 0.0
    %2154 = vmatprep.subr.mxu0 0.0
    %2155 = vmatpush2.msra.mxu0 0.0
    %2156 = vmatprep.subr.mxu0 0.0
    %2157 = vmatpush2.msra.mxu0 0.0
    %2158 = vmatprep.subr.mxu0 0.0
    %2159 = vmatpush2.msra.mxu0 0.0
    %2160 = vmatprep.subr.mxu0 0.0
    %2161 = vmatpush2.msra.mxu0 0.0
    %2162 = vmatprep.subr.mxu0 0.0
    %2163 = vmatpush2.msra.mxu0 0.0
    %2164 = vmatprep.subr.mxu0 0.0
    %2165 = vmatpush2.msra.mxu0 0.0
    %2166 = vmatprep.subr.mxu0 0.0
    %2167 = vmatpush2.msra.mxu0 0.0
    %2168 = vmatprep.subr.mxu0 0.0
    %2169 = vmatpush2.msra.mxu0 0.0
    %2170 = vmatprep.subr.mxu0 0.0
    %2171 = vmatpush2.msra.mxu0 0.0
    %2172 = vmatprep.subr.mxu0 0.0
    %2173 = vmatpush2.msra.mxu0 0.0
    %2174 = vmatprep.mubr.f32.mxu0 0.0
    %2175 = vmatmul.mubr.f32.gmra.mxu0 %v2108
    %v2176 = vpop.f32.mrf.mxu0
    %v2177 = vadd.f32 %v2104, %v2176
    %v2178 = vpop.f32.mrf.mxu0
    %2179 = vdwg.mxu0
    %v2181 = vsel %vm1330, %v2031, 0
    %2183 = vmatprep.subr.mxu0 0.0
    %2184 = vmatpush1.msra.mxu0 0.0
    %2185 = vmatprep.subr.mxu0 0.0
    %2186 = vmatpush1.msra.mxu0 0.0
    %2187 = vmatprep.subr.mxu0 0.0
    %2188 = vmatpush1.msra.mxu0 0.0
    %2189 = vmatprep.subr.mxu0 0.0
    %2190 = vmatpush1.msra.mxu0 0.0
    %2191 = vmatprep.subr.mxu0 0.0
    %2192 = vmatpush1.msra.mxu0 0.0
    %2193 = vmatprep.subr.mxu0 0.0
    %2194 = vmatpush1.msra.mxu0 0.0
    %2195 = vmatprep.subr.mxu0 0.0
    %2196 = vmatpush1.msra.mxu0 0.0
    %2197 = vmatprep.subr.mxu0 0.0
    %2198 = vmatpush1.msra.mxu0 0.0
    %2199 = vmatprep.subr.mxu0 0.0
    %2200 = vmatpush1.msra.mxu0 %v1485
    %2201 = vmatprep.subr.mxu0 0.0
    %2202 = vmatpush1.msra.mxu0 %v1484
    %2203 = vmatprep.subr.mxu0 0.0
    %2204 = vmatpush1.msra.mxu0 %v1483
    %2205 = vmatprep.subr.mxu0 0.0
    %2206 = vmatpush1.msra.mxu0 %v1482
    %2207 = vmatprep.subr.mxu0 0.0
    %2208 = vmatpush1.msra.mxu0 %v1481
    %2209 = vmatprep.subr.mxu0 0.0
    %2210 = vmatpush1.msra.mxu0 %v1480
    %2211 = vmatprep.subr.mxu0 0.0
    %2212 = vmatpush1.msra.mxu0 %v1479
    %2213 = vmatprep.subr.mxu0 0.0
    %2214 = vmatpush1.msra.mxu0 %v1478
    %2215 = vmatprep.subr.mxu0 0.0
    %2216 = vmatpush2.msra.mxu0 0.0
    %2217 = vmatprep.subr.mxu0 0.0
    %2218 = vmatpush2.msra.mxu0 0.0
    %2219 = vmatprep.subr.mxu0 0.0
    %2220 = vmatpush2.msra.mxu0 0.0
    %2221 = vmatprep.subr.mxu0 0.0
    %2222 = vmatpush2.msra.mxu0 0.0
    %2223 = vmatprep.subr.mxu0 0.0
    %2224 = vmatpush2.msra.mxu0 0.0
    %2225 = vmatprep.subr.mxu0 0.0
    %2226 = vmatpush2.msra.mxu0 0.0
    %2227 = vmatprep.subr.mxu0 0.0
    %2228 = vmatpush2.msra.mxu0 0.0
    %2229 = vmatprep.subr.mxu0 0.0
    %2230 = vmatpush2.msra.mxu0 0.0
    %2231 = vmatprep.subr.mxu0 0.0
    %2232 = vmatpush2.msra.mxu0 0.0
    %2233 = vmatprep.subr.mxu0 0.0
    %2234 = vmatpush2.msra.mxu0 0.0
    %2235 = vmatprep.subr.mxu0 0.0
    %2236 = vmatpush2.msra.mxu0 0.0
    %2237 = vmatprep.subr.mxu0 0.0
    %2238 = vmatpush2.msra.mxu0 0.0
    %2239 = vmatprep.subr.mxu0 0.0
    %2240 = vmatpush2.msra.mxu0 0.0
    %2241 = vmatprep.subr.mxu0 0.0
    %2242 = vmatpush2.msra.mxu0 0.0
    %2243 = vmatprep.subr.mxu0 0.0
    %2244 = vmatpush2.msra.mxu0 0.0
    %2245 = vmatprep.subr.mxu0 0.0
    %2246 = vmatpush2.msra.mxu0 0.0
    %2247 = vmatprep.mubr.f32.mxu0 0.0
    %2248 = vmatmul.mubr.f32.gmra.mxu0 %v2181
    %v2249 = vpop.f32.mrf.mxu0
    %v2250 = vadd.f32 0.0, %v2249
    %v2251 = vpop.f32.mrf.mxu0
    %2252 = vdwg.mxu0
    %v2253 = vadd.f32 %v2177, %v2250
    %v2254 = vadd.f32 %v2253, %v1565
    %v2255 = vmax.f32 %v2254, 0.0
    %2256 = vmatprep.subr.mxu0 0.0
    %2257 = vmatpush1.msra.mxu0 0.0
    %2258 = vmatprep.subr.mxu0 0.0
    %2259 = vmatpush1.msra.mxu0 0.0
    %2260 = vmatprep.subr.mxu0 0.0
    %2261 = vmatpush1.msra.mxu0 0.0
    %2262 = vmatprep.subr.mxu0 0.0
    %2263 = vmatpush1.msra.mxu0 0.0
    %2264 = vmatprep.subr.mxu0 0.0
    %2265 = vmatpush1.msra.mxu0 0.0
    %2266 = vmatprep.subr.mxu0 0.0
    %2267 = vmatpush1.msra.mxu0 0.0
    %2268 = vmatprep.subr.mxu0 0.0
    %2269 = vmatpush1.msra.mxu0 0.0
    %2270 = vmatprep.subr.mxu0 0.0
    %2271 = vmatpush1.msra.mxu0 0.0
    %2272 = vmatprep.subr.mxu0 0.0
    %2273 = vmatpush1.msra.mxu0 %v1586
    %2274 = vmatprep.subr.mxu0 0.0
    %2275 = vmatpush1.msra.mxu0 %v1585
    %2276 = vmatprep.subr.mxu0 0.0
    %2277 = vmatpush1.msra.mxu0 %v1584
    %2278 = vmatprep.subr.mxu0 0.0
    %2279 = vmatpush1.msra.mxu0 %v1583
    %2280 = vmatprep.subr.mxu0 0.0
    %2281 = vmatpush1.msra.mxu0 %v1582
    %2282 = vmatprep.subr.mxu0 0.0
    %2283 = vmatpush1.msra.mxu0 %v1581
    %2284 = vmatprep.subr.mxu0 0.0
    %2285 = vmatpush1.msra.mxu0 %v1580
    %2286 = vmatprep.subr.mxu0 0.0
    %2287 = vmatpush1.msra.mxu0 %v1579
    %2288 = vmatprep.subr.mxu0 0.0
    %2289 = vmatpush2.msra.mxu0 0.0
    %2290 = vmatprep.subr.mxu0 0.0
    %2291 = vmatpush2.msra.mxu0 0.0
    %2292 = vmatprep.subr.mxu0 0.0
    %2293 = vmatpush2.msra.mxu0 0.0
    %2294 = vmatprep.subr.mxu0 0.0
    %2295 = vmatpush2.msra.mxu0 0.0
    %2296 = vmatprep.subr.mxu0 0.0
    %2297 = vmatpush2.msra.mxu0 0.0
    %2298 = vmatprep.subr.mxu0 0.0
    %2299 = vmatpush2.msra.mxu0 0.0
    %2300 = vmatprep.subr.mxu0 0.0
    %2301 = vmatpush2.msra.mxu0 0.0
    %2302 = vmatprep.subr.mxu0 0.0
    %2303 = vmatpush2.msra.mxu0 0.0
    %2304 = vmatprep.subr.mxu0 0.0
    %2305 = vmatpush2.msra.mxu0 0.0
    %2306 = vmatprep.subr.mxu0 0.0
    %2307 = vmatpush2.msra.mxu0 0.0
    %2308 = vmatprep.subr.mxu0 0.0
    %2309 = vmatpush2.msra.mxu0 0.0
    %2310 = vmatprep.subr.mxu0 0.0
    %2311 = vmatpush2.msra.mxu0 0.0
    %2312 = vmatprep.subr.mxu0 0.0
    %2313 = vmatpush2.msra.mxu0 0.0
    %2314 = vmatprep.subr.mxu0 0.0
    %2315 = vmatpush2.msra.mxu0 0.0
    %2316 = vmatprep.subr.mxu0 0.0
    %2317 = vmatpush2.msra.mxu0 0.0
    %2318 = vmatprep.subr.mxu0 0.0
    %2319 = vmatpush2.msra.mxu0 0.0
    %2320 = vmatprep.mubr.f32.mxu0 0.0
    %2321 = vmatmul.mubr.f32.gmra.mxu0 %v2035
    %v2322 = vpop.f32.mrf.mxu0
    %v2323 = vadd.f32 0.0, %v2322
    %v2324 = vpop.f32.mrf.mxu0
    %2325 = vdwg.mxu0
    %2326 = vmatprep.subr.mxu0 0.0
    %2327 = vmatpush1.msra.mxu0 0.0
    %2328 = vmatprep.subr.mxu0 0.0
    %2329 = vmatpush1.msra.mxu0 0.0
    %2330 = vmatprep.subr.mxu0 0.0
    %2331 = vmatpush1.msra.mxu0 0.0
    %2332 = vmatprep.subr.mxu0 0.0
    %2333 = vmatpush1.msra.mxu0 0.0
    %2334 = vmatprep.subr.mxu0 0.0
    %2335 = vmatpush1.msra.mxu0 0.0
    %2336 = vmatprep.subr.mxu0 0.0
    %2337 = vmatpush1.msra.mxu0 0.0
    %2338 = vmatprep.subr.mxu0 0.0
    %2339 = vmatpush1.msra.mxu0 0.0
    %2340 = vmatprep.subr.mxu0 0.0
    %2341 = vmatpush1.msra.mxu0 0.0
    %2342 = vmatprep.subr.mxu0 0.0
    %2343 = vmatpush1.msra.mxu0 %v1577
    %2344 = vmatprep.subr.mxu0 0.0
    %2345 = vmatpush1.msra.mxu0 %v1576
    %2346 = vmatprep.subr.mxu0 0.0
    %2347 = vmatpush1.msra.mxu0 %v1575
    %2348 = vmatprep.subr.mxu0 0.0
    %2349 = vmatpush1.msra.mxu0 %v1574
    %2350 = vmatprep.subr.mxu0 0.0
    %2351 = vmatpush1.msra.mxu0 %v1573
    %2352 = vmatprep.subr.mxu0 0.0
    %2353 = vmatpush1.msra.mxu0 %v1572
    %2354 = vmatprep.subr.mxu0 0.0
    %2355 = vmatpush1.msra.mxu0 %v1571
    %2356 = vmatprep.subr.mxu0 0.0
    %2357 = vmatpush1.msra.mxu0 %v1570
    %2358 = vmatprep.subr.mxu0 0.0
    %2359 = vmatpush2.msra.mxu0 0.0
    %2360 = vmatprep.subr.mxu0 0.0
    %2361 = vmatpush2.msra.mxu0 0.0
    %2362 = vmatprep.subr.mxu0 0.0
    %2363 = vmatpush2.msra.mxu0 0.0
    %2364 = vmatprep.subr.mxu0 0.0
    %2365 = vmatpush2.msra.mxu0 0.0
    %2366 = vmatprep.subr.mxu0 0.0
    %2367 = vmatpush2.msra.mxu0 0.0
    %2368 = vmatprep.subr.mxu0 0.0
    %2369 = vmatpush2.msra.mxu0 0.0
    %2370 = vmatprep.subr.mxu0 0.0
    %2371 = vmatpush2.msra.mxu0 0.0
    %2372 = vmatprep.subr.mxu0 0.0
    %2373 = vmatpush2.msra.mxu0 0.0
    %2374 = vmatprep.subr.mxu0 0.0
    %2375 = vmatpush2.msra.mxu0 0.0
    %2376 = vmatprep.subr.mxu0 0.0
    %2377 = vmatpush2.msra.mxu0 0.0
    %2378 = vmatprep.subr.mxu0 0.0
    %2379 = vmatpush2.msra.mxu0 0.0
    %2380 = vmatprep.subr.mxu0 0.0
    %2381 = vmatpush2.msra.mxu0 0.0
    %2382 = vmatprep.subr.mxu0 0.0
    %2383 = vmatpush2.msra.mxu0 0.0
    %2384 = vmatprep.subr.mxu0 0.0
    %2385 = vmatpush2.msra.mxu0 0.0
    %2386 = vmatprep.subr.mxu0 0.0
    %2387 = vmatpush2.msra.mxu0 0.0
    %2388 = vmatprep.subr.mxu0 0.0
    %2389 = vmatpush2.msra.mxu0 0.0
    %2390 = vmatprep.mubr.f32.mxu0 0.0
    %2391 = vmatmul.mubr.f32.gmra.mxu0 %v2108
    %v2392 = vpop.f32.mrf.mxu0
    %v2393 = vadd.f32 %v2323, %v2392
    %v2394 = vpop.f32.mrf.mxu0
    %2395 = vdwg.mxu0
    %2396 = vmatprep.subr.mxu0 0.0
    %2397 = vmatpush1.msra.mxu0 0.0
    %2398 = vmatprep.subr.mxu0 0.0
    %2399 = vmatpush1.msra.mxu0 0.0
    %2400 = vmatprep.subr.mxu0 0.0
    %2401 = vmatpush1.msra.mxu0 0.0
    %2402 = vmatprep.subr.mxu0 0.0
    %2403 = vmatpush1.msra.mxu0 0.0
    %2404 = vmatprep.subr.mxu0 0.0
    %2405 = vmatpush1.msra.mxu0 0.0
    %2406 = vmatprep.subr.mxu0 0.0
    %2407 = vmatpush1.msra.mxu0 0.0
    %2408 = vmatprep.subr.mxu0 0.0
    %2409 = vmatpush1.msra.mxu0 0.0
    %2410 = vmatprep.subr.mxu0 0.0
    %2411 = vmatpush1.msra.mxu0 0.0
    %2412 = vmatprep.subr.mxu0 0.0
    %2413 = vmatpush1.msra.mxu0 %v1735
    %2414 = vmatprep.subr.mxu0 0.0
    %2415 = vmatpush1.msra.mxu0 %v1734
    %2416 = vmatprep.subr.mxu0 0.0
    %2417 = vmatpush1.msra.mxu0 %v1733
    %2418 = vmatprep.subr.mxu0 0.0
    %2419 = vmatpush1.msra.mxu0 %v1732
    %2420 = vmatprep.subr.mxu0 0.0
    %2421 = vmatpush1.msra.mxu0 %v1731
    %2422 = vmatprep.subr.mxu0 0.0
    %2423 = vmatpush1.msra.mxu0 %v1730
    %2424 = vmatprep.subr.mxu0 0.0
    %2425 = vmatpush1.msra.mxu0 %v1729
    %2426 = vmatprep.subr.mxu0 0.0
    %2427 = vmatpush1.msra.mxu0 %v1728
    %2428 = vmatprep.subr.mxu0 0.0
    %2429 = vmatpush2.msra.mxu0 0.0
    %2430 = vmatprep.subr.mxu0 0.0
    %2431 = vmatpush2.msra.mxu0 0.0
    %2432 = vmatprep.subr.mxu0 0.0
    %2433 = vmatpush2.msra.mxu0 0.0
    %2434 = vmatprep.subr.mxu0 0.0
    %2435 = vmatpush2.msra.mxu0 0.0
    %2436 = vmatprep.subr.mxu0 0.0
    %2437 = vmatpush2.msra.mxu0 0.0
    %2438 = vmatprep.subr.mxu0 0.0
    %2439 = vmatpush2.msra.mxu0 0.0
    %2440 = vmatprep.subr.mxu0 0.0
    %2441 = vmatpush2.msra.mxu0 0.0
    %2442 = vmatprep.subr.mxu0 0.0
    %2443 = vmatpush2.msra.mxu0 0.0
    %2444 = vmatprep.subr.mxu0 0.0
    %2445 = vmatpush2.msra.mxu0 0.0
    %2446 = vmatprep.subr.mxu0 0.0
    %2447 = vmatpush2.msra.mxu0 0.0
    %2448 = vmatprep.subr.mxu0 0.0
    %2449 = vmatpush2.msra.mxu0 0.0
    %2450 = vmatprep.subr.mxu0 0.0
    %2451 = vmatpush2.msra.mxu0 0.0
    %2452 = vmatprep.subr.mxu0 0.0
    %2453 = vmatpush2.msra.mxu0 0.0
    %2454 = vmatprep.subr.mxu0 0.0
    %2455 = vmatpush2.msra.mxu0 0.0
    %2456 = vmatprep.subr.mxu0 0.0
    %2457 = vmatpush2.msra.mxu0 0.0
    %2458 = vmatprep.subr.mxu0 0.0
    %2459 = vmatpush2.msra.mxu0 0.0
    %2460 = vmatprep.mubr.f32.mxu0 0.0
    %2461 = vmatmul.mubr.f32.gmra.mxu0 %v2181
    %v2462 = vpop.f32.mrf.mxu0
    %v2463 = vadd.f32 0.0, %v2462
    %v2464 = vpop.f32.mrf.mxu0
    %2465 = vdwg.mxu0
    %v2466 = vadd.f32 %v2393, %v2463
    %v2467 = vadd.f32 %v2466, %v1565
    %v2468 = vmax.f32 %v2467, 0.0
    %v2469 = vmax.f32 %v1568, %v1808
    %v2470 = vmax.f32 %v2255, %v2468
    %v2471 = vmax.f32 %v2469, %v2470
    %v2472 = vld [vmem:[%s6] sm:$0x3]
    %vm2473 = vcmask 31744
    %v2475 = vsel %vm2473, %v2472, 0
    %vm2477 = vcmask 1043456
    %v2479 = vsel %vm2477, %v2471, 0
    %2481 = vmatprep.subr.mxu0 0.0
    %2482 = vmatpush1.msra.mxu0 0.0
    %2483 = vmatprep.subr.mxu0 0.0
    %2484 = vmatpush1.msra.mxu0 0.0
    %2485 = vmatprep.subr.mxu0 0.0
    %2486 = vmatpush1.msra.mxu0 0.0
    %2487 = vmatprep.subr.mxu0 0.0
    %2488 = vmatpush1.msra.mxu0 0.0
    %2489 = vmatprep.subr.mxu0 0.0
    %2490 = vmatpush1.msra.mxu0 0.0
    %2491 = vmatprep.subr.mxu0 0.0
    %2492 = vmatpush1.msra.mxu0 0.0
    %2493 = vmatprep.subr.mxu0 0.0
    %2494 = vmatpush1.msra.mxu0 0.0
    %2495 = vmatprep.subr.mxu0 0.0
    %2496 = vmatpush1.msra.mxu0 0.0
    %2497 = vmatprep.subr.mxu0 0.0
    %2498 = vmatpush1.msra.mxu0 0.0
    %2499 = vmatprep.subr.mxu0 0.0
    %2500 = vmatpush1.msra.mxu0 0.0
    %2501 = vmatprep.subr.mxu0 0.0
    %2502 = vmatpush1.msra.mxu0 0.0
    %2503 = vmatprep.subr.mxu0 0.0
    %2504 = vmatpush1.msra.mxu0 0.0
    %2505 = vmatprep.subr.mxu0 0.0
    %2506 = vmatpush1.msra.mxu0 0.0
    %2507 = vmatprep.subr.mxu0 0.0
    %2508 = vmatpush1.msra.mxu0 0.0
    %2509 = vmatprep.subr.mxu0 0.0
    %2510 = vmatpush1.msra.mxu0 0.0
    %2511 = vmatprep.subr.mxu0 0.0
    %2512 = vmatpush1.msra.mxu0 %v2479
    %2513 = vmatprep.subr.mxu0 0.0
    %2514 = vmatpush2.msra.mxu0 0.0
    %2515 = vmatprep.subr.mxu0 0.0
    %2516 = vmatpush2.msra.mxu0 0.0
    %2517 = vmatprep.subr.mxu0 0.0
    %2518 = vmatpush2.msra.mxu0 0.0
    %2519 = vmatprep.subr.mxu0 0.0
    %2520 = vmatpush2.msra.mxu0 0.0
    %2521 = vmatprep.subr.mxu0 0.0
    %2522 = vmatpush2.msra.mxu0 0.0
    %2523 = vmatprep.subr.mxu0 0.0
    %2524 = vmatpush2.msra.mxu0 0.0
    %2525 = vmatprep.subr.mxu0 0.0
    %2526 = vmatpush2.msra.mxu0 0.0
    %2527 = vmatprep.subr.mxu0 0.0
    %2528 = vmatpush2.msra.mxu0 0.0
    %2529 = vmatprep.subr.mxu0 0.0
    %2530 = vmatpush2.msra.mxu0 0.0
    %2531 = vmatprep.subr.mxu0 0.0
    %2532 = vmatpush2.msra.mxu0 0.0
    %2533 = vmatprep.subr.mxu0 0.0
    %2534 = vmatpush2.msra.mxu0 0.0
    %2535 = vmatprep.subr.mxu0 0.0
    %2536 = vmatpush2.msra.mxu0 0.0
    %2537 = vmatprep.subr.mxu0 0.0
    %2538 = vmatpush2.msra.mxu0 0.0
    %2539 = vmatprep.subr.mxu0 0.0
    %2540 = vmatpush2.msra.mxu0 0.0
    %2541 = vmatprep.subr.mxu0 0.0
    %2542 = vmatpush2.msra.mxu0 0.0
    %2543 = vmatprep.subr.mxu0 0.0
    %2544 = vmatpush2.msra.mxu0 0.0
    %2545 = vmatprep.mubr.f32.mxu0 0.0
    %2546 = vmatmul.mubr.f32.gmra.mxu0 %v2475
    %v2547 = vpop.f32.mrf.mxu0
    %v2548 = vadd.f32 0.0, %v2547
    %v2549 = vpop.f32.mrf.mxu0
    %2550 = vdwg.mxu0
    %v2551 = vld [vmem:[%s7] sm:$0xff]
    %v2552 = vld [vmem:[%s7 + $0x8] sm:$0xff]
    %v2553 = vld [vmem:[%s7 + $0x10] sm:$0xff]
    %v2554 = vld [vmem:[%s7 + $0x18] sm:$0xff]
    %s2555 = scalar_lea.vmem %s6, 2
    %v2556 = vld [vmem:[%s2555] sm:$0x3]
    %v2558 = vsel %vm2473, %v2556, 0
    %2560 = vmatprep.subr.mxu0 0.0
    %2561 = vmatpush1.msra.mxu0 0.0
    %2562 = vmatprep.subr.mxu0 0.0
    %2563 = vmatpush1.msra.mxu0 0.0
    %2564 = vmatprep.subr.mxu0 0.0
    %2565 = vmatpush1.msra.mxu0 0.0
    %2566 = vmatprep.subr.mxu0 0.0
    %2567 = vmatpush1.msra.mxu0 0.0
    %2568 = vmatprep.subr.mxu0 0.0
    %2569 = vmatpush1.msra.mxu0 0.0
    %2570 = vmatprep.subr.mxu0 0.0
    %2571 = vmatpush1.msra.mxu0 0.0
    %2572 = vmatprep.subr.mxu0 0.0
    %2573 = vmatpush1.msra.mxu0 0.0
    %2574 = vmatprep.subr.mxu0 0.0
    %2575 = vmatpush1.msra.mxu0 0.0
    %2576 = vmatprep.subr.mxu0 0.0
    %2577 = vmatpush1.msra.mxu0 0.0
    %2578 = vmatprep.subr.mxu0 0.0
    %2579 = vmatpush1.msra.mxu0 0.0
    %2580 = vmatprep.subr.mxu0 0.0
    %2581 = vmatpush1.msra.mxu0 0.0
    %2582 = vmatprep.subr.mxu0 0.0
    %2583 = vmatpush1.msra.mxu0 0.0
    %2584 = vmatprep.subr.mxu0 0.0
    %2585 = vmatpush1.msra.mxu0 0.0
    %2586 = vmatprep.subr.mxu0 0.0
    %2587 = vmatpush1.msra.mxu0 0.0
    %2588 = vmatprep.subr.mxu0 0.0
    %2589 = vmatpush1.msra.mxu0 0.0
    %2590 = vmatprep.subr.mxu0 0.0
    %2591 = vmatpush1.msra.mxu0 %v2479
    %2592 = vmatprep.subr.mxu0 0.0
    %2593 = vmatpush2.msra.mxu0 0.0
    %2594 = vmatprep.subr.mxu0 0.0
    %2595 = vmatpush2.msra.mxu0 0.0
    %2596 = vmatprep.subr.mxu0 0.0
    %2597 = vmatpush2.msra.mxu0 0.0
    %2598 = vmatprep.subr.mxu0 0.0
    %2599 = vmatpush2.msra.mxu0 0.0
    %2600 = vmatprep.subr.mxu0 0.0
    %2601 = vmatpush2.msra.mxu0 0.0
    %2602 = vmatprep.subr.mxu0 0.0
    %2603 = vmatpush2.msra.mxu0 0.0
    %2604 = vmatprep.subr.mxu0 0.0
    %2605 = vmatpush2.msra.mxu0 0.0
    %2606 = vmatprep.subr.mxu0 0.0
    %2607 = vmatpush2.msra.mxu0 0.0
    %2608 = vmatprep.subr.mxu0 0.0
    %2609 = vmatpush2.msra.mxu0 0.0
    %2610 = vmatprep.subr.mxu0 0.0
    %2611 = vmatpush2.msra.mxu0 0.0
    %2612 = vmatprep.subr.mxu0 0.0
    %2613 = vmatpush2.msra.mxu0 0.0
    %2614 = vmatprep.subr.mxu0 0.0
    %2615 = vmatpush2.msra.mxu0 0.0
    %2616 = vmatprep.subr.mxu0 0.0
    %2617 = vmatpush2.msra.mxu0 0.0
    %2618 = vmatprep.subr.mxu0 0.0
    %2619 = vmatpush2.msra.mxu0 0.0
    %2620 = vmatprep.subr.mxu0 0.0
    %2621 = vmatpush2.msra.mxu0 0.0
    %2622 = vmatprep.subr.mxu0 0.0
    %2623 = vmatpush2.msra.mxu0 0.0
    %2624 = vmatprep.mubr.f32.mxu0 0.0
    %2625 = vmatmul.mubr.f32.gmra.mxu0 %v2558
    %v2626 = vpop.f32.mrf.mxu0
    %v2627 = vadd.f32 0.0, %v2626
    %v2628 = vpop.f32.mrf.mxu0
    %2629 = vdwg.mxu0
    %s2630 = scalar_lea.vmem %s7, 32
    %v2631 = vld [vmem:[%s2630] sm:$0xff]
    %v2632 = vld [vmem:[%s2630 + $0x8] sm:$0xff]
    %v2633 = vld [vmem:[%s2630 + $0x10] sm:$0xff]
    %v2634 = vld [vmem:[%s2630 + $0x18] sm:$0xff]
    %vm2635 = vcmask 261120
    %v2637 = vsel %vm2635, %v2627, 0
    %2639 = vmatprep.subr.mxu0 0.0
    %2640 = vmatpush1.msra.mxu0 0.0
    %2641 = vmatprep.subr.mxu0 0.0
    %2642 = vmatpush1.msra.mxu0 0.0
    %2643 = vmatprep.subr.mxu0 0.0
    %2644 = vmatpush1.msra.mxu0 0.0
    %2645 = vmatprep.subr.mxu0 0.0
    %2646 = vmatpush1.msra.mxu0 0.0
    %2647 = vmatprep.subr.mxu0 0.0
    %2648 = vmatpush1.msra.mxu0 0.0
    %2649 = vmatprep.subr.mxu0 0.0
    %2650 = vmatpush1.msra.mxu0 0.0
    %2651 = vmatprep.subr.mxu0 0.0
    %2652 = vmatpush1.msra.mxu0 0.0
    %2653 = vmatprep.subr.mxu0 0.0
    %2654 = vmatpush1.msra.mxu0 0.0
    %2655 = vmatprep.subr.mxu0 0.0
    %2656 = vmatpush1.msra.mxu0 0.0
    %2657 = vmatprep.subr.mxu0 0.0
    %2658 = vmatpush1.msra.mxu0 0.0
    %2659 = vmatprep.subr.mxu0 0.0
    %2660 = vmatpush1.msra.mxu0 0.0
    %2661 = vmatprep.subr.mxu0 0.0
    %2662 = vmatpush1.msra.mxu0 0.0
    %2663 = vmatprep.subr.mxu0 0.0
    %2664 = vmatpush1.msra.mxu0 %v2634
    %2665 = vmatprep.subr.mxu0 0.0
    %2666 = vmatpush1.msra.mxu0 %v2633
    %2667 = vmatprep.subr.mxu0 0.0
    %2668 = vmatpush1.msra.mxu0 %v2632
    %2669 = vmatprep.subr.mxu0 0.0
    %2670 = vmatpush1.msra.mxu0 %v2631
    %2671 = vmatprep.subr.mxu0 0.0
    %2672 = vmatpush2.msra.mxu0 0.0
    %2673 = vmatprep.subr.mxu0 0.0
    %2674 = vmatpush2.msra.mxu0 0.0
    %2675 = vmatprep.subr.mxu0 0.0
    %2676 = vmatpush2.msra.mxu0 0.0
    %2677 = vmatprep.subr.mxu0 0.0
    %2678 = vmatpush2.msra.mxu0 0.0
    %2679 = vmatprep.subr.mxu0 0.0
    %2680 = vmatpush2.msra.mxu0 0.0
    %2681 = vmatprep.subr.mxu0 0.0
    %2682 = vmatpush2.msra.mxu0 0.0
    %2683 = vmatprep.subr.mxu0 0.0
    %2684 = vmatpush2.msra.mxu0 0.0
    %2685 = vmatprep.subr.mxu0 0.0
    %2686 = vmatpush2.msra.mxu0 0.0
    %2687 = vmatprep.subr.mxu0 0.0
    %2688 = vmatpush2.msra.mxu0 0.0
    %2689 = vmatprep.subr.mxu0 0.0
    %2690 = vmatpush2.msra.mxu0 0.0
    %2691 = vmatprep.subr.mxu0 0.0
    %2692 = vmatpush2.msra.mxu0 0.0
    %2693 = vmatprep.subr.mxu0 0.0
    %2694 = vmatpush2.msra.mxu0 0.0
    %2695 = vmatprep.subr.mxu0 0.0
    %2696 = vmatpush2.msra.mxu0 0.0
    %2697 = vmatprep.subr.mxu0 0.0
    %2698 = vmatpush2.msra.mxu0 0.0
    %2699 = vmatprep.subr.mxu0 0.0
    %2700 = vmatpush2.msra.mxu0 0.0
    %2701 = vmatprep.subr.mxu0 0.0
    %2702 = vmatpush2.msra.mxu0 0.0
    %2703 = vmatprep.mubr.f32.mxu0 0.0
    %2704 = vmatmul.mubr.f32.gmra.mxu0 %v2637
    %v2705 = vpop.f32.mrf.mxu0
    %v2706 = vadd.f32 0.0, %v2705
    %v2707 = vpop.f32.mrf.mxu0
    %2708 = vdwg.mxu0
    %v2710 = vsel %vm2635, %v2548, 0
    %2712 = vmatprep.subr.mxu0 0.0
    %2713 = vmatpush1.msra.mxu0 0.0
    %2714 = vmatprep.subr.mxu0 0.0
    %2715 = vmatpush1.msra.mxu0 0.0
    %2716 = vmatprep.subr.mxu0 0.0
    %2717 = vmatpush1.msra.mxu0 0.0
    %2718 = vmatprep.subr.mxu0 0.0
    %2719 = vmatpush1.msra.mxu0 0.0
    %2720 = vmatprep.subr.mxu0 0.0
    %2721 = vmatpush1.msra.mxu0 0.0
    %2722 = vmatprep.subr.mxu0 0.0
    %2723 = vmatpush1.msra.mxu0 0.0
    %2724 = vmatprep.subr.mxu0 0.0
    %2725 = vmatpush1.msra.mxu0 0.0
    %2726 = vmatprep.subr.mxu0 0.0
    %2727 = vmatpush1.msra.mxu0 0.0
    %2728 = vmatprep.subr.mxu0 0.0
    %2729 = vmatpush1.msra.mxu0 0.0
    %2730 = vmatprep.subr.mxu0 0.0
    %2731 = vmatpush1.msra.mxu0 0.0
    %2732 = vmatprep.subr.mxu0 0.0
    %2733 = vmatpush1.msra.mxu0 0.0
    %2734 = vmatprep.subr.mxu0 0.0
    %2735 = vmatpush1.msra.mxu0 0.0
    %2736 = vmatprep.subr.mxu0 0.0
    %2737 = vmatpush1.msra.mxu0 %v2554
    %2738 = vmatprep.subr.mxu0 0.0
    %2739 = vmatpush1.msra.mxu0 %v2553
    %2740 = vmatprep.subr.mxu0 0.0
    %2741 = vmatpush1.msra.mxu0 %v2552
    %2742 = vmatprep.subr.mxu0 0.0
    %2743 = vmatpush1.msra.mxu0 %v2551
    %2744 = vmatprep.subr.mxu0 0.0
    %2745 = vmatpush2.msra.mxu0 0.0
    %2746 = vmatprep.subr.mxu0 0.0
    %2747 = vmatpush2.msra.mxu0 0.0
    %2748 = vmatprep.subr.mxu0 0.0
    %2749 = vmatpush2.msra.mxu0 0.0
    %2750 = vmatprep.subr.mxu0 0.0
    %2751 = vmatpush2.msra.mxu0 0.0
    %2752 = vmatprep.subr.mxu0 0.0
    %2753 = vmatpush2.msra.mxu0 0.0
    %2754 = vmatprep.subr.mxu0 0.0
    %2755 = vmatpush2.msra.mxu0 0.0
    %2756 = vmatprep.subr.mxu0 0.0
    %2757 = vmatpush2.msra.mxu0 0.0
    %2758 = vmatprep.subr.mxu0 0.0
    %2759 = vmatpush2.msra.mxu0 0.0
    %2760 = vmatprep.subr.mxu0 0.0
    %2761 = vmatpush2.msra.mxu0 0.0
    %2762 = vmatprep.subr.mxu0 0.0
    %2763 = vmatpush2.msra.mxu0 0.0
    %2764 = vmatprep.subr.mxu0 0.0
    %2765 = vmatpush2.msra.mxu0 0.0
    %2766 = vmatprep.subr.mxu0 0.0
    %2767 = vmatpush2.msra.mxu0 0.0
    %2768 = vmatprep.subr.mxu0 0.0
    %2769 = vmatpush2.msra.mxu0 0.0
    %2770 = vmatprep.subr.mxu0 0.0
    %2771 = vmatpush2.msra.mxu0 0.0
    %2772 = vmatprep.subr.mxu0 0.0
    %2773 = vmatpush2.msra.mxu0 0.0
    %2774 = vmatprep.subr.mxu0 0.0
    %2775 = vmatpush2.msra.mxu0 0.0
    %2776 = vmatprep.mubr.f32.mxu0 0.0
    %2777 = vmatmul.mubr.f32.gmra.mxu0 %v2710
    %v2778 = vpop.f32.mrf.mxu0
    %v2779 = vadd.f32 %v2706, %v2778
    %v2780 = vpop.f32.mrf.mxu0
    %2781 = vdwg.mxu0
    %v2782 = vld [vmem:[%s8] sm:$0x1]
    %v2784 = vlaneseq
    %v2785 = vshrl.u32 %v2784, 7
    %v2786 = vsub.s32 0, %v2785
    %v2787 = vrot.slane %v2782, %v2786
    %v2789 = vadd.f32 %v2779, %v2787
    %vm2790 = vcmask 74752
    %2791 = vst.msk [vmem:[#allocation2] sm:$0x3] %vm2790, %v2789
    // Predicated region
    $region38: #{_forward_impl.1} parent=1 // pred_check
      _
    $region39: #{_forward_impl.1} parent=1 // pred_check_branch
      %2793 = sbr.rel (0) target = $region41
    $region40: #{_forward_impl.1} parent=1 // pred_region
      %s2795 = ssub.s32 32, 32
      %2796 = vsyncadd [#allocation3], %s2795
      %s2798 = sshll.u32 [#allocation2], 4
      %s2799 = int_to_ptr.vmem [resolvable:$true] %s2798
      %2801 = dma.vmem_to_hbm [thread:$0]  %s2799, 32, %s9, [#allocation3]
    $region41: #{_forward_impl.1} parent=1 // pred_fallthru
      _
    // Predicated region
    $region42: #{_forward_impl.1} parent=1 // pred_check
      _
    $region43: #{_forward_impl.1} parent=1 // pred_check_branch
      %2803 = sbr.rel (0) target = $region45
    $region44: #{_forward_impl.1} parent=1 // pred_region
      %2804 = dma.done [#allocation3], 32
    $region45: #{_forward_impl.1} parent=1 // pred_fallthru
      _
    %2805 = vsyncpa [#allocation3], 1

</llo_original>
